<compile_context>
chip_gen: v7x
topology: tpu7x:2x2x1
jax: 0.10.0
libtpu: 0.0.40
codegen_flags: <defaults>
</compile_context>

<pallas_src>
import math
import numpy as np
import jax
import jax.numpy as jnp
from jax.experimental import pallas as pl
from jax.experimental.pallas import tpu as pltpu

# Module configuration exercised here (all branches active):
DIM_IN = 4
DIM_OUT = 8           # dim_in != dim_out  -> learned 1x1 shortcut
H = W = 16
NEG_SLOPE = 0.2       # LeakyReLU(0.2)
EPS = 1e-5            # PyTorch InstanceNorm2d default eps


# ----------------------------------------------------------------------------
# Precomputed structural matrices (plain numpy, deterministic, trace-time only)
# ----------------------------------------------------------------------------
def _make_shift_mats(h, w):
    """S[t][out_p, src_p] = 1 if src pixel feeds output pixel under 3x3 tap t."""
    hw = h * w
    s = np.zeros((9, hw, hw), np.float32)
    for kh in range(3):
        for kw in range(3):
            t = kh * 3 + kw
            for i in range(h):
                for j in range(w):
                    si, sj = i + kh - 1, j + kw - 1
                    if 0 <= si < h and 0 <= sj < w:
                        s[t, i * w + j, si * w + sj] = 1.0
    return s


def _make_pool_mat(h, w):
    """P[out_p, src_p]: avg_pool2d(2) as a matrix on flattened images."""
    ho, wo = h // 2, w // 2
    p = np.zeros((ho * wo, h * w), np.float32)
    for i in range(ho):
        for j in range(wo):
            for di in range(2):
                for dj in range(2):
                    p[i * wo + j, (2 * i + di) * w + (2 * j + dj)] = 0.25
    return p


# ----------------------------------------------------------------------------
# Pallas kernel (one image per grid step, layout (C, H*W))
# ----------------------------------------------------------------------------
def _leaky(v):
    return jnp.where(v > 0, v, NEG_SLOPE * v)


def _inorm(v, gamma, beta):
    # v: (C, HW); per-channel stats over the spatial (lane) axis, biased var.
    mu = jnp.mean(v, axis=1, keepdims=True)
    var = jnp.mean((v - mu) * (v - mu), axis=1, keepdims=True)
    return (v - mu) * jax.lax.rsqrt(var + EPS) * gamma + beta


def resblk_kernel(x_ref, pst_ref, s2t_ref, poolt_ref,
                  wk1_ref, b1_ref, wk2_ref, b2_ref, wsc_ref,
                  g1_ref, be1_ref, g2_ref, be2_ref, out_ref):
    x = x_ref[0]                                                        # (Cin, HW)

    # ---- shortcut: pool first (HW -> HW/4), then the 1x1 channel mix ----
    xp = jnp.dot(x, poolt_ref[...], preferred_element_type=jnp.float32)   # (Cin, HW4)
    sc = jnp.dot(wsc_ref[...], xp, preferred_element_type=jnp.float32)    # (Cout, HW4)

    # ---- residual branch ----
    y = _leaky(_inorm(x, g1_ref[...], be1_ref[...]))                       # (Cin, HW)

    # conv1 (3x3, pad 1) fused with avg_pool2d(2): tiny per-tap channel mixes,
    # then ONE deep-K matmul against the stacked (pool @ shift)^T matrices.
    taps1 = [jnp.dot(wk1_ref[t], y, preferred_element_type=jnp.float32)
             for t in range(9)]                                            # 9 x (Cin, HW)
    z = jnp.dot(jnp.concatenate(taps1, axis=1), pst_ref[...],
                preferred_element_type=jnp.float32) + b1_ref[...]          # (Cin, HW4)

    z = _leaky(_inorm(z, g2_ref[...], be2_ref[...]))

    # conv2 (3x3, pad 1) at the downsampled resolution, same stacked-K trick.
    taps2 = [jnp.dot(wk2_ref[t], z, preferred_element_type=jnp.float32)
             for t in range(9)]                                            # 9 x (Cout, HW4)
    r = jnp.dot(jnp.concatenate(taps2, axis=1), s2t_ref[...],
                preferred_element_type=jnp.float32) + b2_ref[...]          # (Cout, HW4)

    out_ref[0] = (sc + r) * (1.0 / math.sqrt(2.0))


# ----------------------------------------------------------------------------
# Wrapper
# ----------------------------------------------------------------------------
def resblk_forward(x_nchw, params):
    n, cin, h, w = x_nchw.shape
    cout = params["conv2_w"].shape[0]
    hw = h * w
    oh, ow = h // 2, w // 2
    hw4 = oh * ow

    # NCHW is already channel-major-then-spatial: plain reshape, no transpose.
    x_flat = x_nchw.reshape(n, cin, hw)

    s1_np = _make_shift_mats(h, w)                    # (9, HW, HW)
    pool_np = _make_pool_mat(h, w)                    # (HW4, HW)
    s2_np = _make_shift_mats(oh, ow)                  # (9, HW4, HW4)

    # (pool @ shift)^T per tap, stacked along K            -> (9*HW, HW4)
    pst = jnp.asarray(np.concatenate([(pool_np @ s1_np[t]).T for t in range(9)], axis=0))
    # shift^T per tap at the downsampled resolution, stacked -> (9*HW4, HW4)
    s2t = jnp.asarray(np.concatenate([s2_np[t].T for t in range(9)], axis=0))
    poolt = jnp.asarray(pool_np.T)                    # (HW, HW4)

    # Per-tap channel-mix weights (left-multiplied): [t, out_ch, in_ch]
    wk1 = jnp.transpose(params["conv1_w"], (2, 3, 0, 1)).reshape(9, cin, cin)
    wk2 = jnp.transpose(params["conv2_w"], (2, 3, 0, 1)).reshape(9, cout, cin)
    wsc = params["conv1x1_w"][:, :, 0, 0]             # (Cout, Cin)
    b1 = params["conv1_b"].reshape(cin, 1)
    b2 = params["conv2_b"].reshape(cout, 1)
    g1 = params["norm1_g"].reshape(cin, 1)
    be1 = params["norm1_b"].reshape(cin, 1)
    g2 = params["norm2_g"].reshape(cin, 1)
    be2 = params["norm2_b"].reshape(cin, 1)

    def const2d(shape):
        return pl.BlockSpec(shape, lambda i: (0, 0))

    def const3d(shape):
        return pl.BlockSpec(shape, lambda i: (0, 0, 0))

    out_flat = pl.pallas_call(
        resblk_kernel,
        out_shape=jax.ShapeDtypeStruct((n, cout, hw4), jnp.float32),
        grid=(n,),
        in_specs=[
            pl.BlockSpec((1, cin, hw), lambda i: (i, 0, 0)),   # x
            const2d((9 * hw, hw4)),                            # pst
            const2d((9 * hw4, hw4)),                           # s2t
            const2d((hw, hw4)),                                # poolt
            const3d((9, cin, cin)),                            # wk1
            const2d((cin, 1)),                                 # b1
            const3d((9, cout, cin)),                           # wk2
            const2d((cout, 1)),                                # b2
            const2d((cout, cin)),                              # wsc
            const2d((cin, 1)), const2d((cin, 1)),              # g1, be1
            const2d((cin, 1)), const2d((cin, 1)),              # g2, be2
        ],
        out_specs=pl.BlockSpec((1, cout, hw4), lambda i: (i, 0, 0)),
        compiler_params=pltpu.CompilerParams(
            dimension_semantics=("parallel",)),
    )(x_flat, pst, s2t, poolt, wk1, b1, wk2, b2, wsc, g1, be1, g2, be2)

    # (N, Cout, HW4) -> NCHW at the downsampled resolution (plain reshape).
    return out_flat.reshape(n, cout, oh, ow)


# ----------------------------------------------------------------------------
# Pure-JAX reference (for correctness check only)
# ----------------------------------------------------------------------------
def ref_forward(x, params):
    def inorm(v, g, b):
        mu = v.mean(axis=(2, 3), keepdims=True)
        var = ((v - mu) ** 2).mean(axis=(2, 3), keepdims=True)
        return (v - mu) / jnp.sqrt(var + EPS) * g[None, :, None, None] + b[None, :, None, None]

    def leaky(v):
        return jnp.where(v > 0, v, NEG_SLOPE * v)

    def conv(v, wt, b=None, pad=1):
        y = jax.lax.conv_general_dilated(
            v, wt, (1, 1), [(pad, pad), (pad, pad)],
            dimension_numbers=("NCHW", "OIHW", "NCHW"))
        if b is not None:
            y = y + b[None, :, None, None]
        return y

    def pool2(v):
        n, c, h, w = v.shape
        return v.reshape(n, c, h // 2, 2, w // 2, 2).mean(axis=(3, 5))

    sc = pool2(conv(x, params["conv1x1_w"], None, pad=0))
    r = inorm(x, params["norm1_g"], params["norm1_b"])
    r = leaky(r)
    r = conv(r, params["conv1_w"], params["conv1_b"])
    r = pool2(r)
    r = inorm(r, params["norm2_g"], params["norm2_b"])
    r = leaky(r)
    r = conv(r, params["conv2_w"], params["conv2_b"])
    return (sc + r) / math.sqrt(2.0)


if __name__ == "__main__":
    key = jax.random.PRNGKey(0)
    keys = jax.random.split(key, 10)
    params = {
        "conv1_w":  0.1 * jax.random.normal(keys[0], (DIM_IN, DIM_IN, 3, 3), jnp.float32),
        "conv1_b":  0.1 * jax.random.normal(keys[1], (DIM_IN,), jnp.float32),
        "conv2_w":  0.1 * jax.random.normal(keys[2], (DIM_OUT, DIM_IN, 3, 3), jnp.float32),
        "conv2_b":  0.1 * jax.random.normal(keys[3], (DIM_OUT,), jnp.float32),
        "conv1x1_w": 0.1 * jax.random.normal(keys[4], (DIM_OUT, DIM_IN, 1, 1), jnp.float32),
        "norm1_g":  1.0 + 0.1 * jax.random.normal(keys[5], (DIM_IN,), jnp.float32),
        "norm1_b":  0.1 * jax.random.normal(keys[6], (DIM_IN,), jnp.float32),
        "norm2_g":  1.0 + 0.1 * jax.random.normal(keys[7], (DIM_IN,), jnp.float32),
        "norm2_b":  0.1 * jax.random.normal(keys[8], (DIM_IN,), jnp.float32),
    }
    x = jax.random.normal(keys[9], (2, DIM_IN, H, W), jnp.float32)

    out = jax.block_until_ready(resblk_forward(x, params))
    assert out.shape == (2, DIM_OUT, H // 2, W // 2), out.shape

    ref = ref_forward(x, params)
    max_err = float(jnp.max(jnp.abs(out - ref)))
    assert max_err < 5e-4, f"max_err={max_err}"

    print("KERNEL_OK")
</pallas_src>

<mosaic_0001>
module attributes {stable_mosaic.version = 11 : i64} {
  func.func @resblk_kernel(%arg0: i32, %arg1: memref<1x4x256xf32, #tpu.memory_space<vmem>>, %arg2: memref<2304x64xf32, #tpu.memory_space<vmem>>, %arg3: memref<576x64xf32, #tpu.memory_space<vmem>>, %arg4: memref<256x64xf32, #tpu.memory_space<vmem>>, %arg5: memref<9x4x4xf32, #tpu.memory_space<vmem>>, %arg6: memref<4x1xf32, #tpu.memory_space<vmem>>, %arg7: memref<9x8x4xf32, #tpu.memory_space<vmem>>, %arg8: memref<8x1xf32, #tpu.memory_space<vmem>>, %arg9: memref<8x4xf32, #tpu.memory_space<vmem>>, %arg10: memref<4x1xf32, #tpu.memory_space<vmem>>, %arg11: memref<4x1xf32, #tpu.memory_space<vmem>>, %arg12: memref<4x1xf32, #tpu.memory_space<vmem>>, %arg13: memref<4x1xf32, #tpu.memory_space<vmem>>, %arg14: memref<1x8x64xf32, #tpu.memory_space<vmem>>) attributes {dimension_semantics = [#tpu.dimension_semantics<parallel>], iteration_bounds = array<i64: 2>, scalar_prefetch = 0 : i64, scratch_operands = 0 : i64, tpu.core_type = #tpu.core_type<tc>, window_params = [{transform_indices = @transform_0, window_bounds = array<i64: 1, 4, 256>}, {pipeline_mode = #tpu.pipeline_mode<synchronous>, transform_indices = @transform_1, window_bounds = array<i64: 2304, 64>}, {pipeline_mode = #tpu.pipeline_mode<synchronous>, transform_indices = @transform_2, window_bounds = array<i64: 576, 64>}, {pipeline_mode = #tpu.pipeline_mode<synchronous>, transform_indices = @transform_3, window_bounds = array<i64: 256, 64>}, {pipeline_mode = #tpu.pipeline_mode<synchronous>, transform_indices = @transform_4, window_bounds = array<i64: 9, 4, 4>}, {pipeline_mode = #tpu.pipeline_mode<synchronous>, transform_indices = @transform_5, window_bounds = array<i64: 4, 1>}, {pipeline_mode = #tpu.pipeline_mode<synchronous>, transform_indices = @transform_6, window_bounds = array<i64: 9, 8, 4>}, {pipeline_mode = #tpu.pipeline_mode<synchronous>, transform_indices = @transform_7, window_bounds = array<i64: 8, 1>}, {pipeline_mode = #tpu.pipeline_mode<synchronous>, transform_indices = @transform_8, window_bounds = array<i64: 8, 4>}, {pipeline_mode = #tpu.pipeline_mode<synchronous>, transform_indices = @transform_9, window_bounds = array<i64: 4, 1>}, {pipeline_mode = #tpu.pipeline_mode<synchronous>, transform_indices = @transform_10, window_bounds = array<i64: 4, 1>}, {pipeline_mode = #tpu.pipeline_mode<synchronous>, transform_indices = @transform_11, window_bounds = array<i64: 4, 1>}, {pipeline_mode = #tpu.pipeline_mode<synchronous>, transform_indices = @transform_12, window_bounds = array<i64: 4, 1>}, {transform_indices = @transform_13, window_bounds = array<i64: 1, 8, 64>}]} {
    %c0 = arith.constant 0 : index
    %c0_0 = arith.constant 0 : index
    %c0_1 = arith.constant 0 : index
    %0 = vector.load %arg1[%c0, %c0_0, %c0_1] : memref<1x4x256xf32, #tpu.memory_space<vmem>>, vector<1x4x256xf32>
    %1 = vector.shape_cast %0 : vector<1x4x256xf32> to vector<4x256xf32>
    %c0_2 = arith.constant 0 : index
    %c0_3 = arith.constant 0 : index
    %2 = vector.load %arg4[%c0_2, %c0_3] : memref<256x64xf32, #tpu.memory_space<vmem>>, vector<256x64xf32>
    %cst = arith.constant dense<0.000000e+00> : vector<4x64xf32>
    %3 = tpu.matmul %1, %2, %cst {dimension_numbers = #tpu.dot_dimension_numbers<[1], [0], [0], [1], [0, 0, 1, 1], [], []>} : vector<4x256xf32>, vector<256x64xf32>, vector<4x64xf32> -> vector<4x64xf32>
    %c0_4 = arith.constant 0 : index
    %c0_5 = arith.constant 0 : index
    %4 = vector.load %arg9[%c0_4, %c0_5] : memref<8x4xf32, #tpu.memory_space<vmem>>, vector<8x4xf32>
    %cst_6 = arith.constant dense<0.000000e+00> : vector<8x64xf32>
    %5 = tpu.matmul %4, %3, %cst_6 {dimension_numbers = #tpu.dot_dimension_numbers<[1], [0], [0], [1], [0, 0, 1, 1], [], []>} : vector<8x4xf32>, vector<4x64xf32>, vector<8x64xf32> -> vector<8x64xf32>
    %c0_7 = arith.constant 0 : index
    %c0_8 = arith.constant 0 : index
    %6 = vector.load %arg10[%c0_7, %c0_8] : memref<4x1xf32, #tpu.memory_space<vmem>>, vector<4x1xf32>
    %c0_9 = arith.constant 0 : index
    %c0_10 = arith.constant 0 : index
    %7 = vector.load %arg11[%c0_9, %c0_10] : memref<4x1xf32, #tpu.memory_space<vmem>>, vector<4x1xf32>
    %cst_11 = arith.constant dense<0.000000e+00> : vector<4xf32>
    %8 = vector.multi_reduction <add>, %1, %cst_11 [1] : vector<4x256xf32> to vector<4xf32>
    %9 = vector.shape_cast %8 : vector<4xf32> to vector<4x1xf32>
    %cst_12 = arith.constant 2.560000e+02 : f32
    %10 = vector.broadcast %cst_12 : f32 to vector<4x1xf32>
    %11 = arith.divf %9, %10 : vector<4x1xf32>
    %12 = vector.broadcast %11 : vector<4x1xf32> to vector<4x256xf32>
    %13 = arith.subf %1, %12 : vector<4x256xf32>
    %14 = vector.broadcast %11 : vector<4x1xf32> to vector<4x256xf32>
    %15 = arith.subf %1, %14 : vector<4x256xf32>
    %16 = arith.mulf %13, %15 : vector<4x256xf32>
    %cst_13 = arith.constant dense<0.000000e+00> : vector<4xf32>
    %17 = vector.multi_reduction <add>, %16, %cst_13 [1] : vector<4x256xf32> to vector<4xf32>
    %18 = vector.shape_cast %17 : vector<4xf32> to vector<4x1xf32>
    %cst_14 = arith.constant 2.560000e+02 : f32
    %19 = vector.broadcast %cst_14 : f32 to vector<4x1xf32>
    %20 = arith.divf %18, %19 : vector<4x1xf32>
    %21 = vector.broadcast %11 : vector<4x1xf32> to vector<4x256xf32>
    %22 = arith.subf %1, %21 : vector<4x256xf32>
    %cst_15 = arith.constant 9.99999974E-6 : f32
    %23 = vector.broadcast %cst_15 : f32 to vector<4x1xf32>
    %24 = arith.addf %20, %23 : vector<4x1xf32>
    %25 = math.rsqrt %24 : vector<4x1xf32>
    %26 = vector.broadcast %25 : vector<4x1xf32> to vector<4x256xf32>
    %27 = arith.mulf %22, %26 : vector<4x256xf32>
    %28 = vector.broadcast %6 : vector<4x1xf32> to vector<4x256xf32>
    %29 = arith.mulf %27, %28 : vector<4x256xf32>
    %30 = vector.broadcast %7 : vector<4x1xf32> to vector<4x256xf32>
    %31 = arith.addf %29, %30 : vector<4x256xf32>
    %cst_16 = arith.constant 0.000000e+00 : f32
    %32 = vector.broadcast %cst_16 : f32 to vector<4x256xf32>
    %33 = arith.cmpf ogt, %31, %32 : vector<4x256xf32>
    %cst_17 = arith.constant 2.000000e-01 : f32
    %34 = vector.broadcast %cst_17 : f32 to vector<4x256xf32>
    %35 = arith.mulf %34, %31 : vector<4x256xf32>
    %36 = arith.select %33, %31, %35 : vector<4x256xi1>, vector<4x256xf32>
    %c0_18 = arith.constant 0 : index
    %c0_19 = arith.constant 0 : index
    %c0_20 = arith.constant 0 : index
    %37 = vector.load %arg5[%c0_18, %c0_19, %c0_20] : memref<9x4x4xf32, #tpu.memory_space<vmem>>, vector<1x4x4xf32>
    %38 = vector.shape_cast %37 : vector<1x4x4xf32> to vector<4x4xf32>
    %cst_21 = arith.constant dense<0.000000e+00> : vector<4x256xf32>
    %39 = tpu.matmul %38, %36, %cst_21 {dimension_numbers = #tpu.dot_dimension_numbers<[1], [0], [0], [1], [0, 0, 1, 1], [], []>} : vector<4x4xf32>, vector<4x256xf32>, vector<4x256xf32> -> vector<4x256xf32>
    %c1 = arith.constant 1 : index
    %c0_22 = arith.constant 0 : index
    %c0_23 = arith.constant 0 : index
    %40 = vector.load %arg5[%c1, %c0_22, %c0_23] : memref<9x4x4xf32, #tpu.memory_space<vmem>>, vector<1x4x4xf32>
    %41 = vector.shape_cast %40 : vector<1x4x4xf32> to vector<4x4xf32>
    %cst_24 = arith.constant dense<0.000000e+00> : vector<4x256xf32>
    %42 = tpu.matmul %41, %36, %cst_24 {dimension_numbers = #tpu.dot_dimension_numbers<[1], [0], [0], [1], [0, 0, 1, 1], [], []>} : vector<4x4xf32>, vector<4x256xf32>, vector<4x256xf32> -> vector<4x256xf32>
    %c2 = arith.constant 2 : index
    %c0_25 = arith.constant 0 : index
    %c0_26 = arith.constant 0 : index
    %43 = vector.load %arg5[%c2, %c0_25, %c0_26] : memref<9x4x4xf32, #tpu.memory_space<vmem>>, vector<1x4x4xf32>
    %44 = vector.shape_cast %43 : vector<1x4x4xf32> to vector<4x4xf32>
    %cst_27 = arith.constant dense<0.000000e+00> : vector<4x256xf32>
    %45 = tpu.matmul %44, %36, %cst_27 {dimension_numbers = #tpu.dot_dimension_numbers<[1], [0], [0], [1], [0, 0, 1, 1], [], []>} : vector<4x4xf32>, vector<4x256xf32>, vector<4x256xf32> -> vector<4x256xf32>
    %c3 = arith.constant 3 : index
    %c0_28 = arith.constant 0 : index
    %c0_29 = arith.constant 0 : index
    %46 = vector.load %arg5[%c3, %c0_28, %c0_29] : memref<9x4x4xf32, #tpu.memory_space<vmem>>, vector<1x4x4xf32>
    %47 = vector.shape_cast %46 : vector<1x4x4xf32> to vector<4x4xf32>
    %cst_30 = arith.constant dense<0.000000e+00> : vector<4x256xf32>
    %48 = tpu.matmul %47, %36, %cst_30 {dimension_numbers = #tpu.dot_dimension_numbers<[1], [0], [0], [1], [0, 0, 1, 1], [], []>} : vector<4x4xf32>, vector<4x256xf32>, vector<4x256xf32> -> vector<4x256xf32>
    %c4 = arith.constant 4 : index
    %c0_31 = arith.constant 0 : index
    %c0_32 = arith.constant 0 : index
    %49 = vector.load %arg5[%c4, %c0_31, %c0_32] : memref<9x4x4xf32, #tpu.memory_space<vmem>>, vector<1x4x4xf32>
    %50 = vector.shape_cast %49 : vector<1x4x4xf32> to vector<4x4xf32>
    %cst_33 = arith.constant dense<0.000000e+00> : vector<4x256xf32>
    %51 = tpu.matmul %50, %36, %cst_33 {dimension_numbers = #tpu.dot_dimension_numbers<[1], [0], [0], [1], [0, 0, 1, 1], [], []>} : vector<4x4xf32>, vector<4x256xf32>, vector<4x256xf32> -> vector<4x256xf32>
    %c5 = arith.constant 5 : index
    %c0_34 = arith.constant 0 : index
    %c0_35 = arith.constant 0 : index
    %52 = vector.load %arg5[%c5, %c0_34, %c0_35] : memref<9x4x4xf32, #tpu.memory_space<vmem>>, vector<1x4x4xf32>
    %53 = vector.shape_cast %52 : vector<1x4x4xf32> to vector<4x4xf32>
    %cst_36 = arith.constant dense<0.000000e+00> : vector<4x256xf32>
    %54 = tpu.matmul %53, %36, %cst_36 {dimension_numbers = #tpu.dot_dimension_numbers<[1], [0], [0], [1], [0, 0, 1, 1], [], []>} : vector<4x4xf32>, vector<4x256xf32>, vector<4x256xf32> -> vector<4x256xf32>
    %c6 = arith.constant 6 : index
    %c0_37 = arith.constant 0 : index
    %c0_38 = arith.constant 0 : index
    %55 = vector.load %arg5[%c6, %c0_37, %c0_38] : memref<9x4x4xf32, #tpu.memory_space<vmem>>, vector<1x4x4xf32>
    %56 = vector.shape_cast %55 : vector<1x4x4xf32> to vector<4x4xf32>
    %cst_39 = arith.constant dense<0.000000e+00> : vector<4x256xf32>
    %57 = tpu.matmul %56, %36, %cst_39 {dimension_numbers = #tpu.dot_dimension_numbers<[1], [0], [0], [1], [0, 0, 1, 1], [], []>} : vector<4x4xf32>, vector<4x256xf32>, vector<4x256xf32> -> vector<4x256xf32>
    %c7 = arith.constant 7 : index
    %c0_40 = arith.constant 0 : index
    %c0_41 = arith.constant 0 : index
    %58 = vector.load %arg5[%c7, %c0_40, %c0_41] : memref<9x4x4xf32, #tpu.memory_space<vmem>>, vector<1x4x4xf32>
    %59 = vector.shape_cast %58 : vector<1x4x4xf32> to vector<4x4xf32>
    %cst_42 = arith.constant dense<0.000000e+00> : vector<4x256xf32>
    %60 = tpu.matmul %59, %36, %cst_42 {dimension_numbers = #tpu.dot_dimension_numbers<[1], [0], [0], [1], [0, 0, 1, 1], [], []>} : vector<4x4xf32>, vector<4x256xf32>, vector<4x256xf32> -> vector<4x256xf32>
    %c8 = arith.constant 8 : index
    %c0_43 = arith.constant 0 : index
    %c0_44 = arith.constant 0 : index
    %61 = vector.load %arg5[%c8, %c0_43, %c0_44] : memref<9x4x4xf32, #tpu.memory_space<vmem>>, vector<1x4x4xf32>
    %62 = vector.shape_cast %61 : vector<1x4x4xf32> to vector<4x4xf32>
    %cst_45 = arith.constant dense<0.000000e+00> : vector<4x256xf32>
    %63 = tpu.matmul %62, %36, %cst_45 {dimension_numbers = #tpu.dot_dimension_numbers<[1], [0], [0], [1], [0, 0, 1, 1], [], []>} : vector<4x4xf32>, vector<4x256xf32>, vector<4x256xf32> -> vector<4x256xf32>
    %64 = tpu.concatenate %39, %42, %45, %48, %51, %54, %57, %60, %63 in 1 : vector<4x256xf32>, vector<4x256xf32>, vector<4x256xf32>, vector<4x256xf32>, vector<4x256xf32>, vector<4x256xf32>, vector<4x256xf32>, vector<4x256xf32>, vector<4x256xf32> -> vector<4x2304xf32>
    %c0_46 = arith.constant 0 : index
    %c0_47 = arith.constant 0 : index
    %65 = vector.load %arg2[%c0_46, %c0_47] : memref<2304x64xf32, #tpu.memory_space<vmem>>, vector<2304x64xf32>
    %cst_48 = arith.constant dense<0.000000e+00> : vector<4x64xf32>
    %66 = tpu.matmul %64, %65, %cst_48 {dimension_numbers = #tpu.dot_dimension_numbers<[1], [0], [0], [1], [0, 0, 1, 1], [], []>} : vector<4x2304xf32>, vector<2304x64xf32>, vector<4x64xf32> -> vector<4x64xf32>
    %c0_49 = arith.constant 0 : index
    %c0_50 = arith.constant 0 : index
    %67 = vector.load %arg6[%c0_49, %c0_50] : memref<4x1xf32, #tpu.memory_space<vmem>>, vector<4x1xf32>
    %68 = vector.broadcast %67 : vector<4x1xf32> to vector<4x64xf32>
    %69 = arith.addf %66, %68 : vector<4x64xf32>
    %c0_51 = arith.constant 0 : index
    %c0_52 = arith.constant 0 : index
    %70 = vector.load %arg12[%c0_51, %c0_52] : memref<4x1xf32, #tpu.memory_space<vmem>>, vector<4x1xf32>
    %c0_53 = arith.constant 0 : index
    %c0_54 = arith.constant 0 : index
    %71 = vector.load %arg13[%c0_53, %c0_54] : memref<4x1xf32, #tpu.memory_space<vmem>>, vector<4x1xf32>
    %cst_55 = arith.constant dense<0.000000e+00> : vector<4xf32>
    %72 = vector.multi_reduction <add>, %69, %cst_55 [1] : vector<4x64xf32> to vector<4xf32>
    %73 = vector.shape_cast %72 : vector<4xf32> to vector<4x1xf32>
    %cst_56 = arith.constant 6.400000e+01 : f32
    %74 = vector.broadcast %cst_56 : f32 to vector<4x1xf32>
    %75 = arith.divf %73, %74 : vector<4x1xf32>
    %76 = vector.broadcast %75 : vector<4x1xf32> to vector<4x64xf32>
    %77 = arith.subf %69, %76 : vector<4x64xf32>
    %78 = vector.broadcast %75 : vector<4x1xf32> to vector<4x64xf32>
    %79 = arith.subf %69, %78 : vector<4x64xf32>
    %80 = arith.mulf %77, %79 : vector<4x64xf32>
    %cst_57 = arith.constant dense<0.000000e+00> : vector<4xf32>
    %81 = vector.multi_reduction <add>, %80, %cst_57 [1] : vector<4x64xf32> to vector<4xf32>
    %82 = vector.shape_cast %81 : vector<4xf32> to vector<4x1xf32>
    %cst_58 = arith.constant 6.400000e+01 : f32
    %83 = vector.broadcast %cst_58 : f32 to vector<4x1xf32>
    %84 = arith.divf %82, %83 : vector<4x1xf32>
    %85 = vector.broadcast %75 : vector<4x1xf32> to vector<4x64xf32>
    %86 = arith.subf %69, %85 : vector<4x64xf32>
    %cst_59 = arith.constant 9.99999974E-6 : f32
    %87 = vector.broadcast %cst_59 : f32 to vector<4x1xf32>
    %88 = arith.addf %84, %87 : vector<4x1xf32>
    %89 = math.rsqrt %88 : vector<4x1xf32>
    %90 = vector.broadcast %89 : vector<4x1xf32> to vector<4x64xf32>
    %91 = arith.mulf %86, %90 : vector<4x64xf32>
    %92 = vector.broadcast %70 : vector<4x1xf32> to vector<4x64xf32>
    %93 = arith.mulf %91, %92 : vector<4x64xf32>
    %94 = vector.broadcast %71 : vector<4x1xf32> to vector<4x64xf32>
    %95 = arith.addf %93, %94 : vector<4x64xf32>
    %cst_60 = arith.constant 0.000000e+00 : f32
    %96 = vector.broadcast %cst_60 : f32 to vector<4x64xf32>
    %97 = arith.cmpf ogt, %95, %96 : vector<4x64xf32>
    %cst_61 = arith.constant 2.000000e-01 : f32
    %98 = vector.broadcast %cst_61 : f32 to vector<4x64xf32>
    %99 = arith.mulf %98, %95 : vector<4x64xf32>
    %100 = arith.select %97, %95, %99 : vector<4x64xi1>, vector<4x64xf32>
    %c0_62 = arith.constant 0 : index
    %c0_63 = arith.constant 0 : index
    %c0_64 = arith.constant 0 : index
    %101 = vector.load %arg7[%c0_62, %c0_63, %c0_64] : memref<9x8x4xf32, #tpu.memory_space<vmem>>, vector<1x8x4xf32>
    %102 = vector.shape_cast %101 : vector<1x8x4xf32> to vector<8x4xf32>
    %cst_65 = arith.constant dense<0.000000e+00> : vector<8x64xf32>
    %103 = tpu.matmul %102, %100, %cst_65 {dimension_numbers = #tpu.dot_dimension_numbers<[1], [0], [0], [1], [0, 0, 1, 1], [], []>} : vector<8x4xf32>, vector<4x64xf32>, vector<8x64xf32> -> vector<8x64xf32>
    %c1_66 = arith.constant 1 : index
    %c0_67 = arith.constant 0 : index
    %c0_68 = arith.constant 0 : index
    %104 = vector.load %arg7[%c1_66, %c0_67, %c0_68] : memref<9x8x4xf32, #tpu.memory_space<vmem>>, vector<1x8x4xf32>
    %105 = vector.shape_cast %104 : vector<1x8x4xf32> to vector<8x4xf32>
    %cst_69 = arith.constant dense<0.000000e+00> : vector<8x64xf32>
    %106 = tpu.matmul %105, %100, %cst_69 {dimension_numbers = #tpu.dot_dimension_numbers<[1], [0], [0], [1], [0, 0, 1, 1], [], []>} : vector<8x4xf32>, vector<4x64xf32>, vector<8x64xf32> -> vector<8x64xf32>
    %c2_70 = arith.constant 2 : index
    %c0_71 = arith.constant 0 : index
    %c0_72 = arith.constant 0 : index
    %107 = vector.load %arg7[%c2_70, %c0_71, %c0_72] : memref<9x8x4xf32, #tpu.memory_space<vmem>>, vector<1x8x4xf32>
    %108 = vector.shape_cast %107 : vector<1x8x4xf32> to vector<8x4xf32>
    %cst_73 = arith.constant dense<0.000000e+00> : vector<8x64xf32>
    %109 = tpu.matmul %108, %100, %cst_73 {dimension_numbers = #tpu.dot_dimension_numbers<[1], [0], [0], [1], [0, 0, 1, 1], [], []>} : vector<8x4xf32>, vector<4x64xf32>, vector<8x64xf32> -> vector<8x64xf32>
    %c3_74 = arith.constant 3 : index
    %c0_75 = arith.constant 0 : index
    %c0_76 = arith.constant 0 : index
    %110 = vector.load %arg7[%c3_74, %c0_75, %c0_76] : memref<9x8x4xf32, #tpu.memory_space<vmem>>, vector<1x8x4xf32>
    %111 = vector.shape_cast %110 : vector<1x8x4xf32> to vector<8x4xf32>
    %cst_77 = arith.constant dense<0.000000e+00> : vector<8x64xf32>
    %112 = tpu.matmul %111, %100, %cst_77 {dimension_numbers = #tpu.dot_dimension_numbers<[1], [0], [0], [1], [0, 0, 1, 1], [], []>} : vector<8x4xf32>, vector<4x64xf32>, vector<8x64xf32> -> vector<8x64xf32>
    %c4_78 = arith.constant 4 : index
    %c0_79 = arith.constant 0 : index
    %c0_80 = arith.constant 0 : index
    %113 = vector.load %arg7[%c4_78, %c0_79, %c0_80] : memref<9x8x4xf32, #tpu.memory_space<vmem>>, vector<1x8x4xf32>
    %114 = vector.shape_cast %113 : vector<1x8x4xf32> to vector<8x4xf32>
    %cst_81 = arith.constant dense<0.000000e+00> : vector<8x64xf32>
    %115 = tpu.matmul %114, %100, %cst_81 {dimension_numbers = #tpu.dot_dimension_numbers<[1], [0], [0], [1], [0, 0, 1, 1], [], []>} : vector<8x4xf32>, vector<4x64xf32>, vector<8x64xf32> -> vector<8x64xf32>
    %c5_82 = arith.constant 5 : index
    %c0_83 = arith.constant 0 : index
    %c0_84 = arith.constant 0 : index
    %116 = vector.load %arg7[%c5_82, %c0_83, %c0_84] : memref<9x8x4xf32, #tpu.memory_space<vmem>>, vector<1x8x4xf32>
    %117 = vector.shape_cast %116 : vector<1x8x4xf32> to vector<8x4xf32>
    %cst_85 = arith.constant dense<0.000000e+00> : vector<8x64xf32>
    %118 = tpu.matmul %117, %100, %cst_85 {dimension_numbers = #tpu.dot_dimension_numbers<[1], [0], [0], [1], [0, 0, 1, 1], [], []>} : vector<8x4xf32>, vector<4x64xf32>, vector<8x64xf32> -> vector<8x64xf32>
    %c6_86 = arith.constant 6 : index
    %c0_87 = arith.constant 0 : index
    %c0_88 = arith.constant 0 : index
    %119 = vector.load %arg7[%c6_86, %c0_87, %c0_88] : memref<9x8x4xf32, #tpu.memory_space<vmem>>, vector<1x8x4xf32>
    %120 = vector.shape_cast %119 : vector<1x8x4xf32> to vector<8x4xf32>
    %cst_89 = arith.constant dense<0.000000e+00> : vector<8x64xf32>
    %121 = tpu.matmul %120, %100, %cst_89 {dimension_numbers = #tpu.dot_dimension_numbers<[1], [0], [0], [1], [0, 0, 1, 1], [], []>} : vector<8x4xf32>, vector<4x64xf32>, vector<8x64xf32> -> vector<8x64xf32>
    %c7_90 = arith.constant 7 : index
    %c0_91 = arith.constant 0 : index
    %c0_92 = arith.constant 0 : index
    %122 = vector.load %arg7[%c7_90, %c0_91, %c0_92] : memref<9x8x4xf32, #tpu.memory_space<vmem>>, vector<1x8x4xf32>
    %123 = vector.shape_cast %122 : vector<1x8x4xf32> to vector<8x4xf32>
    %cst_93 = arith.constant dense<0.000000e+00> : vector<8x64xf32>
    %124 = tpu.matmul %123, %100, %cst_93 {dimension_numbers = #tpu.dot_dimension_numbers<[1], [0], [0], [1], [0, 0, 1, 1], [], []>} : vector<8x4xf32>, vector<4x64xf32>, vector<8x64xf32> -> vector<8x64xf32>
    %c8_94 = arith.constant 8 : index
    %c0_95 = arith.constant 0 : index
    %c0_96 = arith.constant 0 : index
    %125 = vector.load %arg7[%c8_94, %c0_95, %c0_96] : memref<9x8x4xf32, #tpu.memory_space<vmem>>, vector<1x8x4xf32>
    %126 = vector.shape_cast %125 : vector<1x8x4xf32> to vector<8x4xf32>
    %cst_97 = arith.constant dense<0.000000e+00> : vector<8x64xf32>
    %127 = tpu.matmul %126, %100, %cst_97 {dimension_numbers = #tpu.dot_dimension_numbers<[1], [0], [0], [1], [0, 0, 1, 1], [], []>} : vector<8x4xf32>, vector<4x64xf32>, vector<8x64xf32> -> vector<8x64xf32>
    %128 = tpu.concatenate %103, %106, %109, %112, %115, %118, %121, %124, %127 in 1 : vector<8x64xf32>, vector<8x64xf32>, vector<8x64xf32>, vector<8x64xf32>, vector<8x64xf32>, vector<8x64xf32>, vector<8x64xf32>, vector<8x64xf32>, vector<8x64xf32> -> vector<8x576xf32>
    %c0_98 = arith.constant 0 : index
    %c0_99 = arith.constant 0 : index
    %129 = vector.load %arg3[%c0_98, %c0_99] : memref<576x64xf32, #tpu.memory_space<vmem>>, vector<576x64xf32>
    %cst_100 = arith.constant dense<0.000000e+00> : vector<8x64xf32>
    %130 = tpu.matmul %128, %129, %cst_100 {dimension_numbers = #tpu.dot_dimension_numbers<[1], [0], [0], [1], [0, 0, 1, 1], [], []>} : vector<8x576xf32>, vector<576x64xf32>, vector<8x64xf32> -> vector<8x64xf32>
    %c0_101 = arith.constant 0 : index
    %c0_102 = arith.constant 0 : index
    %131 = vector.load %arg8[%c0_101, %c0_102] : memref<8x1xf32, #tpu.memory_space<vmem>>, vector<8x1xf32>
    %132 = vector.broadcast %131 : vector<8x1xf32> to vector<8x64xf32>
    %133 = arith.addf %130, %132 : vector<8x64xf32>
    %134 = arith.addf %5, %133 : vector<8x64xf32>
    %cst_103 = arith.constant 0.707106769 : f32
    %135 = vector.broadcast %cst_103 : f32 to vector<8x64xf32>
    %136 = arith.mulf %134, %135 : vector<8x64xf32>
    %c0_104 = arith.constant 0 : index
    %c0_105 = arith.constant 0 : index
    %c0_106 = arith.constant 0 : index
    %137 = vector.load %arg14[%c0_104, %c0_105, %c0_106] : memref<1x8x64xf32, #tpu.memory_space<vmem>>, vector<1x8x64xf32>
    %138 = vector.shape_cast %137 : vector<1x8x64xf32> to vector<8x64xf32>
    %139 = vector.shape_cast %136 : vector<8x64xf32> to vector<1x8x64xf32>
    tpu.vector_store %arg14[%c0_104, %c0_105, %c0_106], %139 {strides = array<i32>} : memref<1x8x64xf32, #tpu.memory_space<vmem>>, vector<1x8x64xf32>,
    return
  }
  func.func @transform_0(%arg0: i32) -> (i32, i32, i32) {
    %c0_i32 = arith.constant 0 : i32
    %c0_i32_0 = arith.constant 0 : i32
    %c0_i32_1 = arith.constant 0 : i32
    return %arg0, %c0_i32, %c0_i32_0 : i32, i32, i32
  }
  func.func @transform_1(%arg0: i32) -> (i32, i32) {
    %c0_i32 = arith.constant 0 : i32
    %c0_i32_0 = arith.constant 0 : i32
    %c0_i32_1 = arith.constant 0 : i32
    return %c0_i32, %c0_i32_0 : i32, i32
  }
  func.func @transform_2(%arg0: i32) -> (i32, i32) {
    %c0_i32 = arith.constant 0 : i32
    %c0_i32_0 = arith.constant 0 : i32
    %c0_i32_1 = arith.constant 0 : i32
    return %c0_i32, %c0_i32_0 : i32, i32
  }
  func.func @transform_3(%arg0: i32) -> (i32, i32) {
    %c0_i32 = arith.constant 0 : i32
    %c0_i32_0 = arith.constant 0 : i32
    %c0_i32_1 = arith.constant 0 : i32
    return %c0_i32, %c0_i32_0 : i32, i32
  }
  func.func @transform_4(%arg0: i32) -> (i32, i32, i32) {
    %c0_i32 = arith.constant 0 : i32
    %c0_i32_0 = arith.constant 0 : i32
    %c0_i32_1 = arith.constant 0 : i32
    %c0_i32_2 = arith.constant 0 : i32
    return %c0_i32, %c0_i32_0, %c0_i32_1 : i32, i32, i32
  }
  func.func @transform_5(%arg0: i32) -> (i32, i32) {
    %c0_i32 = arith.constant 0 : i32
    %c0_i32_0 = arith.constant 0 : i32
    %c0_i32_1 = arith.constant 0 : i32
    return %c0_i32, %c0_i32_0 : i32, i32
  }
  func.func @transform_6(%arg0: i32) -> (i32, i32, i32) {
    %c0_i32 = arith.constant 0 : i32
    %c0_i32_0 = arith.constant 0 : i32
    %c0_i32_1 = arith.constant 0 : i32
    %c0_i32_2 = arith.constant 0 : i32
    return %c0_i32, %c0_i32_0, %c0_i32_1 : i32, i32, i32
  }
  func.func @transform_7(%arg0: i32) -> (i32, i32) {
    %c0_i32 = arith.constant 0 : i32
    %c0_i32_0 = arith.constant 0 : i32
    %c0_i32_1 = arith.constant 0 : i32
    return %c0_i32, %c0_i32_0 : i32, i32
  }
  func.func @transform_8(%arg0: i32) -> (i32, i32) {
    %c0_i32 = arith.constant 0 : i32
    %c0_i32_0 = arith.constant 0 : i32
    %c0_i32_1 = arith.constant 0 : i32
    return %c0_i32, %c0_i32_0 : i32, i32
  }
  func.func @transform_9(%arg0: i32) -> (i32, i32) {
    %c0_i32 = arith.constant 0 : i32
    %c0_i32_0 = arith.constant 0 : i32
    %c0_i32_1 = arith.constant 0 : i32
    return %c0_i32, %c0_i32_0 : i32, i32
  }
  func.func @transform_10(%arg0: i32) -> (i32, i32) {
    %c0_i32 = arith.constant 0 : i32
    %c0_i32_0 = arith.constant 0 : i32
    %c0_i32_1 = arith.constant 0 : i32
    return %c0_i32, %c0_i32_0 : i32, i32
  }
  func.func @transform_11(%arg0: i32) -> (i32, i32) {
    %c0_i32 = arith.constant 0 : i32
    %c0_i32_0 = arith.constant 0 : i32
    %c0_i32_1 = arith.constant 0 : i32
    return %c0_i32, %c0_i32_0 : i32, i32
  }
  func.func @transform_12(%arg0: i32) -> (i32, i32) {
    %c0_i32 = arith.constant 0 : i32
    %c0_i32_0 = arith.constant 0 : i32
    %c0_i32_1 = arith.constant 0 : i32
    return %c0_i32, %c0_i32_0 : i32, i32
  }
  func.func @transform_13(%arg0: i32) -> (i32, i32, i32) {
    %c0_i32 = arith.constant 0 : i32
    %c0_i32_0 = arith.constant 0 : i32
    %c0_i32_1 = arith.constant 0 : i32
    return %arg0, %c0_i32, %c0_i32_0 : i32, i32, i32
  }
}

</mosaic_0001>

<llo_original>
// kernel: tpu_custom_call.1
$region0: #{tpu_custom_call.1}
  #allocation0 [shape = 'u32[]', space=smem, size = 0x4, offset = 0x4, fixed_abs, tag = 'smem constant byte address 0x4 - core index']
  #allocation1 [shape = 'u32[144,128]{1,0:T(1,128)}', space=vmem, size = 0x12000, scoped, tag = 'internal scratch']
  %s0 = inlined_call_operand.vmem [shape: f32[2,4,256], index: 0, kind: input, shape index: {}]
  %s1 = inlined_call_operand.vmem [shape: f32[2304,64], index: 1, kind: input, shape index: {}]
  %s2 = inlined_call_operand.vmem [shape: f32[576,64], index: 2, kind: input, shape index: {}]
  %s3 = inlined_call_operand.vmem [shape: f32[256,64], index: 3, kind: input, shape index: {}]
  %s4 = inlined_call_operand.vmem [shape: f32[9,4,4], index: 4, kind: input, shape index: {}]
  %s5 = inlined_call_operand.vmem [shape: f32[4,1], index: 5, kind: input, shape index: {}]
  %s6 = inlined_call_operand.vmem [shape: f32[9,8,4], index: 6, kind: input, shape index: {}]
  %s7 = inlined_call_operand.vmem [shape: f32[8,1], index: 7, kind: input, shape index: {}]
  %s8 = inlined_call_operand.vmem [shape: f32[8,4], index: 8, kind: input, shape index: {}]
  %s9 = inlined_call_operand.vmem [shape: f32[4,1], index: 9, kind: input, shape index: {}]
  %s10 = inlined_call_operand.vmem [shape: f32[4,1], index: 10, kind: input, shape index: {}]
  %s11 = inlined_call_operand.vmem [shape: f32[4,1], index: 11, kind: input, shape index: {}]
  %s12 = inlined_call_operand.vmem [shape: f32[4,1], index: 12, kind: input, shape index: {}]
  %s13 = inlined_call_operand.hbm [shape: f32[2,8,64], index: 13, kind: output, shape index: {}]
  %s14 = sld [smem:[#allocation0]]
  $region85: #{tpu_custom_call.1} parent=0
    _
  %s16 = ssub.s32 1, %s14
  %s17 = scalar_select 0, %s16, %s14
  $region1: #{tpu_custom_call.1} parent=0
    #allocation2 [shape = 'u8[8192]{0}', space=vmem, size = 0x2000, scoped, tag = 'output window, operand 0']
    #allocation3 [shape = 's32[2]{0}', space=sflag, size = 0x8, scoped, tag = 'scoped memory for tpu_custom_call.1']
    %18 = vsyncpa [#allocation3], 0
    %s19 = scalar_lea.sflag [#allocation3], 1
    %20 = vsyncpa %s19, 0
    loop: start=0, step=1, limit=4
    $region2: #{tpu_custom_call.1} parent=1 // loop_pre_header
      _
    $region3: #{tpu_custom_call.1} parent=1 // loop_header
      %s22 = sphi 0, %s26
      %p23 = scmp.ge.s32.totalorder %s22, 4
      %s32 = sphi 0, %s34
      %s35 = sphi 0, %s32
      %s36 = sphi 0, %s35
      %s52 = sphi 0, %s36
      %s56 = sphi 0, %s56
      %s58 = sphi 0, %s56
      %s59 = sphi 0, %s58
      %s73 = sphi 0, %s59
      %s77 = sphi 0, %s77
      %s79 = sphi 0, %s77
      %s80 = sphi 0, %s79
      %s94 = sphi 0, %s80
      %s98 = sphi 0, %s98
      %s100 = sphi 0, %s98
      %s101 = sphi 0, %s100
      %s115 = sphi 0, %s101
      %s119 = sphi 0, %s119
      %s121 = sphi 0, %s119
      %s122 = sphi 0, %s121
      %s136 = sphi 0, %s122
      %s140 = sphi 0, %s140
      %s142 = sphi 0, %s140
      %s143 = sphi 0, %s142
      %s157 = sphi 0, %s143
      %s161 = sphi 0, %s161
      %s163 = sphi 0, %s161
      %s164 = sphi 0, %s163
      %s178 = sphi 0, %s164
      %s182 = sphi 0, %s182
      %s184 = sphi 0, %s182
      %s185 = sphi 0, %s184
      %s199 = sphi 0, %s185
      %s203 = sphi 0, %s203
      %s205 = sphi 0, %s203
      %s206 = sphi 0, %s205
      %s220 = sphi 0, %s206
      %s224 = sphi 0, %s224
      %s226 = sphi 0, %s224
      %s227 = sphi 0, %s226
      %s241 = sphi 0, %s227
      %s245 = sphi 0, %s245
      %s247 = sphi 0, %s245
      %s248 = sphi 0, %s247
      %s262 = sphi 0, %s248
      %s266 = sphi 0, %s266
      %s268 = sphi 0, %s266
      %s269 = sphi 0, %s268
      %s283 = sphi 0, %s269
      %s287 = sphi 0, %s287
      %s289 = sphi 0, %s287
      %s290 = sphi 0, %s289
      %s304 = sphi 0, %s290
      %s310 = sphi 0, %s312
      %s313 = sphi 0, %s310
      %s314 = sphi 0, %s313
      %s330 = sphi 0, %s314
    $region4: #{tpu_custom_call.1} parent=1 // loop_header_branch
      %25 = sbr.rel (%p23) target = $region8
    $region5: #{tpu_custom_call.1} parent=1 // loop_body
      %s27 = ssub.s32 %s22, 1
      %s28 = ssub.s32 %s22, 2
      %s29 = sadd.s32 %s22, 1
      %s30 = ssub.s32 %s22, %s29
      %p31 = scmp.eq.s32.totalorder %s30, 0
      %s33 = sadd.s32 %s32, 1
      %s34 = scalar_select %p31, %s32, %s33
      %p37 = pneg %p31
      %p38 = scmp.eq.s32.totalorder %s22, 1
      %p39 = por %p37, %p38
      %p40 = scmp.ne.s32.totalorder %s32, %s35
      %p41 = scmp.eq.s32.totalorder %s22, 0
      %p42 = por %p40, %p41
      %p43 = scmp.ne.s32.totalorder %s32, %s35
      %p44 = scmp.eq.s32.totalorder %s27, 1
      %p45 = por %p43, %p44
      %p46 = scmp.ne.s32.totalorder %s35, %s36
      %p47 = scmp.eq.s32.totalorder %s27, 0
      %p48 = por %p46, %p47
      %p49 = scmp.ne.s32.totalorder %s35, %s36
      %p50 = scmp.eq.s32.totalorder %s28, 1
      %p51 = por %p49, %p50
      %p53 = scmp.ne.s32.totalorder %s36, %s52
      %p54 = scmp.eq.s32.totalorder %s28, 0
      %p55 = por %p53, %p54
      %s57 = sadd.s32 %s56, 1
      %p60 = scmp.eq.s32.totalorder %s22, 1
      %p61 = scmp.ne.s32.totalorder %s56, %s58
      %p62 = scmp.eq.s32.totalorder %s22, 0
      %p63 = por %p61, %p62
      %p64 = scmp.ne.s32.totalorder %s56, %s58
      %p65 = scmp.eq.s32.totalorder %s27, 1
      %p66 = por %p64, %p65
      %p67 = scmp.ne.s32.totalorder %s58, %s59
      %p68 = scmp.eq.s32.totalorder %s27, 0
      %p69 = por %p67, %p68
      %p70 = scmp.ne.s32.totalorder %s58, %s59
      %p71 = scmp.eq.s32.totalorder %s28, 1
      %p72 = por %p70, %p71
      %p74 = scmp.ne.s32.totalorder %s59, %s73
      %p75 = scmp.eq.s32.totalorder %s28, 0
      %p76 = por %p74, %p75
      %s78 = sadd.s32 %s77, 1
      %p81 = scmp.eq.s32.totalorder %s22, 1
      %p82 = scmp.ne.s32.totalorder %s77, %s79
      %p83 = scmp.eq.s32.totalorder %s22, 0
      %p84 = por %p82, %p83
      %p85 = scmp.ne.s32.totalorder %s77, %s79
      %p86 = scmp.eq.s32.totalorder %s27, 1
      %p87 = por %p85, %p86
      %p88 = scmp.ne.s32.totalorder %s79, %s80
      %p89 = scmp.eq.s32.totalorder %s27, 0
      %p90 = por %p88, %p89
      %p91 = scmp.ne.s32.totalorder %s79, %s80
      %p92 = scmp.eq.s32.totalorder %s28, 1
      %p93 = por %p91, %p92
      %p95 = scmp.ne.s32.totalorder %s80, %s94
      %p96 = scmp.eq.s32.totalorder %s28, 0
      %p97 = por %p95, %p96
      %s99 = sadd.s32 %s98, 1
      %p102 = scmp.eq.s32.totalorder %s22, 1
      %p103 = scmp.ne.s32.totalorder %s98, %s100
      %p104 = scmp.eq.s32.totalorder %s22, 0
      %p105 = por %p103, %p104
      %p106 = scmp.ne.s32.totalorder %s98, %s100
      %p107 = scmp.eq.s32.totalorder %s27, 1
      %p108 = por %p106, %p107
      %p109 = scmp.ne.s32.totalorder %s100, %s101
      %p110 = scmp.eq.s32.totalorder %s27, 0
      %p111 = por %p109, %p110
      %p112 = scmp.ne.s32.totalorder %s100, %s101
      %p113 = scmp.eq.s32.totalorder %s28, 1
      %p114 = por %p112, %p113
      %p116 = scmp.ne.s32.totalorder %s101, %s115
      %p117 = scmp.eq.s32.totalorder %s28, 0
      %p118 = por %p116, %p117
      %s120 = sadd.s32 %s119, 1
      %p123 = scmp.eq.s32.totalorder %s22, 1
      %p124 = scmp.ne.s32.totalorder %s119, %s121
      %p125 = scmp.eq.s32.totalorder %s22, 0
      %p126 = por %p124, %p125
      %p127 = scmp.ne.s32.totalorder %s119, %s121
      %p128 = scmp.eq.s32.totalorder %s27, 1
      %p129 = por %p127, %p128
      %p130 = scmp.ne.s32.totalorder %s121, %s122
      %p131 = scmp.eq.s32.totalorder %s27, 0
      %p132 = por %p130, %p131
      %p133 = scmp.ne.s32.totalorder %s121, %s122
      %p134 = scmp.eq.s32.totalorder %s28, 1
      %p135 = por %p133, %p134
      %p137 = scmp.ne.s32.totalorder %s122, %s136
      %p138 = scmp.eq.s32.totalorder %s28, 0
      %p139 = por %p137, %p138
      %s141 = sadd.s32 %s140, 1
      %p144 = scmp.eq.s32.totalorder %s22, 1
      %p145 = scmp.ne.s32.totalorder %s140, %s142
      %p146 = scmp.eq.s32.totalorder %s22, 0
      %p147 = por %p145, %p146
      %p148 = scmp.ne.s32.totalorder %s140, %s142
      %p149 = scmp.eq.s32.totalorder %s27, 1
      %p150 = por %p148, %p149
      %p151 = scmp.ne.s32.totalorder %s142, %s143
      %p152 = scmp.eq.s32.totalorder %s27, 0
      %p153 = por %p151, %p152
      %p154 = scmp.ne.s32.totalorder %s142, %s143
      %p155 = scmp.eq.s32.totalorder %s28, 1
      %p156 = por %p154, %p155
      %p158 = scmp.ne.s32.totalorder %s143, %s157
      %p159 = scmp.eq.s32.totalorder %s28, 0
      %p160 = por %p158, %p159
      %s162 = sadd.s32 %s161, 1
      %p165 = scmp.eq.s32.totalorder %s22, 1
      %p166 = scmp.ne.s32.totalorder %s161, %s163
      %p167 = scmp.eq.s32.totalorder %s22, 0
      %p168 = por %p166, %p167
      %p169 = scmp.ne.s32.totalorder %s161, %s163
      %p170 = scmp.eq.s32.totalorder %s27, 1
      %p171 = por %p169, %p170
      %p172 = scmp.ne.s32.totalorder %s163, %s164
      %p173 = scmp.eq.s32.totalorder %s27, 0
      %p174 = por %p172, %p173
      %p175 = scmp.ne.s32.totalorder %s163, %s164
      %p176 = scmp.eq.s32.totalorder %s28, 1
      %p177 = por %p175, %p176
      %p179 = scmp.ne.s32.totalorder %s164, %s178
      %p180 = scmp.eq.s32.totalorder %s28, 0
      %p181 = por %p179, %p180
      %s183 = sadd.s32 %s182, 1
      %p186 = scmp.eq.s32.totalorder %s22, 1
      %p187 = scmp.ne.s32.totalorder %s182, %s184
      %p188 = scmp.eq.s32.totalorder %s22, 0
      %p189 = por %p187, %p188
      %p190 = scmp.ne.s32.totalorder %s182, %s184
      %p191 = scmp.eq.s32.totalorder %s27, 1
      %p192 = por %p190, %p191
      %p193 = scmp.ne.s32.totalorder %s184, %s185
      %p194 = scmp.eq.s32.totalorder %s27, 0
      %p195 = por %p193, %p194
      %p196 = scmp.ne.s32.totalorder %s184, %s185
      %p197 = scmp.eq.s32.totalorder %s28, 1
      %p198 = por %p196, %p197
      %p200 = scmp.ne.s32.totalorder %s185, %s199
      %p201 = scmp.eq.s32.totalorder %s28, 0
      %p202 = por %p200, %p201
      %s204 = sadd.s32 %s203, 1
      %p207 = scmp.eq.s32.totalorder %s22, 1
      %p208 = scmp.ne.s32.totalorder %s203, %s205
      %p209 = scmp.eq.s32.totalorder %s22, 0
      %p210 = por %p208, %p209
      %p211 = scmp.ne.s32.totalorder %s203, %s205
      %p212 = scmp.eq.s32.totalorder %s27, 1
      %p213 = por %p211, %p212
      %p214 = scmp.ne.s32.totalorder %s205, %s206
      %p215 = scmp.eq.s32.totalorder %s27, 0
      %p216 = por %p214, %p215
      %p217 = scmp.ne.s32.totalorder %s205, %s206
      %p218 = scmp.eq.s32.totalorder %s28, 1
      %p219 = por %p217, %p218
      %p221 = scmp.ne.s32.totalorder %s206, %s220
      %p222 = scmp.eq.s32.totalorder %s28, 0
      %p223 = por %p221, %p222
      %s225 = sadd.s32 %s224, 1
      %p228 = scmp.eq.s32.totalorder %s22, 1
      %p229 = scmp.ne.s32.totalorder %s224, %s226
      %p230 = scmp.eq.s32.totalorder %s22, 0
      %p231 = por %p229, %p230
      %p232 = scmp.ne.s32.totalorder %s224, %s226
      %p233 = scmp.eq.s32.totalorder %s27, 1
      %p234 = por %p232, %p233
      %p235 = scmp.ne.s32.totalorder %s226, %s227
      %p236 = scmp.eq.s32.totalorder %s27, 0
      %p237 = por %p235, %p236
      %p238 = scmp.ne.s32.totalorder %s226, %s227
      %p239 = scmp.eq.s32.totalorder %s28, 1
      %p240 = por %p238, %p239
      %p242 = scmp.ne.s32.totalorder %s227, %s241
      %p243 = scmp.eq.s32.totalorder %s28, 0
      %p244 = por %p242, %p243
      %s246 = sadd.s32 %s245, 1
      %p249 = scmp.eq.s32.totalorder %s22, 1
      %p250 = scmp.ne.s32.totalorder %s245, %s247
      %p251 = scmp.eq.s32.totalorder %s22, 0
      %p252 = por %p250, %p251
      %p253 = scmp.ne.s32.totalorder %s245, %s247
      %p254 = scmp.eq.s32.totalorder %s27, 1
      %p255 = por %p253, %p254
      %p256 = scmp.ne.s32.totalorder %s247, %s248
      %p257 = scmp.eq.s32.totalorder %s27, 0
      %p258 = por %p256, %p257
      %p259 = scmp.ne.s32.totalorder %s247, %s248
      %p260 = scmp.eq.s32.totalorder %s28, 1
      %p261 = por %p259, %p260
      %p263 = scmp.ne.s32.totalorder %s248, %s262
      %p264 = scmp.eq.s32.totalorder %s28, 0
      %p265 = por %p263, %p264
      %s267 = sadd.s32 %s266, 1
      %p270 = scmp.eq.s32.totalorder %s22, 1
      %p271 = scmp.ne.s32.totalorder %s266, %s268
      %p272 = scmp.eq.s32.totalorder %s22, 0
      %p273 = por %p271, %p272
      %p274 = scmp.ne.s32.totalorder %s266, %s268
      %p275 = scmp.eq.s32.totalorder %s27, 1
      %p276 = por %p274, %p275
      %p277 = scmp.ne.s32.totalorder %s268, %s269
      %p278 = scmp.eq.s32.totalorder %s27, 0
      %p279 = por %p277, %p278
      %p280 = scmp.ne.s32.totalorder %s268, %s269
      %p281 = scmp.eq.s32.totalorder %s28, 1
      %p282 = por %p280, %p281
      %p284 = scmp.ne.s32.totalorder %s269, %s283
      %p285 = scmp.eq.s32.totalorder %s28, 0
      %p286 = por %p284, %p285
      %s288 = sadd.s32 %s287, 1
      %p291 = scmp.eq.s32.totalorder %s22, 1
      %p292 = scmp.ne.s32.totalorder %s287, %s289
      %p293 = scmp.eq.s32.totalorder %s22, 0
      %p294 = por %p292, %p293
      %p295 = scmp.ne.s32.totalorder %s287, %s289
      %p296 = scmp.eq.s32.totalorder %s27, 1
      %p297 = por %p295, %p296
      %p298 = scmp.ne.s32.totalorder %s289, %s290
      %p299 = scmp.eq.s32.totalorder %s27, 0
      %p300 = por %p298, %p299
      %p301 = scmp.ne.s32.totalorder %s289, %s290
      %p302 = scmp.eq.s32.totalorder %s28, 1
      %p303 = por %p301, %p302
      %p305 = scmp.ne.s32.totalorder %s290, %s304
      %p306 = scmp.eq.s32.totalorder %s28, 0
      %p307 = por %p305, %p306
      %s308 = ssub.s32 %s22, %s29
      %p309 = scmp.eq.s32.totalorder %s308, 0
      %s311 = sadd.s32 %s310, 1
      %s312 = scalar_select %p309, %s310, %s311
      %p315 = pneg %p309
      %p316 = scmp.eq.s32.totalorder %s22, 1
      %p317 = por %p315, %p316
      %p318 = scmp.ne.s32.totalorder %s310, %s313
      %p319 = scmp.eq.s32.totalorder %s22, 0
      %p320 = por %p318, %p319
      %p321 = scmp.ne.s32.totalorder %s310, %s313
      %p322 = scmp.eq.s32.totalorder %s27, 1
      %p323 = por %p321, %p322
      %p324 = scmp.ne.s32.totalorder %s313, %s314
      %p325 = scmp.eq.s32.totalorder %s27, 0
      %p326 = por %p324, %p325
      %p327 = scmp.ne.s32.totalorder %s313, %s314
      %p328 = scmp.eq.s32.totalorder %s28, 1
      %p329 = por %p327, %p328
      %p331 = scmp.ne.s32.totalorder %s314, %s330
      %p332 = scmp.eq.s32.totalorder %s28, 0
      %p333 = por %p331, %p332
      %p334 = scmp.le.s32.totalorder 1, %s22
      %p335 = scmp.lt.s32.totalorder %s22, 3
      %p336 = pnand %p334, %p335
      %p337 = pneg %p336
      // Predicated region
      $region9: #{tpu_custom_call.1} parent=5 // pred_check
        _
      $region10: #{tpu_custom_call.1} parent=5 // pred_check_branch
        %339 = sbr.rel (%p336) target = $region12
      $region11: #{tpu_custom_call.1} parent=5 // pred_region
        %s340 = ssub.s32 %s22, 1
        // Predicated region
        $region13: #{tpu_custom_call.1} parent=11 // pred_check
          %p341 = pneg %p69
        $region14: #{tpu_custom_call.1} parent=11 // pred_check_branch
          %343 = sbr.rel (%p341) target = $region16
        $region15: #{tpu_custom_call.1} parent=11 // pred_region
          _
        $region16: #{tpu_custom_call.1} parent=11 // pred_fallthru
          _
        // Predicated region
        $region17: #{tpu_custom_call.1} parent=11 // pred_check
          %p344 = pneg %p90
        $region18: #{tpu_custom_call.1} parent=11 // pred_check_branch
          %346 = sbr.rel (%p344) target = $region20
        $region19: #{tpu_custom_call.1} parent=11 // pred_region
          _
        $region20: #{tpu_custom_call.1} parent=11 // pred_fallthru
          _
        // Predicated region
        $region21: #{tpu_custom_call.1} parent=11 // pred_check
          %p347 = pneg %p111
        $region22: #{tpu_custom_call.1} parent=11 // pred_check_branch
          %349 = sbr.rel (%p347) target = $region24
        $region23: #{tpu_custom_call.1} parent=11 // pred_region
          _
        $region24: #{tpu_custom_call.1} parent=11 // pred_fallthru
          _
        // Predicated region
        $region25: #{tpu_custom_call.1} parent=11 // pred_check
          %p350 = pneg %p132
        $region26: #{tpu_custom_call.1} parent=11 // pred_check_branch
          %352 = sbr.rel (%p350) target = $region28
        $region27: #{tpu_custom_call.1} parent=11 // pred_region
          _
        $region28: #{tpu_custom_call.1} parent=11 // pred_fallthru
          _
        // Predicated region
        $region29: #{tpu_custom_call.1} parent=11 // pred_check
          %p353 = pneg %p153
        $region30: #{tpu_custom_call.1} parent=11 // pred_check_branch
          %355 = sbr.rel (%p353) target = $region32
        $region31: #{tpu_custom_call.1} parent=11 // pred_region
          _
        $region32: #{tpu_custom_call.1} parent=11 // pred_fallthru
          _
        // Predicated region
        $region33: #{tpu_custom_call.1} parent=11 // pred_check
          %p356 = pneg %p174
        $region34: #{tpu_custom_call.1} parent=11 // pred_check_branch
          %358 = sbr.rel (%p356) target = $region36
        $region35: #{tpu_custom_call.1} parent=11 // pred_region
          _
        $region36: #{tpu_custom_call.1} parent=11 // pred_fallthru
          _
        // Predicated region
        $region37: #{tpu_custom_call.1} parent=11 // pred_check
          %p359 = pneg %p195
        $region38: #{tpu_custom_call.1} parent=11 // pred_check_branch
          %361 = sbr.rel (%p359) target = $region40
        $region39: #{tpu_custom_call.1} parent=11 // pred_region
          _
        $region40: #{tpu_custom_call.1} parent=11 // pred_fallthru
          _
        // Predicated region
        $region41: #{tpu_custom_call.1} parent=11 // pred_check
          %p362 = pneg %p216
        $region42: #{tpu_custom_call.1} parent=11 // pred_check_branch
          %364 = sbr.rel (%p362) target = $region44
        $region43: #{tpu_custom_call.1} parent=11 // pred_region
          _
        $region44: #{tpu_custom_call.1} parent=11 // pred_fallthru
          _
        // Predicated region
        $region45: #{tpu_custom_call.1} parent=11 // pred_check
          %p365 = pneg %p237
        $region46: #{tpu_custom_call.1} parent=11 // pred_check_branch
          %367 = sbr.rel (%p365) target = $region48
        $region47: #{tpu_custom_call.1} parent=11 // pred_region
          _
        $region48: #{tpu_custom_call.1} parent=11 // pred_fallthru
          _
        // Predicated region
        $region49: #{tpu_custom_call.1} parent=11 // pred_check
          %p368 = pneg %p258
        $region50: #{tpu_custom_call.1} parent=11 // pred_check_branch
          %370 = sbr.rel (%p368) target = $region52
        $region51: #{tpu_custom_call.1} parent=11 // pred_region
          _
        $region52: #{tpu_custom_call.1} parent=11 // pred_fallthru
          _
        // Predicated region
        $region53: #{tpu_custom_call.1} parent=11 // pred_check
          %p371 = pneg %p279
        $region54: #{tpu_custom_call.1} parent=11 // pred_check_branch
          %373 = sbr.rel (%p371) target = $region56
        $region55: #{tpu_custom_call.1} parent=11 // pred_region
          _
        $region56: #{tpu_custom_call.1} parent=11 // pred_fallthru
          _
        // Predicated region
        $region57: #{tpu_custom_call.1} parent=11 // pred_check
          %p374 = pneg %p300
        $region58: #{tpu_custom_call.1} parent=11 // pred_check_branch
          %376 = sbr.rel (%p374) target = $region60
        $region59: #{tpu_custom_call.1} parent=11 // pred_region
          _
        $region60: #{tpu_custom_call.1} parent=11 // pred_fallthru
          _
      $region12: #{tpu_custom_call.1} parent=5 // pred_fallthru
        _
      %p377 = scmp.lt.s32.totalorder %s22, 2
      // Predicated region
      $region61: #{tpu_custom_call.1} parent=5 // pred_check
        %p378 = pneg %p377
      $region62: #{tpu_custom_call.1} parent=5 // pred_check_branch
        %380 = sbr.rel (%p378) target = $region64
      $region63: #{tpu_custom_call.1} parent=5 // pred_region
        // Predicated region
        $region65: #{tpu_custom_call.1} parent=63 // pred_check
          %p381 = pneg %p42
        $region66: #{tpu_custom_call.1} parent=63 // pred_check_branch
          %383 = sbr.rel (%p381) target = $region68
        $region67: #{tpu_custom_call.1} parent=63 // pred_region
          %p384 = scmp.lt.s32.totalorder %s22, 1
          %s385 = scalar_select %p384, %s22, 1
          %s386 = smul.addr %s385, 2
          %s387 = smul.addr %s386, 4
          %s388 = scalar_lea.vmem %s0, %s387
        $region68: #{tpu_custom_call.1} parent=63 // pred_fallthru
          _
      $region64: #{tpu_custom_call.1} parent=5 // pred_fallthru
        _
      %p389 = scmp.le.s32.totalorder 1, %s22
      %p390 = scmp.lt.s32.totalorder %s22, 3
      %p391 = pnand %p389, %p390
      %p392 = pneg %p391
      // Predicated region
      $region69: #{tpu_custom_call.1} parent=5 // pred_check
        _
      $region70: #{tpu_custom_call.1} parent=5 // pred_check_branch
        %394 = sbr.rel (%p391) target = $region72
      $region71: #{tpu_custom_call.1} parent=5 // pred_region
        %s395 = ssub.s32 %s22, 1
        %p396 = scmp.lt.s32.totalorder %s27, 1
        %s397 = scalar_select %p396, %s27, 1
        %s398 = smul.addr %s397, 2
        %s399 = smul.addr %s398, 4
        %s400 = scalar_lea.vmem %s0, %s399
        %p401 = pneg %p48
        %p402 = pneg %p45
        %p403 = pneg %p69
        %p404 = pneg %p66
        %p405 = pneg %p90
        %p406 = pneg %p87
        %p407 = pneg %p111
        %p408 = pneg %p108
        %p409 = pneg %p132
        %p410 = pneg %p129
        %p411 = pneg %p153
        %p412 = pneg %p150
        %p413 = pneg %p174
        %p414 = pneg %p171
        %p415 = pneg %p195
        %p416 = pneg %p192
        %p417 = pneg %p216
        %p418 = pneg %p213
        %p419 = pneg %p237
        %p420 = pneg %p234
        %p421 = pneg %p258
        %p422 = pneg %p255
        %p423 = pneg %p279
        %p424 = pneg %p276
        %p425 = pneg %p300
        %p426 = pneg %p297
        %p427 = pneg %p326
        %p428 = pneg %p323
        %s429 = sand.u32 %s313, 1
        %s430 = scalar_lea.sflag [#allocation3], %s429
        %s431 = sand.u32 %s313, 1
        %s432 = smul.addr %s431, 8
        %s433 = scalar_lea.vmem [#allocation2], %s432
        %p434 = scmp.lt.s32.totalorder %s27, 1
        %s435 = scalar_select %p434, %s27, 1
        %s436 = smul.addr %s435, 2
        %s437 = smul.addr %s436, 4
        %s438 = scalar_lea.vmem %s0, %s437
        %v439 = vld [vmem:[%s438] sm:$0xff]
        %v440 = vld [vmem:[%s3] sm:$0xff]
        %v441 = vld [vmem:[%s3 + $0x8] sm:$0xff]
        %v442 = vld [vmem:[%s3 + $0x10] sm:$0xff]
        %v443 = vld [vmem:[%s3 + $0x18] sm:$0xff]
        %v444 = vld [vmem:[%s3 + $0x20] sm:$0xff]
        %v445 = vld [vmem:[%s3 + $0x28] sm:$0xff]
        %v446 = vld [vmem:[%s3 + $0x30] sm:$0xff]
        %v447 = vld [vmem:[%s3 + $0x38] sm:$0xff]
        %v448 = vld [vmem:[%s3 + $0x40] sm:$0xff]
        %v449 = vld [vmem:[%s3 + $0x48] sm:$0xff]
        %v450 = vld [vmem:[%s3 + $0x50] sm:$0xff]
        %v451 = vld [vmem:[%s3 + $0x58] sm:$0xff]
        %v452 = vld [vmem:[%s3 + $0x60] sm:$0xff]
        %v453 = vld [vmem:[%s3 + $0x68] sm:$0xff]
        %v454 = vld [vmem:[%s3 + $0x70] sm:$0xff]
        %v455 = vld [vmem:[%s3 + $0x78] sm:$0xff]
        %v456 = vld [vmem:[%s3 + $0x80] sm:$0xff]
        %v457 = vld [vmem:[%s3 + $0x88] sm:$0xff]
        %v458 = vld [vmem:[%s3 + $0x90] sm:$0xff]
        %v459 = vld [vmem:[%s3 + $0x98] sm:$0xff]
        %v460 = vld [vmem:[%s3 + $0xa0] sm:$0xff]
        %v461 = vld [vmem:[%s3 + $0xa8] sm:$0xff]
        %v462 = vld [vmem:[%s3 + $0xb0] sm:$0xff]
        %v463 = vld [vmem:[%s3 + $0xb8] sm:$0xff]
        %v464 = vld [vmem:[%s3 + $0xc0] sm:$0xff]
        %v465 = vld [vmem:[%s3 + $0xc8] sm:$0xff]
        %v466 = vld [vmem:[%s3 + $0xd0] sm:$0xff]
        %v467 = vld [vmem:[%s3 + $0xd8] sm:$0xff]
        %v468 = vld [vmem:[%s3 + $0xe0] sm:$0xff]
        %v469 = vld [vmem:[%s3 + $0xe8] sm:$0xff]
        %v470 = vld [vmem:[%s3 + $0xf0] sm:$0xff]
        %v471 = vld [vmem:[%s3 + $0xf8] sm:$0xff]
        %v473 = vcombine.high %v439, %v439
        %475 = vmatprep.subr.mxu0 0.0
        %476 = vmatpush1.msra.mxu0 %v440
        %477 = vmatprep.subr.mxu0 0.0
        %478 = vmatpush1.msra.mxu0 %v441
        %479 = vmatprep.subr.mxu0 0.0
        %480 = vmatpush1.msra.mxu0 %v442
        %481 = vmatprep.subr.mxu0 0.0
        %482 = vmatpush1.msra.mxu0 %v443
        %483 = vmatprep.subr.mxu0 0.0
        %484 = vmatpush1.msra.mxu0 %v444
        %485 = vmatprep.subr.mxu0 0.0
        %486 = vmatpush1.msra.mxu0 %v445
        %487 = vmatprep.subr.mxu0 0.0
        %488 = vmatpush1.msra.mxu0 %v446
        %489 = vmatprep.subr.mxu0 0.0
        %490 = vmatpush1.msra.mxu0 %v447
        %491 = vmatprep.subr.mxu0 0.0
        %492 = vmatpush1.msra.mxu0 %v448
        %493 = vmatprep.subr.mxu0 0.0
        %494 = vmatpush1.msra.mxu0 %v449
        %495 = vmatprep.subr.mxu0 0.0
        %496 = vmatpush1.msra.mxu0 %v450
        %497 = vmatprep.subr.mxu0 0.0
        %498 = vmatpush1.msra.mxu0 %v451
        %499 = vmatprep.subr.mxu0 0.0
        %500 = vmatpush1.msra.mxu0 %v452
        %501 = vmatprep.subr.mxu0 0.0
        %502 = vmatpush1.msra.mxu0 %v453
        %503 = vmatprep.subr.mxu0 0.0
        %504 = vmatpush1.msra.mxu0 %v454
        %505 = vmatprep.subr.mxu0 0.0
        %506 = vmatpush1.msra.mxu0 %v455
        %507 = vmatprep.subr.mxu0 0.0
        %508 = vmatpush1.msra.mxu0 %v456
        %509 = vmatprep.subr.mxu0 0.0
        %510 = vmatpush1.msra.mxu0 %v457
        %511 = vmatprep.subr.mxu0 0.0
        %512 = vmatpush1.msra.mxu0 %v458
        %513 = vmatprep.subr.mxu0 0.0
        %514 = vmatpush1.msra.mxu0 %v459
        %515 = vmatprep.subr.mxu0 0.0
        %516 = vmatpush1.msra.mxu0 %v460
        %517 = vmatprep.subr.mxu0 0.0
        %518 = vmatpush1.msra.mxu0 %v461
        %519 = vmatprep.subr.mxu0 0.0
        %520 = vmatpush1.msra.mxu0 %v462
        %521 = vmatprep.subr.mxu0 0.0
        %522 = vmatpush1.msra.mxu0 %v463
        %523 = vmatprep.subr.mxu0 0.0
        %524 = vmatpush1.msra.mxu0 %v464
        %525 = vmatprep.subr.mxu0 0.0
        %526 = vmatpush1.msra.mxu0 %v465
        %527 = vmatprep.subr.mxu0 0.0
        %528 = vmatpush1.msra.mxu0 %v466
        %529 = vmatprep.subr.mxu0 0.0
        %530 = vmatpush1.msra.mxu0 %v467
        %531 = vmatprep.subr.mxu0 0.0
        %532 = vmatpush1.msra.mxu0 %v468
        %533 = vmatprep.subr.mxu0 0.0
        %534 = vmatpush1.msra.mxu0 %v469
        %535 = vmatprep.subr.mxu0 0.0
        %536 = vmatpush1.msra.mxu0 %v470
        %537 = vmatprep.subr.mxu0 0.0
        %538 = vmatpush1.msra.mxu0 %v471
        %539 = vmatprep.mubr.f32.mxu0 %v473
        %540 = vmatmul.mubr.f32.gmra.mrb[0].mxu0 %v439
        %v541 = vpop.f32.mrb[0].mxu0
        %v542 = vadd.f32 0.0, %v541
        %v543 = vpop.f32.mrb[0].mxu0
        %544 = vdwg.mxu0
        %v545 = vld [vmem:[%s8] sm:$0xff]
        %v546 = vld [vmem:[%s9] sm:$0xf]
        %v547 = vld [vmem:[%s10] sm:$0xf]
        %vm548 = vcmask 1043456
        %v549 = vsel %vm548, %v439, 0.0
        %v550 = vsel %vm548, %v473, 0.0
        %v551 = vadd.f32 %v549, %v550
        %552 = vadd.xlane.f32.xlu0 %v551
        %v553 = vpop.xlane.xlu0 %552
        %v554 = vrcp.pop 256.0
        %v555 = vmul.f32 %v553, %v554
        %v558 = vunpack.c.l.s4 839922192
        %v559 = vunpack.c.0.s8 %v558
        %v560 = vlaneseq
        %v561 = vshrl.u32 %v560, 7
        %v562 = vsub.s32 %v559, %v561
        %v563 = vrot.slane %v555, %v562
        %v565 = vsub.f32 %v439, %v563
        %v566 = vmul.f32 %v565, %v565
        %v568 = vcombine.high %v566, %v566
        %v570 = vsel %vm548, %v566, 0.0
        %v571 = vsel %vm548, %v568, 0.0
        %v572 = vadd.f32 %v570, %v571
        %573 = vadd.xlane.f32.xlu0 %v572
        %v574 = vpop.xlane.xlu0 %573
        %v575 = vmul.f32 %v574, %v554
        %v576 = vadd.f32 %v575, 1e-05
        %v577 = vrsqrt.pop %v576
        %v580 = vunpack.c.l.s4 839922192
        %v581 = vunpack.c.0.s8 %v580
        %v582 = vlaneseq
        %v583 = vshrl.u32 %v582, 7
        %v584 = vsub.s32 %v581, %v583
        %v585 = vrot.slane %v577, %v584
        %v587 = vmul.f32 %v565, %v585
        %589 = vset.pattern.permute.xlu0 0
        %590 = vperm.xlu0 %589, %v546
        %v591 = vpop.permute.xlu0 %590
        %v593 = vunpack.c.l.s4 839922192
        %v594 = vunpack.c.0.s8 %v593
        %v595 = vlaneseq
        %v596 = vshrl.u32 %v595, 7
        %v597 = vsub.s32 %v594, %v596
        %v598 = vrot.slane %v591, %v597
        %v600 = vmul.f32 %v587, %v598
        %602 = vset.pattern.permute.xlu0 0
        %603 = vperm.xlu0 %602, %v547
        %v604 = vpop.permute.xlu0 %603
        %v606 = vunpack.c.l.s4 839922192
        %v607 = vunpack.c.0.s8 %v606
        %v608 = vlaneseq
        %v609 = vshrl.u32 %v608, 7
        %v610 = vsub.s32 %v607, %v609
        %v611 = vrot.slane %v604, %v610
        %v613 = vadd.f32 %v600, %v611
        %vm614 = vcmp.gt.f32.partialorder %v613, 0.0
        %v615 = vmul.f32 %v613, 0.2
        %v616 = vsel %vm614, %v613, %v615
        %v617 = vld [vmem:[%s4] sm:$0xf]
        %v619 = vcombine.high %v616, %v616
        %vm620 = vcmask 31744
        %v622 = vsel %vm620, %v617, 0
        %v624 = vsel %vm548, %v616, 0
        %v626 = vsel %vm548, %v619, 0
        %628 = vmatprep.subr.mxu0 %v626
        %629 = vmatpush1.msra.mxu0 %v624
        %630 = vmatprep.subr.mxu0 0.0
        %631 = vmatpush1.msra.mxu0 0.0
        %632 = vmatprep.subr.mxu0 0.0
        %633 = vmatpush1.msra.mxu0 0.0
        %634 = vmatprep.subr.mxu0 0.0
        %635 = vmatpush1.msra.mxu0 0.0
        %636 = vmatprep.subr.mxu0 0.0
        %637 = vmatpush1.msra.mxu0 0.0
        %638 = vmatprep.subr.mxu0 0.0
        %639 = vmatpush1.msra.mxu0 0.0
        %640 = vmatprep.subr.mxu0 0.0
        %641 = vmatpush1.msra.mxu0 0.0
        %642 = vmatprep.subr.mxu0 0.0
        %643 = vmatpush1.msra.mxu0 0.0
        %644 = vmatprep.subr.mxu0 0.0
        %645 = vmatpush1.msra.mxu0 0.0
        %646 = vmatprep.subr.mxu0 0.0
        %647 = vmatpush1.msra.mxu0 0.0
        %648 = vmatprep.subr.mxu0 0.0
        %649 = vmatpush1.msra.mxu0 0.0
        %650 = vmatprep.subr.mxu0 0.0
        %651 = vmatpush1.msra.mxu0 0.0
        %652 = vmatprep.subr.mxu0 0.0
        %653 = vmatpush1.msra.mxu0 0.0
        %654 = vmatprep.subr.mxu0 0.0
        %655 = vmatpush1.msra.mxu0 0.0
        %656 = vmatprep.subr.mxu0 0.0
        %657 = vmatpush1.msra.mxu0 0.0
        %658 = vmatprep.subr.mxu0 0.0
        %659 = vmatpush1.msra.mxu0 0.0
        %660 = vmatprep.subr.mxu0 0.0
        %661 = vmatpush1.msra.mxu0 0.0
        %662 = vmatprep.subr.mxu0 0.0
        %663 = vmatpush1.msra.mxu0 0.0
        %664 = vmatprep.subr.mxu0 0.0
        %665 = vmatpush1.msra.mxu0 0.0
        %666 = vmatprep.subr.mxu0 0.0
        %667 = vmatpush1.msra.mxu0 0.0
        %668 = vmatprep.subr.mxu0 0.0
        %669 = vmatpush1.msra.mxu0 0.0
        %670 = vmatprep.subr.mxu0 0.0
        %671 = vmatpush1.msra.mxu0 0.0
        %672 = vmatprep.subr.mxu0 0.0
        %673 = vmatpush1.msra.mxu0 0.0
        %674 = vmatprep.subr.mxu0 0.0
        %675 = vmatpush1.msra.mxu0 0.0
        %676 = vmatprep.subr.mxu0 0.0
        %677 = vmatpush1.msra.mxu0 0.0
        %678 = vmatprep.subr.mxu0 0.0
        %679 = vmatpush1.msra.mxu0 0.0
        %680 = vmatprep.subr.mxu0 0.0
        %681 = vmatpush1.msra.mxu0 0.0
        %682 = vmatprep.subr.mxu0 0.0
        %683 = vmatpush1.msra.mxu0 0.0
        %684 = vmatprep.subr.mxu0 0.0
        %685 = vmatpush1.msra.mxu0 0.0
        %686 = vmatprep.subr.mxu0 0.0
        %687 = vmatpush1.msra.mxu0 0.0
        %688 = vmatprep.subr.mxu0 0.0
        %689 = vmatpush1.msra.mxu0 0.0
        %690 = vmatprep.subr.mxu0 0.0
        %691 = vmatpush1.msra.mxu0 0.0
        %692 = vmatprep.mubr.f32.mxu0 0.0
        %693 = vmatmul.mubr.f32.gmra.mrb[0].mxu0 %v622
        %v694 = vpop.f32.mrb[0].mxu0
        %v695 = vadd.f32 0.0, %v694
        %v696 = vpop.f32.mrb[0].mxu0
        %v697 = vadd.f32 0.0, %v696
        %698 = vdwg.mxu0
        %s699 = scalar_lea.vmem %s4, 4
        %v700 = vld [vmem:[%s699] sm:$0xf]
        %v702 = vsel %vm620, %v700, 0
        %704 = vmatprep.subr.mxu0 %v626
        %705 = vmatpush1.msra.mxu0 %v624
        %706 = vmatprep.subr.mxu0 0.0
        %707 = vmatpush1.msra.mxu0 0.0
        %708 = vmatprep.subr.mxu0 0.0
        %709 = vmatpush1.msra.mxu0 0.0
        %710 = vmatprep.subr.mxu0 0.0
        %711 = vmatpush1.msra.mxu0 0.0
        %712 = vmatprep.subr.mxu0 0.0
        %713 = vmatpush1.msra.mxu0 0.0
        %714 = vmatprep.subr.mxu0 0.0
        %715 = vmatpush1.msra.mxu0 0.0
        %716 = vmatprep.subr.mxu0 0.0
        %717 = vmatpush1.msra.mxu0 0.0
        %718 = vmatprep.subr.mxu0 0.0
        %719 = vmatpush1.msra.mxu0 0.0
        %720 = vmatprep.subr.mxu0 0.0
        %721 = vmatpush1.msra.mxu0 0.0
        %722 = vmatprep.subr.mxu0 0.0
        %723 = vmatpush1.msra.mxu0 0.0
        %724 = vmatprep.subr.mxu0 0.0
        %725 = vmatpush1.msra.mxu0 0.0
        %726 = vmatprep.subr.mxu0 0.0
        %727 = vmatpush1.msra.mxu0 0.0
        %728 = vmatprep.subr.mxu0 0.0
        %729 = vmatpush1.msra.mxu0 0.0
        %730 = vmatprep.subr.mxu0 0.0
        %731 = vmatpush1.msra.mxu0 0.0
        %732 = vmatprep.subr.mxu0 0.0
        %733 = vmatpush1.msra.mxu0 0.0
        %734 = vmatprep.subr.mxu0 0.0
        %735 = vmatpush1.msra.mxu0 0.0
        %736 = vmatprep.subr.mxu0 0.0
        %737 = vmatpush1.msra.mxu0 0.0
        %738 = vmatprep.subr.mxu0 0.0
        %739 = vmatpush1.msra.mxu0 0.0
        %740 = vmatprep.subr.mxu0 0.0
        %741 = vmatpush1.msra.mxu0 0.0
        %742 = vmatprep.subr.mxu0 0.0
        %743 = vmatpush1.msra.mxu0 0.0
        %744 = vmatprep.subr.mxu0 0.0
        %745 = vmatpush1.msra.mxu0 0.0
        %746 = vmatprep.subr.mxu0 0.0
        %747 = vmatpush1.msra.mxu0 0.0
        %748 = vmatprep.subr.mxu0 0.0
        %749 = vmatpush1.msra.mxu0 0.0
        %750 = vmatprep.subr.mxu0 0.0
        %751 = vmatpush1.msra.mxu0 0.0
        %752 = vmatprep.subr.mxu0 0.0
        %753 = vmatpush1.msra.mxu0 0.0
        %754 = vmatprep.subr.mxu0 0.0
        %755 = vmatpush1.msra.mxu0 0.0
        %756 = vmatprep.subr.mxu0 0.0
        %757 = vmatpush1.msra.mxu0 0.0
        %758 = vmatprep.subr.mxu0 0.0
        %759 = vmatpush1.msra.mxu0 0.0
        %760 = vmatprep.subr.mxu0 0.0
        %761 = vmatpush1.msra.mxu0 0.0
        %762 = vmatprep.subr.mxu0 0.0
        %763 = vmatpush1.msra.mxu0 0.0
        %764 = vmatprep.subr.mxu0 0.0
        %765 = vmatpush1.msra.mxu0 0.0
        %766 = vmatprep.subr.mxu0 0.0
        %767 = vmatpush1.msra.mxu0 0.0
        %768 = vmatprep.mubr.f32.mxu0 0.0
        %769 = vmatmul.mubr.f32.gmra.mrb[0].mxu0 %v702
        %v770 = vpop.f32.mrb[0].mxu0
        %v771 = vadd.f32 0.0, %v770
        %v772 = vpop.f32.mrb[0].mxu0
        %v773 = vadd.f32 0.0, %v772
        %774 = vdwg.mxu0
        %s775 = scalar_lea.vmem %s4, 8
        %v776 = vld [vmem:[%s775] sm:$0xf]
        %v778 = vsel %vm620, %v776, 0
        %780 = vmatprep.subr.mxu0 %v626
        %781 = vmatpush1.msra.mxu0 %v624
        %782 = vmatprep.subr.mxu0 0.0
        %783 = vmatpush1.msra.mxu0 0.0
        %784 = vmatprep.subr.mxu0 0.0
        %785 = vmatpush1.msra.mxu0 0.0
        %786 = vmatprep.subr.mxu0 0.0
        %787 = vmatpush1.msra.mxu0 0.0
        %788 = vmatprep.subr.mxu0 0.0
        %789 = vmatpush1.msra.mxu0 0.0
        %790 = vmatprep.subr.mxu0 0.0
        %791 = vmatpush1.msra.mxu0 0.0
        %792 = vmatprep.subr.mxu0 0.0
        %793 = vmatpush1.msra.mxu0 0.0
        %794 = vmatprep.subr.mxu0 0.0
        %795 = vmatpush1.msra.mxu0 0.0
        %796 = vmatprep.subr.mxu0 0.0
        %797 = vmatpush1.msra.mxu0 0.0
        %798 = vmatprep.subr.mxu0 0.0
        %799 = vmatpush1.msra.mxu0 0.0
        %800 = vmatprep.subr.mxu0 0.0
        %801 = vmatpush1.msra.mxu0 0.0
        %802 = vmatprep.subr.mxu0 0.0
        %803 = vmatpush1.msra.mxu0 0.0
        %804 = vmatprep.subr.mxu0 0.0
        %805 = vmatpush1.msra.mxu0 0.0
        %806 = vmatprep.subr.mxu0 0.0
        %807 = vmatpush1.msra.mxu0 0.0
        %808 = vmatprep.subr.mxu0 0.0
        %809 = vmatpush1.msra.mxu0 0.0
        %810 = vmatprep.subr.mxu0 0.0
        %811 = vmatpush1.msra.mxu0 0.0
        %812 = vmatprep.subr.mxu0 0.0
        %813 = vmatpush1.msra.mxu0 0.0
        %814 = vmatprep.subr.mxu0 0.0
        %815 = vmatpush1.msra.mxu0 0.0
        %816 = vmatprep.subr.mxu0 0.0
        %817 = vmatpush1.msra.mxu0 0.0
        %818 = vmatprep.subr.mxu0 0.0
        %819 = vmatpush1.msra.mxu0 0.0
        %820 = vmatprep.subr.mxu0 0.0
        %821 = vmatpush1.msra.mxu0 0.0
        %822 = vmatprep.subr.mxu0 0.0
        %823 = vmatpush1.msra.mxu0 0.0
        %824 = vmatprep.subr.mxu0 0.0
        %825 = vmatpush1.msra.mxu0 0.0
        %826 = vmatprep.subr.mxu0 0.0
        %827 = vmatpush1.msra.mxu0 0.0
        %828 = vmatprep.subr.mxu0 0.0
        %829 = vmatpush1.msra.mxu0 0.0
        %830 = vmatprep.subr.mxu0 0.0
        %831 = vmatpush1.msra.mxu0 0.0
        %832 = vmatprep.subr.mxu0 0.0
        %833 = vmatpush1.msra.mxu0 0.0
        %834 = vmatprep.subr.mxu0 0.0
        %835 = vmatpush1.msra.mxu0 0.0
        %836 = vmatprep.subr.mxu0 0.0
        %837 = vmatpush1.msra.mxu0 0.0
        %838 = vmatprep.subr.mxu0 0.0
        %839 = vmatpush1.msra.mxu0 0.0
        %840 = vmatprep.subr.mxu0 0.0
        %841 = vmatpush1.msra.mxu0 0.0
        %842 = vmatprep.subr.mxu0 0.0
        %843 = vmatpush1.msra.mxu0 0.0
        %844 = vmatprep.mubr.f32.mxu0 0.0
        %845 = vmatmul.mubr.f32.gmra.mrb[0].mxu0 %v778
        %v846 = vpop.f32.mrb[0].mxu0
        %v847 = vadd.f32 0.0, %v846
        %v848 = vpop.f32.mrb[0].mxu0
        %v849 = vadd.f32 0.0, %v848
        %850 = vdwg.mxu0
        %s851 = scalar_lea.vmem %s4, 12
        %v852 = vld [vmem:[%s851] sm:$0xf]
        %v854 = vsel %vm620, %v852, 0
        %856 = vmatprep.subr.mxu0 %v626
        %857 = vmatpush1.msra.mxu0 %v624
        %858 = vmatprep.subr.mxu0 0.0
        %859 = vmatpush1.msra.mxu0 0.0
        %860 = vmatprep.subr.mxu0 0.0
        %861 = vmatpush1.msra.mxu0 0.0
        %862 = vmatprep.subr.mxu0 0.0
        %863 = vmatpush1.msra.mxu0 0.0
        %864 = vmatprep.subr.mxu0 0.0
        %865 = vmatpush1.msra.mxu0 0.0
        %866 = vmatprep.subr.mxu0 0.0
        %867 = vmatpush1.msra.mxu0 0.0
        %868 = vmatprep.subr.mxu0 0.0
        %869 = vmatpush1.msra.mxu0 0.0
        %870 = vmatprep.subr.mxu0 0.0
        %871 = vmatpush1.msra.mxu0 0.0
        %872 = vmatprep.subr.mxu0 0.0
        %873 = vmatpush1.msra.mxu0 0.0
        %874 = vmatprep.subr.mxu0 0.0
        %875 = vmatpush1.msra.mxu0 0.0
        %876 = vmatprep.subr.mxu0 0.0
        %877 = vmatpush1.msra.mxu0 0.0
        %878 = vmatprep.subr.mxu0 0.0
        %879 = vmatpush1.msra.mxu0 0.0
        %880 = vmatprep.subr.mxu0 0.0
        %881 = vmatpush1.msra.mxu0 0.0
        %882 = vmatprep.subr.mxu0 0.0
        %883 = vmatpush1.msra.mxu0 0.0
        %884 = vmatprep.subr.mxu0 0.0
        %885 = vmatpush1.msra.mxu0 0.0
        %886 = vmatprep.subr.mxu0 0.0
        %887 = vmatpush1.msra.mxu0 0.0
        %888 = vmatprep.subr.mxu0 0.0
        %889 = vmatpush1.msra.mxu0 0.0
        %890 = vmatprep.subr.mxu0 0.0
        %891 = vmatpush1.msra.mxu0 0.0
        %892 = vmatprep.subr.mxu0 0.0
        %893 = vmatpush1.msra.mxu0 0.0
        %894 = vmatprep.subr.mxu0 0.0
        %895 = vmatpush1.msra.mxu0 0.0
        %896 = vmatprep.subr.mxu0 0.0
        %897 = vmatpush1.msra.mxu0 0.0
        %898 = vmatprep.subr.mxu0 0.0
        %899 = vmatpush1.msra.mxu0 0.0
        %900 = vmatprep.subr.mxu0 0.0
        %901 = vmatpush1.msra.mxu0 0.0
        %902 = vmatprep.subr.mxu0 0.0
        %903 = vmatpush1.msra.mxu0 0.0
        %904 = vmatprep.subr.mxu0 0.0
        %905 = vmatpush1.msra.mxu0 0.0
        %906 = vmatprep.subr.mxu0 0.0
        %907 = vmatpush1.msra.mxu0 0.0
        %908 = vmatprep.subr.mxu0 0.0
        %909 = vmatpush1.msra.mxu0 0.0
        %910 = vmatprep.subr.mxu0 0.0
        %911 = vmatpush1.msra.mxu0 0.0
        %912 = vmatprep.subr.mxu0 0.0
        %913 = vmatpush1.msra.mxu0 0.0
        %914 = vmatprep.subr.mxu0 0.0
        %915 = vmatpush1.msra.mxu0 0.0
        %916 = vmatprep.subr.mxu0 0.0
        %917 = vmatpush1.msra.mxu0 0.0
        %918 = vmatprep.subr.mxu0 0.0
        %919 = vmatpush1.msra.mxu0 0.0
        %920 = vmatprep.mubr.f32.mxu0 0.0
        %921 = vmatmul.mubr.f32.gmra.mrb[0].mxu0 %v854
        %v922 = vpop.f32.mrb[0].mxu0
        %v923 = vadd.f32 0.0, %v922
        %v924 = vpop.f32.mrb[0].mxu0
        %v925 = vadd.f32 0.0, %v924
        %926 = vdwg.mxu0
        %s927 = scalar_lea.vmem %s4, 16
        %v928 = vld [vmem:[%s927] sm:$0xf]
        %v930 = vsel %vm620, %v928, 0
        %932 = vmatprep.subr.mxu0 %v626
        %933 = vmatpush1.msra.mxu0 %v624
        %934 = vmatprep.subr.mxu0 0.0
        %935 = vmatpush1.msra.mxu0 0.0
        %936 = vmatprep.subr.mxu0 0.0
        %937 = vmatpush1.msra.mxu0 0.0
        %938 = vmatprep.subr.mxu0 0.0
        %939 = vmatpush1.msra.mxu0 0.0
        %940 = vmatprep.subr.mxu0 0.0
        %941 = vmatpush1.msra.mxu0 0.0
        %942 = vmatprep.subr.mxu0 0.0
        %943 = vmatpush1.msra.mxu0 0.0
        %944 = vmatprep.subr.mxu0 0.0
        %945 = vmatpush1.msra.mxu0 0.0
        %946 = vmatprep.subr.mxu0 0.0
        %947 = vmatpush1.msra.mxu0 0.0
        %948 = vmatprep.subr.mxu0 0.0
        %949 = vmatpush1.msra.mxu0 0.0
        %950 = vmatprep.subr.mxu0 0.0
        %951 = vmatpush1.msra.mxu0 0.0
        %952 = vmatprep.subr.mxu0 0.0
        %953 = vmatpush1.msra.mxu0 0.0
        %954 = vmatprep.subr.mxu0 0.0
        %955 = vmatpush1.msra.mxu0 0.0
        %956 = vmatprep.subr.mxu0 0.0
        %957 = vmatpush1.msra.mxu0 0.0
        %958 = vmatprep.subr.mxu0 0.0
        %959 = vmatpush1.msra.mxu0 0.0
        %960 = vmatprep.subr.mxu0 0.0
        %961 = vmatpush1.msra.mxu0 0.0
        %962 = vmatprep.subr.mxu0 0.0
        %963 = vmatpush1.msra.mxu0 0.0
        %964 = vmatprep.subr.mxu0 0.0
        %965 = vmatpush1.msra.mxu0 0.0
        %966 = vmatprep.subr.mxu0 0.0
        %967 = vmatpush1.msra.mxu0 0.0
        %968 = vmatprep.subr.mxu0 0.0
        %969 = vmatpush1.msra.mxu0 0.0
        %970 = vmatprep.subr.mxu0 0.0
        %971 = vmatpush1.msra.mxu0 0.0
        %972 = vmatprep.subr.mxu0 0.0
        %973 = vmatpush1.msra.mxu0 0.0
        %974 = vmatprep.subr.mxu0 0.0
        %975 = vmatpush1.msra.mxu0 0.0
        %976 = vmatprep.subr.mxu0 0.0
        %977 = vmatpush1.msra.mxu0 0.0
        %978 = vmatprep.subr.mxu0 0.0
        %979 = vmatpush1.msra.mxu0 0.0
        %980 = vmatprep.subr.mxu0 0.0
        %981 = vmatpush1.msra.mxu0 0.0
        %982 = vmatprep.subr.mxu0 0.0
        %983 = vmatpush1.msra.mxu0 0.0
        %984 = vmatprep.subr.mxu0 0.0
        %985 = vmatpush1.msra.mxu0 0.0
        %986 = vmatprep.subr.mxu0 0.0
        %987 = vmatpush1.msra.mxu0 0.0
        %988 = vmatprep.subr.mxu0 0.0
        %989 = vmatpush1.msra.mxu0 0.0
        %990 = vmatprep.subr.mxu0 0.0
        %991 = vmatpush1.msra.mxu0 0.0
        %992 = vmatprep.subr.mxu0 0.0
        %993 = vmatpush1.msra.mxu0 0.0
        %994 = vmatprep.subr.mxu0 0.0
        %995 = vmatpush1.msra.mxu0 0.0
        %996 = vmatprep.mubr.f32.mxu0 0.0
        %997 = vmatmul.mubr.f32.gmra.mrb[0].mxu0 %v930
        %v998 = vpop.f32.mrb[0].mxu0
        %v999 = vadd.f32 0.0, %v998
        %v1000 = vpop.f32.mrb[0].mxu0
        %v1001 = vadd.f32 0.0, %v1000
        %1002 = vdwg.mxu0
        %s1003 = scalar_lea.vmem %s4, 20
        %v1004 = vld [vmem:[%s1003] sm:$0xf]
        %v1006 = vsel %vm620, %v1004, 0
        %1008 = vmatprep.subr.mxu0 %v626
        %1009 = vmatpush1.msra.mxu0 %v624
        %1010 = vmatprep.subr.mxu0 0.0
        %1011 = vmatpush1.msra.mxu0 0.0
        %1012 = vmatprep.subr.mxu0 0.0
        %1013 = vmatpush1.msra.mxu0 0.0
        %1014 = vmatprep.subr.mxu0 0.0
        %1015 = vmatpush1.msra.mxu0 0.0
        %1016 = vmatprep.subr.mxu0 0.0
        %1017 = vmatpush1.msra.mxu0 0.0
        %1018 = vmatprep.subr.mxu0 0.0
        %1019 = vmatpush1.msra.mxu0 0.0
        %1020 = vmatprep.subr.mxu0 0.0
        %1021 = vmatpush1.msra.mxu0 0.0
        %1022 = vmatprep.subr.mxu0 0.0
        %1023 = vmatpush1.msra.mxu0 0.0
        %1024 = vmatprep.subr.mxu0 0.0
        %1025 = vmatpush1.msra.mxu0 0.0
        %1026 = vmatprep.subr.mxu0 0.0
        %1027 = vmatpush1.msra.mxu0 0.0
        %1028 = vmatprep.subr.mxu0 0.0
        %1029 = vmatpush1.msra.mxu0 0.0
        %1030 = vmatprep.subr.mxu0 0.0
        %1031 = vmatpush1.msra.mxu0 0.0
        %1032 = vmatprep.subr.mxu0 0.0
        %1033 = vmatpush1.msra.mxu0 0.0
        %1034 = vmatprep.subr.mxu0 0.0
        %1035 = vmatpush1.msra.mxu0 0.0
        %1036 = vmatprep.subr.mxu0 0.0
        %1037 = vmatpush1.msra.mxu0 0.0
        %1038 = vmatprep.subr.mxu0 0.0
        %1039 = vmatpush1.msra.mxu0 0.0
        %1040 = vmatprep.subr.mxu0 0.0
        %1041 = vmatpush1.msra.mxu0 0.0
        %1042 = vmatprep.subr.mxu0 0.0
        %1043 = vmatpush1.msra.mxu0 0.0
        %1044 = vmatprep.subr.mxu0 0.0
        %1045 = vmatpush1.msra.mxu0 0.0
        %1046 = vmatprep.subr.mxu0 0.0
        %1047 = vmatpush1.msra.mxu0 0.0
        %1048 = vmatprep.subr.mxu0 0.0
        %1049 = vmatpush1.msra.mxu0 0.0
        %1050 = vmatprep.subr.mxu0 0.0
        %1051 = vmatpush1.msra.mxu0 0.0
        %1052 = vmatprep.subr.mxu0 0.0
        %1053 = vmatpush1.msra.mxu0 0.0
        %1054 = vmatprep.subr.mxu0 0.0
        %1055 = vmatpush1.msra.mxu0 0.0
        %1056 = vmatprep.subr.mxu0 0.0
        %1057 = vmatpush1.msra.mxu0 0.0
        %1058 = vmatprep.subr.mxu0 0.0
        %1059 = vmatpush1.msra.mxu0 0.0
        %1060 = vmatprep.subr.mxu0 0.0
        %1061 = vmatpush1.msra.mxu0 0.0
        %1062 = vmatprep.subr.mxu0 0.0
        %1063 = vmatpush1.msra.mxu0 0.0
        %1064 = vmatprep.subr.mxu0 0.0
        %1065 = vmatpush1.msra.mxu0 0.0
        %1066 = vmatprep.subr.mxu0 0.0
        %1067 = vmatpush1.msra.mxu0 0.0
        %1068 = vmatprep.subr.mxu0 0.0
        %1069 = vmatpush1.msra.mxu0 0.0
        %1070 = vmatprep.subr.mxu0 0.0
        %1071 = vmatpush1.msra.mxu0 0.0
        %1072 = vmatprep.mubr.f32.mxu0 0.0
        %1073 = vmatmul.mubr.f32.gmra.mrb[0].mxu0 %v1006
        %v1074 = vpop.f32.mrb[0].mxu0
        %v1075 = vadd.f32 0.0, %v1074
        %v1076 = vpop.f32.mrb[0].mxu0
        %v1077 = vadd.f32 0.0, %v1076
        %1078 = vdwg.mxu0
        %s1079 = scalar_lea.vmem %s4, 24
        %v1080 = vld [vmem:[%s1079] sm:$0xf]
        %v1082 = vsel %vm620, %v1080, 0
        %1084 = vmatprep.subr.mxu0 %v626
        %1085 = vmatpush1.msra.mxu0 %v624
        %1086 = vmatprep.subr.mxu0 0.0
        %1087 = vmatpush1.msra.mxu0 0.0
        %1088 = vmatprep.subr.mxu0 0.0
        %1089 = vmatpush1.msra.mxu0 0.0
        %1090 = vmatprep.subr.mxu0 0.0
        %1091 = vmatpush1.msra.mxu0 0.0
        %1092 = vmatprep.subr.mxu0 0.0
        %1093 = vmatpush1.msra.mxu0 0.0
        %1094 = vmatprep.subr.mxu0 0.0
        %1095 = vmatpush1.msra.mxu0 0.0
        %1096 = vmatprep.subr.mxu0 0.0
        %1097 = vmatpush1.msra.mxu0 0.0
        %1098 = vmatprep.subr.mxu0 0.0
        %1099 = vmatpush1.msra.mxu0 0.0
        %1100 = vmatprep.subr.mxu0 0.0
        %1101 = vmatpush1.msra.mxu0 0.0
        %1102 = vmatprep.subr.mxu0 0.0
        %1103 = vmatpush1.msra.mxu0 0.0
        %1104 = vmatprep.subr.mxu0 0.0
        %1105 = vmatpush1.msra.mxu0 0.0
        %1106 = vmatprep.subr.mxu0 0.0
        %1107 = vmatpush1.msra.mxu0 0.0
        %1108 = vmatprep.subr.mxu0 0.0
        %1109 = vmatpush1.msra.mxu0 0.0
        %1110 = vmatprep.subr.mxu0 0.0
        %1111 = vmatpush1.msra.mxu0 0.0
        %1112 = vmatprep.subr.mxu0 0.0
        %1113 = vmatpush1.msra.mxu0 0.0
        %1114 = vmatprep.subr.mxu0 0.0
        %1115 = vmatpush1.msra.mxu0 0.0
        %1116 = vmatprep.subr.mxu0 0.0
        %1117 = vmatpush1.msra.mxu0 0.0
        %1118 = vmatprep.subr.mxu0 0.0
        %1119 = vmatpush1.msra.mxu0 0.0
        %1120 = vmatprep.subr.mxu0 0.0
        %1121 = vmatpush1.msra.mxu0 0.0
        %1122 = vmatprep.subr.mxu0 0.0
        %1123 = vmatpush1.msra.mxu0 0.0
        %1124 = vmatprep.subr.mxu0 0.0
        %1125 = vmatpush1.msra.mxu0 0.0
        %1126 = vmatprep.subr.mxu0 0.0
        %1127 = vmatpush1.msra.mxu0 0.0
        %1128 = vmatprep.subr.mxu0 0.0
        %1129 = vmatpush1.msra.mxu0 0.0
        %1130 = vmatprep.subr.mxu0 0.0
        %1131 = vmatpush1.msra.mxu0 0.0
        %1132 = vmatprep.subr.mxu0 0.0
        %1133 = vmatpush1.msra.mxu0 0.0
        %1134 = vmatprep.subr.mxu0 0.0
        %1135 = vmatpush1.msra.mxu0 0.0
        %1136 = vmatprep.subr.mxu0 0.0
        %1137 = vmatpush1.msra.mxu0 0.0
        %1138 = vmatprep.subr.mxu0 0.0
        %1139 = vmatpush1.msra.mxu0 0.0
        %1140 = vmatprep.subr.mxu0 0.0
        %1141 = vmatpush1.msra.mxu0 0.0
        %1142 = vmatprep.subr.mxu0 0.0
        %1143 = vmatpush1.msra.mxu0 0.0
        %1144 = vmatprep.subr.mxu0 0.0
        %1145 = vmatpush1.msra.mxu0 0.0
        %1146 = vmatprep.subr.mxu0 0.0
        %1147 = vmatpush1.msra.mxu0 0.0
        %1148 = vmatprep.mubr.f32.mxu0 0.0
        %1149 = vmatmul.mubr.f32.gmra.mrb[0].mxu0 %v1082
        %v1150 = vpop.f32.mrb[0].mxu0
        %v1151 = vadd.f32 0.0, %v1150
        %v1152 = vpop.f32.mrb[0].mxu0
        %v1153 = vadd.f32 0.0, %v1152
        %1154 = vdwg.mxu0
        %s1155 = scalar_lea.vmem %s4, 28
        %v1156 = vld [vmem:[%s1155] sm:$0xf]
        %v1158 = vsel %vm620, %v1156, 0
        %1160 = vmatprep.subr.mxu0 %v626
        %1161 = vmatpush1.msra.mxu0 %v624
        %1162 = vmatprep.subr.mxu0 0.0
        %1163 = vmatpush1.msra.mxu0 0.0
        %1164 = vmatprep.subr.mxu0 0.0
        %1165 = vmatpush1.msra.mxu0 0.0
        %1166 = vmatprep.subr.mxu0 0.0
        %1167 = vmatpush1.msra.mxu0 0.0
        %1168 = vmatprep.subr.mxu0 0.0
        %1169 = vmatpush1.msra.mxu0 0.0
        %1170 = vmatprep.subr.mxu0 0.0
        %1171 = vmatpush1.msra.mxu0 0.0
        %1172 = vmatprep.subr.mxu0 0.0
        %1173 = vmatpush1.msra.mxu0 0.0
        %1174 = vmatprep.subr.mxu0 0.0
        %1175 = vmatpush1.msra.mxu0 0.0
        %1176 = vmatprep.subr.mxu0 0.0
        %1177 = vmatpush1.msra.mxu0 0.0
        %1178 = vmatprep.subr.mxu0 0.0
        %1179 = vmatpush1.msra.mxu0 0.0
        %1180 = vmatprep.subr.mxu0 0.0
        %1181 = vmatpush1.msra.mxu0 0.0
        %1182 = vmatprep.subr.mxu0 0.0
        %1183 = vmatpush1.msra.mxu0 0.0
        %1184 = vmatprep.subr.mxu0 0.0
        %1185 = vmatpush1.msra.mxu0 0.0
        %1186 = vmatprep.subr.mxu0 0.0
        %1187 = vmatpush1.msra.mxu0 0.0
        %1188 = vmatprep.subr.mxu0 0.0
        %1189 = vmatpush1.msra.mxu0 0.0
        %1190 = vmatprep.subr.mxu0 0.0
        %1191 = vmatpush1.msra.mxu0 0.0
        %1192 = vmatprep.subr.mxu0 0.0
        %1193 = vmatpush1.msra.mxu0 0.0
        %1194 = vmatprep.subr.mxu0 0.0
        %1195 = vmatpush1.msra.mxu0 0.0
        %1196 = vmatprep.subr.mxu0 0.0
        %1197 = vmatpush1.msra.mxu0 0.0
        %1198 = vmatprep.subr.mxu0 0.0
        %1199 = vmatpush1.msra.mxu0 0.0
        %1200 = vmatprep.subr.mxu0 0.0
        %1201 = vmatpush1.msra.mxu0 0.0
        %1202 = vmatprep.subr.mxu0 0.0
        %1203 = vmatpush1.msra.mxu0 0.0
        %1204 = vmatprep.subr.mxu0 0.0
        %1205 = vmatpush1.msra.mxu0 0.0
        %1206 = vmatprep.subr.mxu0 0.0
        %1207 = vmatpush1.msra.mxu0 0.0
        %1208 = vmatprep.subr.mxu0 0.0
        %1209 = vmatpush1.msra.mxu0 0.0
        %1210 = vmatprep.subr.mxu0 0.0
        %1211 = vmatpush1.msra.mxu0 0.0
        %1212 = vmatprep.subr.mxu0 0.0
        %1213 = vmatpush1.msra.mxu0 0.0
        %1214 = vmatprep.subr.mxu0 0.0
        %1215 = vmatpush1.msra.mxu0 0.0
        %1216 = vmatprep.subr.mxu0 0.0
        %1217 = vmatpush1.msra.mxu0 0.0
        %1218 = vmatprep.subr.mxu0 0.0
        %1219 = vmatpush1.msra.mxu0 0.0
        %1220 = vmatprep.subr.mxu0 0.0
        %1221 = vmatpush1.msra.mxu0 0.0
        %1222 = vmatprep.subr.mxu0 0.0
        %1223 = vmatpush1.msra.mxu0 0.0
        %1224 = vmatprep.mubr.f32.mxu0 0.0
        %1225 = vmatmul.mubr.f32.gmra.mrb[0].mxu0 %v1158
        %v1226 = vpop.f32.mrb[0].mxu0
        %v1227 = vadd.f32 0.0, %v1226
        %v1228 = vpop.f32.mrb[0].mxu0
        %v1229 = vadd.f32 0.0, %v1228
        %1230 = vdwg.mxu0
        %s1231 = scalar_lea.vmem %s4, 32
        %v1232 = vld [vmem:[%s1231] sm:$0xf]
        %v1234 = vsel %vm620, %v1232, 0
        %1236 = vmatprep.subr.mxu0 %v626
        %1237 = vmatpush1.msra.mxu0 %v624
        %1238 = vmatprep.subr.mxu0 0.0
        %1239 = vmatpush1.msra.mxu0 0.0
        %1240 = vmatprep.subr.mxu0 0.0
        %1241 = vmatpush1.msra.mxu0 0.0
        %1242 = vmatprep.subr.mxu0 0.0
        %1243 = vmatpush1.msra.mxu0 0.0
        %1244 = vmatprep.subr.mxu0 0.0
        %1245 = vmatpush1.msra.mxu0 0.0
        %1246 = vmatprep.subr.mxu0 0.0
        %1247 = vmatpush1.msra.mxu0 0.0
        %1248 = vmatprep.subr.mxu0 0.0
        %1249 = vmatpush1.msra.mxu0 0.0
        %1250 = vmatprep.subr.mxu0 0.0
        %1251 = vmatpush1.msra.mxu0 0.0
        %1252 = vmatprep.subr.mxu0 0.0
        %1253 = vmatpush1.msra.mxu0 0.0
        %1254 = vmatprep.subr.mxu0 0.0
        %1255 = vmatpush1.msra.mxu0 0.0
        %1256 = vmatprep.subr.mxu0 0.0
        %1257 = vmatpush1.msra.mxu0 0.0
        %1258 = vmatprep.subr.mxu0 0.0
        %1259 = vmatpush1.msra.mxu0 0.0
        %1260 = vmatprep.subr.mxu0 0.0
        %1261 = vmatpush1.msra.mxu0 0.0
        %1262 = vmatprep.subr.mxu0 0.0
        %1263 = vmatpush1.msra.mxu0 0.0
        %1264 = vmatprep.subr.mxu0 0.0
        %1265 = vmatpush1.msra.mxu0 0.0
        %1266 = vmatprep.subr.mxu0 0.0
        %1267 = vmatpush1.msra.mxu0 0.0
        %1268 = vmatprep.subr.mxu0 0.0
        %1269 = vmatpush1.msra.mxu0 0.0
        %1270 = vmatprep.subr.mxu0 0.0
        %1271 = vmatpush1.msra.mxu0 0.0
        %1272 = vmatprep.subr.mxu0 0.0
        %1273 = vmatpush1.msra.mxu0 0.0
        %1274 = vmatprep.subr.mxu0 0.0
        %1275 = vmatpush1.msra.mxu0 0.0
        %1276 = vmatprep.subr.mxu0 0.0
        %1277 = vmatpush1.msra.mxu0 0.0
        %1278 = vmatprep.subr.mxu0 0.0
        %1279 = vmatpush1.msra.mxu0 0.0
        %1280 = vmatprep.subr.mxu0 0.0
        %1281 = vmatpush1.msra.mxu0 0.0
        %1282 = vmatprep.subr.mxu0 0.0
        %1283 = vmatpush1.msra.mxu0 0.0
        %1284 = vmatprep.subr.mxu0 0.0
        %1285 = vmatpush1.msra.mxu0 0.0
        %1286 = vmatprep.subr.mxu0 0.0
        %1287 = vmatpush1.msra.mxu0 0.0
        %1288 = vmatprep.subr.mxu0 0.0
        %1289 = vmatpush1.msra.mxu0 0.0
        %1290 = vmatprep.subr.mxu0 0.0
        %1291 = vmatpush1.msra.mxu0 0.0
        %1292 = vmatprep.subr.mxu0 0.0
        %1293 = vmatpush1.msra.mxu0 0.0
        %1294 = vmatprep.subr.mxu0 0.0
        %1295 = vmatpush1.msra.mxu0 0.0
        %1296 = vmatprep.subr.mxu0 0.0
        %1297 = vmatpush1.msra.mxu0 0.0
        %1298 = vmatprep.subr.mxu0 0.0
        %1299 = vmatpush1.msra.mxu0 0.0
        %1300 = vmatprep.mubr.f32.mxu0 0.0
        %1301 = vmatmul.mubr.f32.gmra.mrb[0].mxu0 %v1234
        %v1302 = vpop.f32.mrb[0].mxu0
        %v1303 = vadd.f32 0.0, %v1302
        %v1304 = vpop.f32.mrb[0].mxu0
        %v1305 = vadd.f32 0.0, %v1304
        %1306 = vdwg.mxu0
        %v1307 = vld [vmem:[%s1] sm:$0xff]
        %v1308 = vld [vmem:[%s1 + $0x8] sm:$0xff]
        %v1309 = vld [vmem:[%s1 + $0x10] sm:$0xff]
        %v1310 = vld [vmem:[%s1 + $0x18] sm:$0xff]
        %v1311 = vld [vmem:[%s1 + $0x20] sm:$0xff]
        %v1312 = vld [vmem:[%s1 + $0x28] sm:$0xff]
        %v1313 = vld [vmem:[%s1 + $0x30] sm:$0xff]
        %v1314 = vld [vmem:[%s1 + $0x38] sm:$0xff]
        %v1315 = vld [vmem:[%s1 + $0x40] sm:$0xff]
        %v1316 = vld [vmem:[%s1 + $0x48] sm:$0xff]
        %v1317 = vld [vmem:[%s1 + $0x50] sm:$0xff]
        %v1318 = vld [vmem:[%s1 + $0x58] sm:$0xff]
        %v1319 = vld [vmem:[%s1 + $0x60] sm:$0xff]
        %v1320 = vld [vmem:[%s1 + $0x68] sm:$0xff]
        %v1321 = vld [vmem:[%s1 + $0x70] sm:$0xff]
        %v1322 = vld [vmem:[%s1 + $0x78] sm:$0xff]
        %v1323 = vld [vmem:[%s1 + $0x80] sm:$0xff]
        %v1324 = vld [vmem:[%s1 + $0x88] sm:$0xff]
        %v1325 = vld [vmem:[%s1 + $0x90] sm:$0xff]
        %v1326 = vld [vmem:[%s1 + $0x98] sm:$0xff]
        %v1327 = vld [vmem:[%s1 + $0xa0] sm:$0xff]
        %v1328 = vld [vmem:[%s1 + $0xa8] sm:$0xff]
        %v1329 = vld [vmem:[%s1 + $0xb0] sm:$0xff]
        %v1330 = vld [vmem:[%s1 + $0xb8] sm:$0xff]
        %v1331 = vld [vmem:[%s1 + $0xc0] sm:$0xff]
        %v1332 = vld [vmem:[%s1 + $0xc8] sm:$0xff]
        %v1333 = vld [vmem:[%s1 + $0xd0] sm:$0xff]
        %v1334 = vld [vmem:[%s1 + $0xd8] sm:$0xff]
        %v1335 = vld [vmem:[%s1 + $0xe0] sm:$0xff]
        %v1336 = vld [vmem:[%s1 + $0xe8] sm:$0xff]
        %v1337 = vld [vmem:[%s1 + $0xf0] sm:$0xff]
        %v1338 = vld [vmem:[%s1 + $0xf8] sm:$0xff]
        %v1339 = vld [vmem:[%s1 + $0x100] sm:$0xff]
        %v1340 = vld [vmem:[%s1 + $0x108] sm:$0xff]
        %v1341 = vld [vmem:[%s1 + $0x110] sm:$0xff]
        %v1342 = vld [vmem:[%s1 + $0x118] sm:$0xff]
        %v1343 = vld [vmem:[%s1 + $0x120] sm:$0xff]
        %v1344 = vld [vmem:[%s1 + $0x128] sm:$0xff]
        %v1345 = vld [vmem:[%s1 + $0x130] sm:$0xff]
        %v1346 = vld [vmem:[%s1 + $0x138] sm:$0xff]
        %v1347 = vld [vmem:[%s1 + $0x140] sm:$0xff]
        %v1348 = vld [vmem:[%s1 + $0x148] sm:$0xff]
        %v1349 = vld [vmem:[%s1 + $0x150] sm:$0xff]
        %v1350 = vld [vmem:[%s1 + $0x158] sm:$0xff]
        %v1351 = vld [vmem:[%s1 + $0x160] sm:$0xff]
        %v1352 = vld [vmem:[%s1 + $0x168] sm:$0xff]
        %v1353 = vld [vmem:[%s1 + $0x170] sm:$0xff]
        %v1354 = vld [vmem:[%s1 + $0x178] sm:$0xff]
        %v1355 = vld [vmem:[%s1 + $0x180] sm:$0xff]
        %v1356 = vld [vmem:[%s1 + $0x188] sm:$0xff]
        %v1357 = vld [vmem:[%s1 + $0x190] sm:$0xff]
        %v1358 = vld [vmem:[%s1 + $0x198] sm:$0xff]
        %v1359 = vld [vmem:[%s1 + $0x1a0] sm:$0xff]
        %v1360 = vld [vmem:[%s1 + $0x1a8] sm:$0xff]
        %v1361 = vld [vmem:[%s1 + $0x1b0] sm:$0xff]
        %v1362 = vld [vmem:[%s1 + $0x1b8] sm:$0xff]
        %v1363 = vld [vmem:[%s1 + $0x1c0] sm:$0xff]
        %v1364 = vld [vmem:[%s1 + $0x1c8] sm:$0xff]
        %v1365 = vld [vmem:[%s1 + $0x1d0] sm:$0xff]
        %v1366 = vld [vmem:[%s1 + $0x1d8] sm:$0xff]
        %v1367 = vld [vmem:[%s1 + $0x1e0] sm:$0xff]
        %v1368 = vld [vmem:[%s1 + $0x1e8] sm:$0xff]
        %v1369 = vld [vmem:[%s1 + $0x1f0] sm:$0xff]
        %v1370 = vld [vmem:[%s1 + $0x1f8] sm:$0xff]
        %v1371 = vld [vmem:[%s1 + $0x200] sm:$0xff]
        %v1372 = vld [vmem:[%s1 + $0x208] sm:$0xff]
        %v1373 = vld [vmem:[%s1 + $0x210] sm:$0xff]
        %v1374 = vld [vmem:[%s1 + $0x218] sm:$0xff]
        %v1375 = vld [vmem:[%s1 + $0x220] sm:$0xff]
        %v1376 = vld [vmem:[%s1 + $0x228] sm:$0xff]
        %v1377 = vld [vmem:[%s1 + $0x230] sm:$0xff]
        %v1378 = vld [vmem:[%s1 + $0x238] sm:$0xff]
        %v1379 = vld [vmem:[%s1 + $0x240] sm:$0xff]
        %v1380 = vld [vmem:[%s1 + $0x248] sm:$0xff]
        %v1381 = vld [vmem:[%s1 + $0x250] sm:$0xff]
        %v1382 = vld [vmem:[%s1 + $0x258] sm:$0xff]
        %v1383 = vld [vmem:[%s1 + $0x260] sm:$0xff]
        %v1384 = vld [vmem:[%s1 + $0x268] sm:$0xff]
        %v1385 = vld [vmem:[%s1 + $0x270] sm:$0xff]
        %v1386 = vld [vmem:[%s1 + $0x278] sm:$0xff]
        %v1387 = vld [vmem:[%s1 + $0x280] sm:$0xff]
        %v1388 = vld [vmem:[%s1 + $0x288] sm:$0xff]
        %v1389 = vld [vmem:[%s1 + $0x290] sm:$0xff]
        %v1390 = vld [vmem:[%s1 + $0x298] sm:$0xff]
        %v1391 = vld [vmem:[%s1 + $0x2a0] sm:$0xff]
        %v1392 = vld [vmem:[%s1 + $0x2a8] sm:$0xff]
        %v1393 = vld [vmem:[%s1 + $0x2b0] sm:$0xff]
        %v1394 = vld [vmem:[%s1 + $0x2b8] sm:$0xff]
        %v1395 = vld [vmem:[%s1 + $0x2c0] sm:$0xff]
        %v1396 = vld [vmem:[%s1 + $0x2c8] sm:$0xff]
        %v1397 = vld [vmem:[%s1 + $0x2d0] sm:$0xff]
        %v1398 = vld [vmem:[%s1 + $0x2d8] sm:$0xff]
        %v1399 = vld [vmem:[%s1 + $0x2e0] sm:$0xff]
        %v1400 = vld [vmem:[%s1 + $0x2e8] sm:$0xff]
        %v1401 = vld [vmem:[%s1 + $0x2f0] sm:$0xff]
        %v1402 = vld [vmem:[%s1 + $0x2f8] sm:$0xff]
        %v1403 = vld [vmem:[%s1 + $0x300] sm:$0xff]
        %v1404 = vld [vmem:[%s1 + $0x308] sm:$0xff]
        %v1405 = vld [vmem:[%s1 + $0x310] sm:$0xff]
        %v1406 = vld [vmem:[%s1 + $0x318] sm:$0xff]
        %v1407 = vld [vmem:[%s1 + $0x320] sm:$0xff]
        %v1408 = vld [vmem:[%s1 + $0x328] sm:$0xff]
        %v1409 = vld [vmem:[%s1 + $0x330] sm:$0xff]
        %v1410 = vld [vmem:[%s1 + $0x338] sm:$0xff]
        %v1411 = vld [vmem:[%s1 + $0x340] sm:$0xff]
        %v1412 = vld [vmem:[%s1 + $0x348] sm:$0xff]
        %v1413 = vld [vmem:[%s1 + $0x350] sm:$0xff]
        %v1414 = vld [vmem:[%s1 + $0x358] sm:$0xff]
        %v1415 = vld [vmem:[%s1 + $0x360] sm:$0xff]
        %v1416 = vld [vmem:[%s1 + $0x368] sm:$0xff]
        %v1417 = vld [vmem:[%s1 + $0x370] sm:$0xff]
        %v1418 = vld [vmem:[%s1 + $0x378] sm:$0xff]
        %v1419 = vld [vmem:[%s1 + $0x380] sm:$0xff]
        %v1420 = vld [vmem:[%s1 + $0x388] sm:$0xff]
        %v1421 = vld [vmem:[%s1 + $0x390] sm:$0xff]
        %v1422 = vld [vmem:[%s1 + $0x398] sm:$0xff]
        %v1423 = vld [vmem:[%s1 + $0x3a0] sm:$0xff]
        %v1424 = vld [vmem:[%s1 + $0x3a8] sm:$0xff]
        %v1425 = vld [vmem:[%s1 + $0x3b0] sm:$0xff]
        %v1426 = vld [vmem:[%s1 + $0x3b8] sm:$0xff]
        %v1427 = vld [vmem:[%s1 + $0x3c0] sm:$0xff]
        %v1428 = vld [vmem:[%s1 + $0x3c8] sm:$0xff]
        %v1429 = vld [vmem:[%s1 + $0x3d0] sm:$0xff]
        %v1430 = vld [vmem:[%s1 + $0x3d8] sm:$0xff]
        %v1431 = vld [vmem:[%s1 + $0x3e0] sm:$0xff]
        %v1432 = vld [vmem:[%s1 + $0x3e8] sm:$0xff]
        %v1433 = vld [vmem:[%s1 + $0x3f0] sm:$0xff]
        %v1434 = vld [vmem:[%s1 + $0x3f8] sm:$0xff]
        %v1435 = vld [vmem:[%s1 + $0x400] sm:$0xff]
        %v1436 = vld [vmem:[%s1 + $0x408] sm:$0xff]
        %v1437 = vld [vmem:[%s1 + $0x410] sm:$0xff]
        %v1438 = vld [vmem:[%s1 + $0x418] sm:$0xff]
        %v1439 = vld [vmem:[%s1 + $0x420] sm:$0xff]
        %v1440 = vld [vmem:[%s1 + $0x428] sm:$0xff]
        %v1441 = vld [vmem:[%s1 + $0x430] sm:$0xff]
        %v1442 = vld [vmem:[%s1 + $0x438] sm:$0xff]
        %v1443 = vld [vmem:[%s1 + $0x440] sm:$0xff]
        %v1444 = vld [vmem:[%s1 + $0x448] sm:$0xff]
        %v1445 = vld [vmem:[%s1 + $0x450] sm:$0xff]
        %v1446 = vld [vmem:[%s1 + $0x458] sm:$0xff]
        %v1447 = vld [vmem:[%s1 + $0x460] sm:$0xff]
        %v1448 = vld [vmem:[%s1 + $0x468] sm:$0xff]
        %v1449 = vld [vmem:[%s1 + $0x470] sm:$0xff]
        %v1450 = vld [vmem:[%s1 + $0x478] sm:$0xff]
        %v1451 = vld [vmem:[%s1 + $0x480] sm:$0xff]
        %v1452 = vld [vmem:[%s1 + $0x488] sm:$0xff]
        %v1453 = vld [vmem:[%s1 + $0x490] sm:$0xff]
        %v1454 = vld [vmem:[%s1 + $0x498] sm:$0xff]
        %v1455 = vld [vmem:[%s1 + $0x4a0] sm:$0xff]
        %v1456 = vld [vmem:[%s1 + $0x4a8] sm:$0xff]
        %v1457 = vld [vmem:[%s1 + $0x4b0] sm:$0xff]
        %v1458 = vld [vmem:[%s1 + $0x4b8] sm:$0xff]
        %v1459 = vld [vmem:[%s1 + $0x4c0] sm:$0xff]
        %v1460 = vld [vmem:[%s1 + $0x4c8] sm:$0xff]
        %v1461 = vld [vmem:[%s1 + $0x4d0] sm:$0xff]
        %v1462 = vld [vmem:[%s1 + $0x4d8] sm:$0xff]
        %v1463 = vld [vmem:[%s1 + $0x4e0] sm:$0xff]
        %v1464 = vld [vmem:[%s1 + $0x4e8] sm:$0xff]
        %v1465 = vld [vmem:[%s1 + $0x4f0] sm:$0xff]
        %v1466 = vld [vmem:[%s1 + $0x4f8] sm:$0xff]
        %v1467 = vld [vmem:[%s1 + $0x500] sm:$0xff]
        %v1468 = vld [vmem:[%s1 + $0x508] sm:$0xff]
        %v1469 = vld [vmem:[%s1 + $0x510] sm:$0xff]
        %v1470 = vld [vmem:[%s1 + $0x518] sm:$0xff]
        %v1471 = vld [vmem:[%s1 + $0x520] sm:$0xff]
        %v1472 = vld [vmem:[%s1 + $0x528] sm:$0xff]
        %v1473 = vld [vmem:[%s1 + $0x530] sm:$0xff]
        %v1474 = vld [vmem:[%s1 + $0x538] sm:$0xff]
        %v1475 = vld [vmem:[%s1 + $0x540] sm:$0xff]
        %v1476 = vld [vmem:[%s1 + $0x548] sm:$0xff]
        %v1477 = vld [vmem:[%s1 + $0x550] sm:$0xff]
        %v1478 = vld [vmem:[%s1 + $0x558] sm:$0xff]
        %v1479 = vld [vmem:[%s1 + $0x560] sm:$0xff]
        %v1480 = vld [vmem:[%s1 + $0x568] sm:$0xff]
        %v1481 = vld [vmem:[%s1 + $0x570] sm:$0xff]
        %v1482 = vld [vmem:[%s1 + $0x578] sm:$0xff]
        %v1483 = vld [vmem:[%s1 + $0x580] sm:$0xff]
        %v1484 = vld [vmem:[%s1 + $0x588] sm:$0xff]
        %v1485 = vld [vmem:[%s1 + $0x590] sm:$0xff]
        %v1486 = vld [vmem:[%s1 + $0x598] sm:$0xff]
        %v1487 = vld [vmem:[%s1 + $0x5a0] sm:$0xff]
        %v1488 = vld [vmem:[%s1 + $0x5a8] sm:$0xff]
        %v1489 = vld [vmem:[%s1 + $0x5b0] sm:$0xff]
        %v1490 = vld [vmem:[%s1 + $0x5b8] sm:$0xff]
        %v1491 = vld [vmem:[%s1 + $0x5c0] sm:$0xff]
        %v1492 = vld [vmem:[%s1 + $0x5c8] sm:$0xff]
        %v1493 = vld [vmem:[%s1 + $0x5d0] sm:$0xff]
        %v1494 = vld [vmem:[%s1 + $0x5d8] sm:$0xff]
        %v1495 = vld [vmem:[%s1 + $0x5e0] sm:$0xff]
        %v1496 = vld [vmem:[%s1 + $0x5e8] sm:$0xff]
        %v1497 = vld [vmem:[%s1 + $0x5f0] sm:$0xff]
        %v1498 = vld [vmem:[%s1 + $0x5f8] sm:$0xff]
        %v1499 = vld [vmem:[%s1 + $0x600] sm:$0xff]
        %v1500 = vld [vmem:[%s1 + $0x608] sm:$0xff]
        %v1501 = vld [vmem:[%s1 + $0x610] sm:$0xff]
        %v1502 = vld [vmem:[%s1 + $0x618] sm:$0xff]
        %v1503 = vld [vmem:[%s1 + $0x620] sm:$0xff]
        %v1504 = vld [vmem:[%s1 + $0x628] sm:$0xff]
        %v1505 = vld [vmem:[%s1 + $0x630] sm:$0xff]
        %v1506 = vld [vmem:[%s1 + $0x638] sm:$0xff]
        %v1507 = vld [vmem:[%s1 + $0x640] sm:$0xff]
        %v1508 = vld [vmem:[%s1 + $0x648] sm:$0xff]
        %v1509 = vld [vmem:[%s1 + $0x650] sm:$0xff]
        %v1510 = vld [vmem:[%s1 + $0x658] sm:$0xff]
        %v1511 = vld [vmem:[%s1 + $0x660] sm:$0xff]
        %v1512 = vld [vmem:[%s1 + $0x668] sm:$0xff]
        %v1513 = vld [vmem:[%s1 + $0x670] sm:$0xff]
        %v1514 = vld [vmem:[%s1 + $0x678] sm:$0xff]
        %v1515 = vld [vmem:[%s1 + $0x680] sm:$0xff]
        %v1516 = vld [vmem:[%s1 + $0x688] sm:$0xff]
        %v1517 = vld [vmem:[%s1 + $0x690] sm:$0xff]
        %v1518 = vld [vmem:[%s1 + $0x698] sm:$0xff]
        %v1519 = vld [vmem:[%s1 + $0x6a0] sm:$0xff]
        %v1520 = vld [vmem:[%s1 + $0x6a8] sm:$0xff]
        %v1521 = vld [vmem:[%s1 + $0x6b0] sm:$0xff]
        %v1522 = vld [vmem:[%s1 + $0x6b8] sm:$0xff]
        %v1523 = vld [vmem:[%s1 + $0x6c0] sm:$0xff]
        %v1524 = vld [vmem:[%s1 + $0x6c8] sm:$0xff]
        %v1525 = vld [vmem:[%s1 + $0x6d0] sm:$0xff]
        %v1526 = vld [vmem:[%s1 + $0x6d8] sm:$0xff]
        %v1527 = vld [vmem:[%s1 + $0x6e0] sm:$0xff]
        %v1528 = vld [vmem:[%s1 + $0x6e8] sm:$0xff]
        %v1529 = vld [vmem:[%s1 + $0x6f0] sm:$0xff]
        %v1530 = vld [vmem:[%s1 + $0x6f8] sm:$0xff]
        %v1531 = vld [vmem:[%s1 + $0x700] sm:$0xff]
        %v1532 = vld [vmem:[%s1 + $0x708] sm:$0xff]
        %v1533 = vld [vmem:[%s1 + $0x710] sm:$0xff]
        %v1534 = vld [vmem:[%s1 + $0x718] sm:$0xff]
        %v1535 = vld [vmem:[%s1 + $0x720] sm:$0xff]
        %v1536 = vld [vmem:[%s1 + $0x728] sm:$0xff]
        %v1537 = vld [vmem:[%s1 + $0x730] sm:$0xff]
        %v1538 = vld [vmem:[%s1 + $0x738] sm:$0xff]
        %v1539 = vld [vmem:[%s1 + $0x740] sm:$0xff]
        %v1540 = vld [vmem:[%s1 + $0x748] sm:$0xff]
        %v1541 = vld [vmem:[%s1 + $0x750] sm:$0xff]
        %v1542 = vld [vmem:[%s1 + $0x758] sm:$0xff]
        %v1543 = vld [vmem:[%s1 + $0x760] sm:$0xff]
        %v1544 = vld [vmem:[%s1 + $0x768] sm:$0xff]
        %v1545 = vld [vmem:[%s1 + $0x770] sm:$0xff]
        %v1546 = vld [vmem:[%s1 + $0x778] sm:$0xff]
        %v1547 = vld [vmem:[%s1 + $0x780] sm:$0xff]
        %v1548 = vld [vmem:[%s1 + $0x788] sm:$0xff]
        %v1549 = vld [vmem:[%s1 + $0x790] sm:$0xff]
        %v1550 = vld [vmem:[%s1 + $0x798] sm:$0xff]
        %v1551 = vld [vmem:[%s1 + $0x7a0] sm:$0xff]
        %v1552 = vld [vmem:[%s1 + $0x7a8] sm:$0xff]
        %v1553 = vld [vmem:[%s1 + $0x7b0] sm:$0xff]
        %v1554 = vld [vmem:[%s1 + $0x7b8] sm:$0xff]
        %v1555 = vld [vmem:[%s1 + $0x7c0] sm:$0xff]
        %v1556 = vld [vmem:[%s1 + $0x7c8] sm:$0xff]
        %v1557 = vld [vmem:[%s1 + $0x7d0] sm:$0xff]
        %v1558 = vld [vmem:[%s1 + $0x7d8] sm:$0xff]
        %v1559 = vld [vmem:[%s1 + $0x7e0] sm:$0xff]
        %v1560 = vld [vmem:[%s1 + $0x7e8] sm:$0xff]
        %v1561 = vld [vmem:[%s1 + $0x7f0] sm:$0xff]
        %v1562 = vld [vmem:[%s1 + $0x7f8] sm:$0xff]
        %v1563 = vld [vmem:[%s1 + $0x800] sm:$0xff]
        %v1564 = vld [vmem:[%s1 + $0x808] sm:$0xff]
        %v1565 = vld [vmem:[%s1 + $0x810] sm:$0xff]
        %v1566 = vld [vmem:[%s1 + $0x818] sm:$0xff]
        %v1567 = vld [vmem:[%s1 + $0x820] sm:$0xff]
        %v1568 = vld [vmem:[%s1 + $0x828] sm:$0xff]
        %v1569 = vld [vmem:[%s1 + $0x830] sm:$0xff]
        %v1570 = vld [vmem:[%s1 + $0x838] sm:$0xff]
        %v1571 = vld [vmem:[%s1 + $0x840] sm:$0xff]
        %v1572 = vld [vmem:[%s1 + $0x848] sm:$0xff]
        %v1573 = vld [vmem:[%s1 + $0x850] sm:$0xff]
        %v1574 = vld [vmem:[%s1 + $0x858] sm:$0xff]
        %v1575 = vld [vmem:[%s1 + $0x860] sm:$0xff]
        %v1576 = vld [vmem:[%s1 + $0x868] sm:$0xff]
        %v1577 = vld [vmem:[%s1 + $0x870] sm:$0xff]
        %v1578 = vld [vmem:[%s1 + $0x878] sm:$0xff]
        %v1579 = vld [vmem:[%s1 + $0x880] sm:$0xff]
        %v1580 = vld [vmem:[%s1 + $0x888] sm:$0xff]
        %v1581 = vld [vmem:[%s1 + $0x890] sm:$0xff]
        %v1582 = vld [vmem:[%s1 + $0x898] sm:$0xff]
        %v1583 = vld [vmem:[%s1 + $0x8a0] sm:$0xff]
        %v1584 = vld [vmem:[%s1 + $0x8a8] sm:$0xff]
        %v1585 = vld [vmem:[%s1 + $0x8b0] sm:$0xff]
        %v1586 = vld [vmem:[%s1 + $0x8b8] sm:$0xff]
        %v1587 = vld [vmem:[%s1 + $0x8c0] sm:$0xff]
        %v1588 = vld [vmem:[%s1 + $0x8c8] sm:$0xff]
        %v1589 = vld [vmem:[%s1 + $0x8d0] sm:$0xff]
        %v1590 = vld [vmem:[%s1 + $0x8d8] sm:$0xff]
        %v1591 = vld [vmem:[%s1 + $0x8e0] sm:$0xff]
        %v1592 = vld [vmem:[%s1 + $0x8e8] sm:$0xff]
        %v1593 = vld [vmem:[%s1 + $0x8f0] sm:$0xff]
        %v1594 = vld [vmem:[%s1 + $0x8f8] sm:$0xff]
        %v1595 = vld [vmem:[%s5] sm:$0xf]
        %1597 = vset.pattern.permute.xlu0 0
        %1598 = vperm.xlu0 %1597, %v1595
        %v1599 = vpop.permute.xlu0 %1598
        %1601 = vmatprep.subr.mxu0 0.0
        %1602 = vmatpush1.msra.mxu0 %v1307
        %1603 = vmatprep.subr.mxu0 0.0
        %1604 = vmatpush1.msra.mxu0 %v1308
        %1605 = vmatprep.subr.mxu0 0.0
        %1606 = vmatpush1.msra.mxu0 %v1309
        %1607 = vmatprep.subr.mxu0 0.0
        %1608 = vmatpush1.msra.mxu0 %v1310
        %1609 = vmatprep.subr.mxu0 0.0
        %1610 = vmatpush1.msra.mxu0 %v1311
        %1611 = vmatprep.subr.mxu0 0.0
        %1612 = vmatpush1.msra.mxu0 %v1312
        %1613 = vmatprep.subr.mxu0 0.0
        %1614 = vmatpush1.msra.mxu0 %v1313
        %1615 = vmatprep.subr.mxu0 0.0
        %1616 = vmatpush1.msra.mxu0 %v1314
        %1617 = vmatprep.subr.mxu0 0.0
        %1618 = vmatpush1.msra.mxu0 %v1315
        %1619 = vmatprep.subr.mxu0 0.0
        %1620 = vmatpush1.msra.mxu0 %v1316
        %1621 = vmatprep.subr.mxu0 0.0
        %1622 = vmatpush1.msra.mxu0 %v1317
        %1623 = vmatprep.subr.mxu0 0.0
        %1624 = vmatpush1.msra.mxu0 %v1318
        %1625 = vmatprep.subr.mxu0 0.0
        %1626 = vmatpush1.msra.mxu0 %v1319
        %1627 = vmatprep.subr.mxu0 0.0
        %1628 = vmatpush1.msra.mxu0 %v1320
        %1629 = vmatprep.subr.mxu0 0.0
        %1630 = vmatpush1.msra.mxu0 %v1321
        %1631 = vmatprep.subr.mxu0 0.0
        %1632 = vmatpush1.msra.mxu0 %v1322
        %1633 = vmatprep.subr.mxu0 0.0
        %1634 = vmatpush1.msra.mxu0 %v1323
        %1635 = vmatprep.subr.mxu0 0.0
        %1636 = vmatpush1.msra.mxu0 %v1324
        %1637 = vmatprep.subr.mxu0 0.0
        %1638 = vmatpush1.msra.mxu0 %v1325
        %1639 = vmatprep.subr.mxu0 0.0
        %1640 = vmatpush1.msra.mxu0 %v1326
        %1641 = vmatprep.subr.mxu0 0.0
        %1642 = vmatpush1.msra.mxu0 %v1327
        %1643 = vmatprep.subr.mxu0 0.0
        %1644 = vmatpush1.msra.mxu0 %v1328
        %1645 = vmatprep.subr.mxu0 0.0
        %1646 = vmatpush1.msra.mxu0 %v1329
        %1647 = vmatprep.subr.mxu0 0.0
        %1648 = vmatpush1.msra.mxu0 %v1330
        %1649 = vmatprep.subr.mxu0 0.0
        %1650 = vmatpush1.msra.mxu0 %v1331
        %1651 = vmatprep.subr.mxu0 0.0
        %1652 = vmatpush1.msra.mxu0 %v1332
        %1653 = vmatprep.subr.mxu0 0.0
        %1654 = vmatpush1.msra.mxu0 %v1333
        %1655 = vmatprep.subr.mxu0 0.0
        %1656 = vmatpush1.msra.mxu0 %v1334
        %1657 = vmatprep.subr.mxu0 0.0
        %1658 = vmatpush1.msra.mxu0 %v1335
        %1659 = vmatprep.subr.mxu0 0.0
        %1660 = vmatpush1.msra.mxu0 %v1336
        %1661 = vmatprep.subr.mxu0 0.0
        %1662 = vmatpush1.msra.mxu0 %v1337
        %1663 = vmatprep.subr.mxu0 0.0
        %1664 = vmatpush1.msra.mxu0 %v1338
        %1665 = vmatprep.mubr.f32.mxu0 %v697
        %1666 = vmatmul.mubr.f32.gmra.mrb[0].mxu0 %v695
        %v1667 = vpop.f32.mrb[0].mxu0
        %v1668 = vadd.f32 %v1599, %v1667
        %v1669 = vpop.f32.mrb[0].mxu0
        %1670 = vdwg.mxu0
        %1671 = vmatprep.subr.mxu0 0.0
        %1672 = vmatpush1.msra.mxu0 %v1339
        %1673 = vmatprep.subr.mxu0 0.0
        %1674 = vmatpush1.msra.mxu0 %v1340
        %1675 = vmatprep.subr.mxu0 0.0
        %1676 = vmatpush1.msra.mxu0 %v1341
        %1677 = vmatprep.subr.mxu0 0.0
        %1678 = vmatpush1.msra.mxu0 %v1342
        %1679 = vmatprep.subr.mxu0 0.0
        %1680 = vmatpush1.msra.mxu0 %v1343
        %1681 = vmatprep.subr.mxu0 0.0
        %1682 = vmatpush1.msra.mxu0 %v1344
        %1683 = vmatprep.subr.mxu0 0.0
        %1684 = vmatpush1.msra.mxu0 %v1345
        %1685 = vmatprep.subr.mxu0 0.0
        %1686 = vmatpush1.msra.mxu0 %v1346
        %1687 = vmatprep.subr.mxu0 0.0
        %1688 = vmatpush1.msra.mxu0 %v1347
        %1689 = vmatprep.subr.mxu0 0.0
        %1690 = vmatpush1.msra.mxu0 %v1348
        %1691 = vmatprep.subr.mxu0 0.0
        %1692 = vmatpush1.msra.mxu0 %v1349
        %1693 = vmatprep.subr.mxu0 0.0
        %1694 = vmatpush1.msra.mxu0 %v1350
        %1695 = vmatprep.subr.mxu0 0.0
        %1696 = vmatpush1.msra.mxu0 %v1351
        %1697 = vmatprep.subr.mxu0 0.0
        %1698 = vmatpush1.msra.mxu0 %v1352
        %1699 = vmatprep.subr.mxu0 0.0
        %1700 = vmatpush1.msra.mxu0 %v1353
        %1701 = vmatprep.subr.mxu0 0.0
        %1702 = vmatpush1.msra.mxu0 %v1354
        %1703 = vmatprep.subr.mxu0 0.0
        %1704 = vmatpush1.msra.mxu0 %v1355
        %1705 = vmatprep.subr.mxu0 0.0
        %1706 = vmatpush1.msra.mxu0 %v1356
        %1707 = vmatprep.subr.mxu0 0.0
        %1708 = vmatpush1.msra.mxu0 %v1357
        %1709 = vmatprep.subr.mxu0 0.0
        %1710 = vmatpush1.msra.mxu0 %v1358
        %1711 = vmatprep.subr.mxu0 0.0
        %1712 = vmatpush1.msra.mxu0 %v1359
        %1713 = vmatprep.subr.mxu0 0.0
        %1714 = vmatpush1.msra.mxu0 %v1360
        %1715 = vmatprep.subr.mxu0 0.0
        %1716 = vmatpush1.msra.mxu0 %v1361
        %1717 = vmatprep.subr.mxu0 0.0
        %1718 = vmatpush1.msra.mxu0 %v1362
        %1719 = vmatprep.subr.mxu0 0.0
        %1720 = vmatpush1.msra.mxu0 %v1363
        %1721 = vmatprep.subr.mxu0 0.0
        %1722 = vmatpush1.msra.mxu0 %v1364
        %1723 = vmatprep.subr.mxu0 0.0
        %1724 = vmatpush1.msra.mxu0 %v1365
        %1725 = vmatprep.subr.mxu0 0.0
        %1726 = vmatpush1.msra.mxu0 %v1366
        %1727 = vmatprep.subr.mxu0 0.0
        %1728 = vmatpush1.msra.mxu0 %v1367
        %1729 = vmatprep.subr.mxu0 0.0
        %1730 = vmatpush1.msra.mxu0 %v1368
        %1731 = vmatprep.subr.mxu0 0.0
        %1732 = vmatpush1.msra.mxu0 %v1369
        %1733 = vmatprep.subr.mxu0 0.0
        %1734 = vmatpush1.msra.mxu0 %v1370
        %1735 = vmatprep.mubr.f32.mxu0 %v773
        %1736 = vmatmul.mubr.f32.gmra.mrb[0].mxu0 %v771
        %v1737 = vpop.f32.mrb[0].mxu0
        %v1738 = vadd.f32 %v1668, %v1737
        %v1739 = vpop.f32.mrb[0].mxu0
        %1740 = vdwg.mxu0
        %1741 = vmatprep.subr.mxu0 0.0
        %1742 = vmatpush1.msra.mxu0 %v1371
        %1743 = vmatprep.subr.mxu0 0.0
        %1744 = vmatpush1.msra.mxu0 %v1372
        %1745 = vmatprep.subr.mxu0 0.0
        %1746 = vmatpush1.msra.mxu0 %v1373
        %1747 = vmatprep.subr.mxu0 0.0
        %1748 = vmatpush1.msra.mxu0 %v1374
        %1749 = vmatprep.subr.mxu0 0.0
        %1750 = vmatpush1.msra.mxu0 %v1375
        %1751 = vmatprep.subr.mxu0 0.0
        %1752 = vmatpush1.msra.mxu0 %v1376
        %1753 = vmatprep.subr.mxu0 0.0
        %1754 = vmatpush1.msra.mxu0 %v1377
        %1755 = vmatprep.subr.mxu0 0.0
        %1756 = vmatpush1.msra.mxu0 %v1378
        %1757 = vmatprep.subr.mxu0 0.0
        %1758 = vmatpush1.msra.mxu0 %v1379
        %1759 = vmatprep.subr.mxu0 0.0
        %1760 = vmatpush1.msra.mxu0 %v1380
        %1761 = vmatprep.subr.mxu0 0.0
        %1762 = vmatpush1.msra.mxu0 %v1381
        %1763 = vmatprep.subr.mxu0 0.0
        %1764 = vmatpush1.msra.mxu0 %v1382
        %1765 = vmatprep.subr.mxu0 0.0
        %1766 = vmatpush1.msra.mxu0 %v1383
        %1767 = vmatprep.subr.mxu0 0.0
        %1768 = vmatpush1.msra.mxu0 %v1384
        %1769 = vmatprep.subr.mxu0 0.0
        %1770 = vmatpush1.msra.mxu0 %v1385
        %1771 = vmatprep.subr.mxu0 0.0
        %1772 = vmatpush1.msra.mxu0 %v1386
        %1773 = vmatprep.subr.mxu0 0.0
        %1774 = vmatpush1.msra.mxu0 %v1387
        %1775 = vmatprep.subr.mxu0 0.0
        %1776 = vmatpush1.msra.mxu0 %v1388
        %1777 = vmatprep.subr.mxu0 0.0
        %1778 = vmatpush1.msra.mxu0 %v1389
        %1779 = vmatprep.subr.mxu0 0.0
        %1780 = vmatpush1.msra.mxu0 %v1390
        %1781 = vmatprep.subr.mxu0 0.0
        %1782 = vmatpush1.msra.mxu0 %v1391
        %1783 = vmatprep.subr.mxu0 0.0
        %1784 = vmatpush1.msra.mxu0 %v1392
        %1785 = vmatprep.subr.mxu0 0.0
        %1786 = vmatpush1.msra.mxu0 %v1393
        %1787 = vmatprep.subr.mxu0 0.0
        %1788 = vmatpush1.msra.mxu0 %v1394
        %1789 = vmatprep.subr.mxu0 0.0
        %1790 = vmatpush1.msra.mxu0 %v1395
        %1791 = vmatprep.subr.mxu0 0.0
        %1792 = vmatpush1.msra.mxu0 %v1396
        %1793 = vmatprep.subr.mxu0 0.0
        %1794 = vmatpush1.msra.mxu0 %v1397
        %1795 = vmatprep.subr.mxu0 0.0
        %1796 = vmatpush1.msra.mxu0 %v1398
        %1797 = vmatprep.subr.mxu0 0.0
        %1798 = vmatpush1.msra.mxu0 %v1399
        %1799 = vmatprep.subr.mxu0 0.0
        %1800 = vmatpush1.msra.mxu0 %v1400
        %1801 = vmatprep.subr.mxu0 0.0
        %1802 = vmatpush1.msra.mxu0 %v1401
        %1803 = vmatprep.subr.mxu0 0.0
        %1804 = vmatpush1.msra.mxu0 %v1402
        %1805 = vmatprep.mubr.f32.mxu0 %v849
        %1806 = vmatmul.mubr.f32.gmra.mrb[0].mxu0 %v847
        %v1807 = vpop.f32.mrb[0].mxu0
        %v1808 = vadd.f32 %v1738, %v1807
        %v1809 = vpop.f32.mrb[0].mxu0
        %1810 = vdwg.mxu0
        %1811 = vmatprep.subr.mxu0 0.0
        %1812 = vmatpush1.msra.mxu0 %v1403
        %1813 = vmatprep.subr.mxu0 0.0
        %1814 = vmatpush1.msra.mxu0 %v1404
        %1815 = vmatprep.subr.mxu0 0.0
        %1816 = vmatpush1.msra.mxu0 %v1405
        %1817 = vmatprep.subr.mxu0 0.0
        %1818 = vmatpush1.msra.mxu0 %v1406
        %1819 = vmatprep.subr.mxu0 0.0
        %1820 = vmatpush1.msra.mxu0 %v1407
        %1821 = vmatprep.subr.mxu0 0.0
        %1822 = vmatpush1.msra.mxu0 %v1408
        %1823 = vmatprep.subr.mxu0 0.0
        %1824 = vmatpush1.msra.mxu0 %v1409
        %1825 = vmatprep.subr.mxu0 0.0
        %1826 = vmatpush1.msra.mxu0 %v1410
        %1827 = vmatprep.subr.mxu0 0.0
        %1828 = vmatpush1.msra.mxu0 %v1411
        %1829 = vmatprep.subr.mxu0 0.0
        %1830 = vmatpush1.msra.mxu0 %v1412
        %1831 = vmatprep.subr.mxu0 0.0
        %1832 = vmatpush1.msra.mxu0 %v1413
        %1833 = vmatprep.subr.mxu0 0.0
        %1834 = vmatpush1.msra.mxu0 %v1414
        %1835 = vmatprep.subr.mxu0 0.0
        %1836 = vmatpush1.msra.mxu0 %v1415
        %1837 = vmatprep.subr.mxu0 0.0
        %1838 = vmatpush1.msra.mxu0 %v1416
        %1839 = vmatprep.subr.mxu0 0.0
        %1840 = vmatpush1.msra.mxu0 %v1417
        %1841 = vmatprep.subr.mxu0 0.0
        %1842 = vmatpush1.msra.mxu0 %v1418
        %1843 = vmatprep.subr.mxu0 0.0
        %1844 = vmatpush1.msra.mxu0 %v1419
        %1845 = vmatprep.subr.mxu0 0.0
        %1846 = vmatpush1.msra.mxu0 %v1420
        %1847 = vmatprep.subr.mxu0 0.0
        %1848 = vmatpush1.msra.mxu0 %v1421
        %1849 = vmatprep.subr.mxu0 0.0
        %1850 = vmatpush1.msra.mxu0 %v1422
        %1851 = vmatprep.subr.mxu0 0.0
        %1852 = vmatpush1.msra.mxu0 %v1423
        %1853 = vmatprep.subr.mxu0 0.0
        %1854 = vmatpush1.msra.mxu0 %v1424
        %1855 = vmatprep.subr.mxu0 0.0
        %1856 = vmatpush1.msra.mxu0 %v1425
        %1857 = vmatprep.subr.mxu0 0.0
        %1858 = vmatpush1.msra.mxu0 %v1426
        %1859 = vmatprep.subr.mxu0 0.0
        %1860 = vmatpush1.msra.mxu0 %v1427
        %1861 = vmatprep.subr.mxu0 0.0
        %1862 = vmatpush1.msra.mxu0 %v1428
        %1863 = vmatprep.subr.mxu0 0.0
        %1864 = vmatpush1.msra.mxu0 %v1429
        %1865 = vmatprep.subr.mxu0 0.0
        %1866 = vmatpush1.msra.mxu0 %v1430
        %1867 = vmatprep.subr.mxu0 0.0
        %1868 = vmatpush1.msra.mxu0 %v1431
        %1869 = vmatprep.subr.mxu0 0.0
        %1870 = vmatpush1.msra.mxu0 %v1432
        %1871 = vmatprep.subr.mxu0 0.0
        %1872 = vmatpush1.msra.mxu0 %v1433
        %1873 = vmatprep.subr.mxu0 0.0
        %1874 = vmatpush1.msra.mxu0 %v1434
        %1875 = vmatprep.mubr.f32.mxu0 %v925
        %1876 = vmatmul.mubr.f32.gmra.mrb[0].mxu0 %v923
        %v1877 = vpop.f32.mrb[0].mxu0
        %v1878 = vadd.f32 %v1808, %v1877
        %v1879 = vpop.f32.mrb[0].mxu0
        %1880 = vdwg.mxu0
        %1881 = vmatprep.subr.mxu0 0.0
        %1882 = vmatpush1.msra.mxu0 %v1435
        %1883 = vmatprep.subr.mxu0 0.0
        %1884 = vmatpush1.msra.mxu0 %v1436
        %1885 = vmatprep.subr.mxu0 0.0
        %1886 = vmatpush1.msra.mxu0 %v1437
        %1887 = vmatprep.subr.mxu0 0.0
        %1888 = vmatpush1.msra.mxu0 %v1438
        %1889 = vmatprep.subr.mxu0 0.0
        %1890 = vmatpush1.msra.mxu0 %v1439
        %1891 = vmatprep.subr.mxu0 0.0
        %1892 = vmatpush1.msra.mxu0 %v1440
        %1893 = vmatprep.subr.mxu0 0.0
        %1894 = vmatpush1.msra.mxu0 %v1441
        %1895 = vmatprep.subr.mxu0 0.0
        %1896 = vmatpush1.msra.mxu0 %v1442
        %1897 = vmatprep.subr.mxu0 0.0
        %1898 = vmatpush1.msra.mxu0 %v1443
        %1899 = vmatprep.subr.mxu0 0.0
        %1900 = vmatpush1.msra.mxu0 %v1444
        %1901 = vmatprep.subr.mxu0 0.0
        %1902 = vmatpush1.msra.mxu0 %v1445
        %1903 = vmatprep.subr.mxu0 0.0
        %1904 = vmatpush1.msra.mxu0 %v1446
        %1905 = vmatprep.subr.mxu0 0.0
        %1906 = vmatpush1.msra.mxu0 %v1447
        %1907 = vmatprep.subr.mxu0 0.0
        %1908 = vmatpush1.msra.mxu0 %v1448
        %1909 = vmatprep.subr.mxu0 0.0
        %1910 = vmatpush1.msra.mxu0 %v1449
        %1911 = vmatprep.subr.mxu0 0.0
        %1912 = vmatpush1.msra.mxu0 %v1450
        %1913 = vmatprep.subr.mxu0 0.0
        %1914 = vmatpush1.msra.mxu0 %v1451
        %1915 = vmatprep.subr.mxu0 0.0
        %1916 = vmatpush1.msra.mxu0 %v1452
        %1917 = vmatprep.subr.mxu0 0.0
        %1918 = vmatpush1.msra.mxu0 %v1453
        %1919 = vmatprep.subr.mxu0 0.0
        %1920 = vmatpush1.msra.mxu0 %v1454
        %1921 = vmatprep.subr.mxu0 0.0
        %1922 = vmatpush1.msra.mxu0 %v1455
        %1923 = vmatprep.subr.mxu0 0.0
        %1924 = vmatpush1.msra.mxu0 %v1456
        %1925 = vmatprep.subr.mxu0 0.0
        %1926 = vmatpush1.msra.mxu0 %v1457
        %1927 = vmatprep.subr.mxu0 0.0
        %1928 = vmatpush1.msra.mxu0 %v1458
        %1929 = vmatprep.subr.mxu0 0.0
        %1930 = vmatpush1.msra.mxu0 %v1459
        %1931 = vmatprep.subr.mxu0 0.0
        %1932 = vmatpush1.msra.mxu0 %v1460
        %1933 = vmatprep.subr.mxu0 0.0
        %1934 = vmatpush1.msra.mxu0 %v1461
        %1935 = vmatprep.subr.mxu0 0.0
        %1936 = vmatpush1.msra.mxu0 %v1462
        %1937 = vmatprep.subr.mxu0 0.0
        %1938 = vmatpush1.msra.mxu0 %v1463
        %1939 = vmatprep.subr.mxu0 0.0
        %1940 = vmatpush1.msra.mxu0 %v1464
        %1941 = vmatprep.subr.mxu0 0.0
        %1942 = vmatpush1.msra.mxu0 %v1465
        %1943 = vmatprep.subr.mxu0 0.0
        %1944 = vmatpush1.msra.mxu0 %v1466
        %1945 = vmatprep.mubr.f32.mxu0 %v1001
        %1946 = vmatmul.mubr.f32.gmra.mrb[0].mxu0 %v999
        %v1947 = vpop.f32.mrb[0].mxu0
        %v1948 = vadd.f32 %v1878, %v1947
        %v1949 = vpop.f32.mrb[0].mxu0
        %1950 = vdwg.mxu0
        %1951 = vmatprep.subr.mxu0 0.0
        %1952 = vmatpush1.msra.mxu0 %v1467
        %1953 = vmatprep.subr.mxu0 0.0
        %1954 = vmatpush1.msra.mxu0 %v1468
        %1955 = vmatprep.subr.mxu0 0.0
        %1956 = vmatpush1.msra.mxu0 %v1469
        %1957 = vmatprep.subr.mxu0 0.0
        %1958 = vmatpush1.msra.mxu0 %v1470
        %1959 = vmatprep.subr.mxu0 0.0
        %1960 = vmatpush1.msra.mxu0 %v1471
        %1961 = vmatprep.subr.mxu0 0.0
        %1962 = vmatpush1.msra.mxu0 %v1472
        %1963 = vmatprep.subr.mxu0 0.0
        %1964 = vmatpush1.msra.mxu0 %v1473
        %1965 = vmatprep.subr.mxu0 0.0
        %1966 = vmatpush1.msra.mxu0 %v1474
        %1967 = vmatprep.subr.mxu0 0.0
        %1968 = vmatpush1.msra.mxu0 %v1475
        %1969 = vmatprep.subr.mxu0 0.0
        %1970 = vmatpush1.msra.mxu0 %v1476
        %1971 = vmatprep.subr.mxu0 0.0
        %1972 = vmatpush1.msra.mxu0 %v1477
        %1973 = vmatprep.subr.mxu0 0.0
        %1974 = vmatpush1.msra.mxu0 %v1478
        %1975 = vmatprep.subr.mxu0 0.0
        %1976 = vmatpush1.msra.mxu0 %v1479
        %1977 = vmatprep.subr.mxu0 0.0
        %1978 = vmatpush1.msra.mxu0 %v1480
        %1979 = vmatprep.subr.mxu0 0.0
        %1980 = vmatpush1.msra.mxu0 %v1481
        %1981 = vmatprep.subr.mxu0 0.0
        %1982 = vmatpush1.msra.mxu0 %v1482
        %1983 = vmatprep.subr.mxu0 0.0
        %1984 = vmatpush1.msra.mxu0 %v1483
        %1985 = vmatprep.subr.mxu0 0.0
        %1986 = vmatpush1.msra.mxu0 %v1484
        %1987 = vmatprep.subr.mxu0 0.0
        %1988 = vmatpush1.msra.mxu0 %v1485
        %1989 = vmatprep.subr.mxu0 0.0
        %1990 = vmatpush1.msra.mxu0 %v1486
        %1991 = vmatprep.subr.mxu0 0.0
        %1992 = vmatpush1.msra.mxu0 %v1487
        %1993 = vmatprep.subr.mxu0 0.0
        %1994 = vmatpush1.msra.mxu0 %v1488
        %1995 = vmatprep.subr.mxu0 0.0
        %1996 = vmatpush1.msra.mxu0 %v1489
        %1997 = vmatprep.subr.mxu0 0.0
        %1998 = vmatpush1.msra.mxu0 %v1490
        %1999 = vmatprep.subr.mxu0 0.0
        %2000 = vmatpush1.msra.mxu0 %v1491
        %2001 = vmatprep.subr.mxu0 0.0
        %2002 = vmatpush1.msra.mxu0 %v1492
        %2003 = vmatprep.subr.mxu0 0.0
        %2004 = vmatpush1.msra.mxu0 %v1493
        %2005 = vmatprep.subr.mxu0 0.0
        %2006 = vmatpush1.msra.mxu0 %v1494
        %2007 = vmatprep.subr.mxu0 0.0
        %2008 = vmatpush1.msra.mxu0 %v1495
        %2009 = vmatprep.subr.mxu0 0.0
        %2010 = vmatpush1.msra.mxu0 %v1496
        %2011 = vmatprep.subr.mxu0 0.0
        %2012 = vmatpush1.msra.mxu0 %v1497
        %2013 = vmatprep.subr.mxu0 0.0
        %2014 = vmatpush1.msra.mxu0 %v1498
        %2015 = vmatprep.mubr.f32.mxu0 %v1077
        %2016 = vmatmul.mubr.f32.gmra.mrb[0].mxu0 %v1075
        %v2017 = vpop.f32.mrb[0].mxu0
        %v2018 = vadd.f32 %v1948, %v2017
        %v2019 = vpop.f32.mrb[0].mxu0
        %2020 = vdwg.mxu0
        %2021 = vmatprep.subr.mxu0 0.0
        %2022 = vmatpush1.msra.mxu0 %v1499
        %2023 = vmatprep.subr.mxu0 0.0
        %2024 = vmatpush1.msra.mxu0 %v1500
        %2025 = vmatprep.subr.mxu0 0.0
        %2026 = vmatpush1.msra.mxu0 %v1501
        %2027 = vmatprep.subr.mxu0 0.0
        %2028 = vmatpush1.msra.mxu0 %v1502
        %2029 = vmatprep.subr.mxu0 0.0
        %2030 = vmatpush1.msra.mxu0 %v1503
        %2031 = vmatprep.subr.mxu0 0.0
        %2032 = vmatpush1.msra.mxu0 %v1504
        %2033 = vmatprep.subr.mxu0 0.0
        %2034 = vmatpush1.msra.mxu0 %v1505
        %2035 = vmatprep.subr.mxu0 0.0
        %2036 = vmatpush1.msra.mxu0 %v1506
        %2037 = vmatprep.subr.mxu0 0.0
        %2038 = vmatpush1.msra.mxu0 %v1507
        %2039 = vmatprep.subr.mxu0 0.0
        %2040 = vmatpush1.msra.mxu0 %v1508
        %2041 = vmatprep.subr.mxu0 0.0
        %2042 = vmatpush1.msra.mxu0 %v1509
        %2043 = vmatprep.subr.mxu0 0.0
        %2044 = vmatpush1.msra.mxu0 %v1510
        %2045 = vmatprep.subr.mxu0 0.0
        %2046 = vmatpush1.msra.mxu0 %v1511
        %2047 = vmatprep.subr.mxu0 0.0
        %2048 = vmatpush1.msra.mxu0 %v1512
        %2049 = vmatprep.subr.mxu0 0.0
        %2050 = vmatpush1.msra.mxu0 %v1513
        %2051 = vmatprep.subr.mxu0 0.0
        %2052 = vmatpush1.msra.mxu0 %v1514
        %2053 = vmatprep.subr.mxu0 0.0
        %2054 = vmatpush1.msra.mxu0 %v1515
        %2055 = vmatprep.subr.mxu0 0.0
        %2056 = vmatpush1.msra.mxu0 %v1516
        %2057 = vmatprep.subr.mxu0 0.0
        %2058 = vmatpush1.msra.mxu0 %v1517
        %2059 = vmatprep.subr.mxu0 0.0
        %2060 = vmatpush1.msra.mxu0 %v1518
        %2061 = vmatprep.subr.mxu0 0.0
        %2062 = vmatpush1.msra.mxu0 %v1519
        %2063 = vmatprep.subr.mxu0 0.0
        %2064 = vmatpush1.msra.mxu0 %v1520
        %2065 = vmatprep.subr.mxu0 0.0
        %2066 = vmatpush1.msra.mxu0 %v1521
        %2067 = vmatprep.subr.mxu0 0.0
        %2068 = vmatpush1.msra.mxu0 %v1522
        %2069 = vmatprep.subr.mxu0 0.0
        %2070 = vmatpush1.msra.mxu0 %v1523
        %2071 = vmatprep.subr.mxu0 0.0
        %2072 = vmatpush1.msra.mxu0 %v1524
        %2073 = vmatprep.subr.mxu0 0.0
        %2074 = vmatpush1.msra.mxu0 %v1525
        %2075 = vmatprep.subr.mxu0 0.0
        %2076 = vmatpush1.msra.mxu0 %v1526
        %2077 = vmatprep.subr.mxu0 0.0
        %2078 = vmatpush1.msra.mxu0 %v1527
        %2079 = vmatprep.subr.mxu0 0.0
        %2080 = vmatpush1.msra.mxu0 %v1528
        %2081 = vmatprep.subr.mxu0 0.0
        %2082 = vmatpush1.msra.mxu0 %v1529
        %2083 = vmatprep.subr.mxu0 0.0
        %2084 = vmatpush1.msra.mxu0 %v1530
        %2085 = vmatprep.mubr.f32.mxu0 %v1153
        %2086 = vmatmul.mubr.f32.gmra.mrb[0].mxu0 %v1151
        %v2087 = vpop.f32.mrb[0].mxu0
        %v2088 = vadd.f32 %v2018, %v2087
        %v2089 = vpop.f32.mrb[0].mxu0
        %2090 = vdwg.mxu0
        %2091 = vmatprep.subr.mxu0 0.0
        %2092 = vmatpush1.msra.mxu0 %v1531
        %2093 = vmatprep.subr.mxu0 0.0
        %2094 = vmatpush1.msra.mxu0 %v1532
        %2095 = vmatprep.subr.mxu0 0.0
        %2096 = vmatpush1.msra.mxu0 %v1533
        %2097 = vmatprep.subr.mxu0 0.0
        %2098 = vmatpush1.msra.mxu0 %v1534
        %2099 = vmatprep.subr.mxu0 0.0
        %2100 = vmatpush1.msra.mxu0 %v1535
        %2101 = vmatprep.subr.mxu0 0.0
        %2102 = vmatpush1.msra.mxu0 %v1536
        %2103 = vmatprep.subr.mxu0 0.0
        %2104 = vmatpush1.msra.mxu0 %v1537
        %2105 = vmatprep.subr.mxu0 0.0
        %2106 = vmatpush1.msra.mxu0 %v1538
        %2107 = vmatprep.subr.mxu0 0.0
        %2108 = vmatpush1.msra.mxu0 %v1539
        %2109 = vmatprep.subr.mxu0 0.0
        %2110 = vmatpush1.msra.mxu0 %v1540
        %2111 = vmatprep.subr.mxu0 0.0
        %2112 = vmatpush1.msra.mxu0 %v1541
        %2113 = vmatprep.subr.mxu0 0.0
        %2114 = vmatpush1.msra.mxu0 %v1542
        %2115 = vmatprep.subr.mxu0 0.0
        %2116 = vmatpush1.msra.mxu0 %v1543
        %2117 = vmatprep.subr.mxu0 0.0
        %2118 = vmatpush1.msra.mxu0 %v1544
        %2119 = vmatprep.subr.mxu0 0.0
        %2120 = vmatpush1.msra.mxu0 %v1545
        %2121 = vmatprep.subr.mxu0 0.0
        %2122 = vmatpush1.msra.mxu0 %v1546
        %2123 = vmatprep.subr.mxu0 0.0
        %2124 = vmatpush1.msra.mxu0 %v1547
        %2125 = vmatprep.subr.mxu0 0.0
        %2126 = vmatpush1.msra.mxu0 %v1548
        %2127 = vmatprep.subr.mxu0 0.0
        %2128 = vmatpush1.msra.mxu0 %v1549
        %2129 = vmatprep.subr.mxu0 0.0
        %2130 = vmatpush1.msra.mxu0 %v1550
        %2131 = vmatprep.subr.mxu0 0.0
        %2132 = vmatpush1.msra.mxu0 %v1551
        %2133 = vmatprep.subr.mxu0 0.0
        %2134 = vmatpush1.msra.mxu0 %v1552
        %2135 = vmatprep.subr.mxu0 0.0
        %2136 = vmatpush1.msra.mxu0 %v1553
        %2137 = vmatprep.subr.mxu0 0.0
        %2138 = vmatpush1.msra.mxu0 %v1554
        %2139 = vmatprep.subr.mxu0 0.0
        %2140 = vmatpush1.msra.mxu0 %v1555
        %2141 = vmatprep.subr.mxu0 0.0
        %2142 = vmatpush1.msra.mxu0 %v1556
        %2143 = vmatprep.subr.mxu0 0.0
        %2144 = vmatpush1.msra.mxu0 %v1557
        %2145 = vmatprep.subr.mxu0 0.0
        %2146 = vmatpush1.msra.mxu0 %v1558
        %2147 = vmatprep.subr.mxu0 0.0
        %2148 = vmatpush1.msra.mxu0 %v1559
        %2149 = vmatprep.subr.mxu0 0.0
        %2150 = vmatpush1.msra.mxu0 %v1560
        %2151 = vmatprep.subr.mxu0 0.0
        %2152 = vmatpush1.msra.mxu0 %v1561
        %2153 = vmatprep.subr.mxu0 0.0
        %2154 = vmatpush1.msra.mxu0 %v1562
        %2155 = vmatprep.mubr.f32.mxu0 %v1229
        %2156 = vmatmul.mubr.f32.gmra.mrb[0].mxu0 %v1227
        %v2157 = vpop.f32.mrb[0].mxu0
        %v2158 = vadd.f32 %v2088, %v2157
        %v2159 = vpop.f32.mrb[0].mxu0
        %2160 = vdwg.mxu0
        %2161 = vmatprep.subr.mxu0 0.0
        %2162 = vmatpush1.msra.mxu0 %v1563
        %2163 = vmatprep.subr.mxu0 0.0
        %2164 = vmatpush1.msra.mxu0 %v1564
        %2165 = vmatprep.subr.mxu0 0.0
        %2166 = vmatpush1.msra.mxu0 %v1565
        %2167 = vmatprep.subr.mxu0 0.0
        %2168 = vmatpush1.msra.mxu0 %v1566
        %2169 = vmatprep.subr.mxu0 0.0
        %2170 = vmatpush1.msra.mxu0 %v1567
        %2171 = vmatprep.subr.mxu0 0.0
        %2172 = vmatpush1.msra.mxu0 %v1568
        %2173 = vmatprep.subr.mxu0 0.0
        %2174 = vmatpush1.msra.mxu0 %v1569
        %2175 = vmatprep.subr.mxu0 0.0
        %2176 = vmatpush1.msra.mxu0 %v1570
        %2177 = vmatprep.subr.mxu0 0.0
        %2178 = vmatpush1.msra.mxu0 %v1571
        %2179 = vmatprep.subr.mxu0 0.0
        %2180 = vmatpush1.msra.mxu0 %v1572
        %2181 = vmatprep.subr.mxu0 0.0
        %2182 = vmatpush1.msra.mxu0 %v1573
        %2183 = vmatprep.subr.mxu0 0.0
        %2184 = vmatpush1.msra.mxu0 %v1574
        %2185 = vmatprep.subr.mxu0 0.0
        %2186 = vmatpush1.msra.mxu0 %v1575
        %2187 = vmatprep.subr.mxu0 0.0
        %2188 = vmatpush1.msra.mxu0 %v1576
        %2189 = vmatprep.subr.mxu0 0.0
        %2190 = vmatpush1.msra.mxu0 %v1577
        %2191 = vmatprep.subr.mxu0 0.0
        %2192 = vmatpush1.msra.mxu0 %v1578
        %2193 = vmatprep.subr.mxu0 0.0
        %2194 = vmatpush1.msra.mxu0 %v1579
        %2195 = vmatprep.subr.mxu0 0.0
        %2196 = vmatpush1.msra.mxu0 %v1580
        %2197 = vmatprep.subr.mxu0 0.0
        %2198 = vmatpush1.msra.mxu0 %v1581
        %2199 = vmatprep.subr.mxu0 0.0
        %2200 = vmatpush1.msra.mxu0 %v1582
        %2201 = vmatprep.subr.mxu0 0.0
        %2202 = vmatpush1.msra.mxu0 %v1583
        %2203 = vmatprep.subr.mxu0 0.0
        %2204 = vmatpush1.msra.mxu0 %v1584
        %2205 = vmatprep.subr.mxu0 0.0
        %2206 = vmatpush1.msra.mxu0 %v1585
        %2207 = vmatprep.subr.mxu0 0.0
        %2208 = vmatpush1.msra.mxu0 %v1586
        %2209 = vmatprep.subr.mxu0 0.0
        %2210 = vmatpush1.msra.mxu0 %v1587
        %2211 = vmatprep.subr.mxu0 0.0
        %2212 = vmatpush1.msra.mxu0 %v1588
        %2213 = vmatprep.subr.mxu0 0.0
        %2214 = vmatpush1.msra.mxu0 %v1589
        %2215 = vmatprep.subr.mxu0 0.0
        %2216 = vmatpush1.msra.mxu0 %v1590
        %2217 = vmatprep.subr.mxu0 0.0
        %2218 = vmatpush1.msra.mxu0 %v1591
        %2219 = vmatprep.subr.mxu0 0.0
        %2220 = vmatpush1.msra.mxu0 %v1592
        %2221 = vmatprep.subr.mxu0 0.0
        %2222 = vmatpush1.msra.mxu0 %v1593
        %2223 = vmatprep.subr.mxu0 0.0
        %2224 = vmatpush1.msra.mxu0 %v1594
        %2225 = vmatprep.mubr.f32.mxu0 %v1305
        %2226 = vmatmul.mubr.f32.gmra.mrb[0].mxu0 %v1303
        %v2227 = vpop.f32.mrb[0].mxu0
        %v2228 = vadd.f32 %v2158, %v2227
        %v2229 = vpop.f32.mrb[0].mxu0
        %2230 = vdwg.mxu0
        %v2231 = vld [vmem:[%s11] sm:$0xf]
        %v2232 = vld [vmem:[%s12] sm:$0xf]
        %vm2233 = vcmask 519168
        %v2234 = vsel %vm2233, %v2228, 0.0
        %2235 = vadd.xlane.f32.xlu0 %v2234
        %v2236 = vpop.xlane.xlu0 %2235
        %v2237 = vrcp.pop 64.0
        %v2238 = vmul.f32 %v2236, %v2237
        %v2239 = vsub.f32 %v2228, %v2238
        %v2240 = vmul.f32 %v2239, %v2239
        %v2241 = vsel %vm2233, %v2240, 0.0
        %2242 = vadd.xlane.f32.xlu0 %v2241
        %v2243 = vpop.xlane.xlu0 %2242
        %v2244 = vmul.f32 %v2243, %v2237
        %v2245 = vadd.f32 %v2244, 1e-05
        %v2246 = vrsqrt.pop %v2245
        %v2247 = vmul.f32 %v2239, %v2246
        %2249 = vset.pattern.permute.xlu0 0
        %2250 = vperm.xlu0 %2249, %v2231
        %v2251 = vpop.permute.xlu0 %2250
        %v2253 = vmul.f32 %v2247, %v2251
        %2255 = vset.pattern.permute.xlu0 0
        %2256 = vperm.xlu0 %2255, %v2232
        %v2257 = vpop.permute.xlu0 %2256
        %v2259 = vadd.f32 %v2253, %v2257
        %vm2260 = vcmp.gt.f32.partialorder %v2259, 0.0
        %v2261 = vmul.f32 %v2259, 0.2
        %v2262 = vsel %vm2260, %v2259, %v2261
        %v2263 = vld [vmem:[%s6] sm:$0xff]
        %v2265 = vsel %vm620, %v2263, 0
        %v2268 = vsel %vm548, %v2262, 0
        %2270 = vmatprep.subr.mxu0 0.0
        %2271 = vmatpush1.msra.mxu0 %v2268
        %2272 = vmatprep.subr.mxu0 0.0
        %2273 = vmatpush1.msra.mxu0 0.0
        %2274 = vmatprep.subr.mxu0 0.0
        %2275 = vmatpush1.msra.mxu0 0.0
        %2276 = vmatprep.subr.mxu0 0.0
        %2277 = vmatpush1.msra.mxu0 0.0
        %2278 = vmatprep.subr.mxu0 0.0
        %2279 = vmatpush1.msra.mxu0 0.0
        %2280 = vmatprep.subr.mxu0 0.0
        %2281 = vmatpush1.msra.mxu0 0.0
        %2282 = vmatprep.subr.mxu0 0.0
        %2283 = vmatpush1.msra.mxu0 0.0
        %2284 = vmatprep.subr.mxu0 0.0
        %2285 = vmatpush1.msra.mxu0 0.0
        %2286 = vmatprep.subr.mxu0 0.0
        %2287 = vmatpush1.msra.mxu0 0.0
        %2288 = vmatprep.subr.mxu0 0.0
        %2289 = vmatpush1.msra.mxu0 0.0
        %2290 = vmatprep.subr.mxu0 0.0
        %2291 = vmatpush1.msra.mxu0 0.0
        %2292 = vmatprep.subr.mxu0 0.0
        %2293 = vmatpush1.msra.mxu0 0.0
        %2294 = vmatprep.subr.mxu0 0.0
        %2295 = vmatpush1.msra.mxu0 0.0
        %2296 = vmatprep.subr.mxu0 0.0
        %2297 = vmatpush1.msra.mxu0 0.0
        %2298 = vmatprep.subr.mxu0 0.0
        %2299 = vmatpush1.msra.mxu0 0.0
        %2300 = vmatprep.subr.mxu0 0.0
        %2301 = vmatpush1.msra.mxu0 0.0
        %2302 = vmatprep.subr.mxu0 0.0
        %2303 = vmatpush1.msra.mxu0 0.0
        %2304 = vmatprep.subr.mxu0 0.0
        %2305 = vmatpush1.msra.mxu0 0.0
        %2306 = vmatprep.subr.mxu0 0.0
        %2307 = vmatpush1.msra.mxu0 0.0
        %2308 = vmatprep.subr.mxu0 0.0
        %2309 = vmatpush1.msra.mxu0 0.0
        %2310 = vmatprep.subr.mxu0 0.0
        %2311 = vmatpush1.msra.mxu0 0.0
        %2312 = vmatprep.subr.mxu0 0.0
        %2313 = vmatpush1.msra.mxu0 0.0
        %2314 = vmatprep.subr.mxu0 0.0
        %2315 = vmatpush1.msra.mxu0 0.0
        %2316 = vmatprep.subr.mxu0 0.0
        %2317 = vmatpush1.msra.mxu0 0.0
        %2318 = vmatprep.subr.mxu0 0.0
        %2319 = vmatpush1.msra.mxu0 0.0
        %2320 = vmatprep.subr.mxu0 0.0
        %2321 = vmatpush1.msra.mxu0 0.0
        %2322 = vmatprep.subr.mxu0 0.0
        %2323 = vmatpush1.msra.mxu0 0.0
        %2324 = vmatprep.subr.mxu0 0.0
        %2325 = vmatpush1.msra.mxu0 0.0
        %2326 = vmatprep.subr.mxu0 0.0
        %2327 = vmatpush1.msra.mxu0 0.0
        %2328 = vmatprep.subr.mxu0 0.0
        %2329 = vmatpush1.msra.mxu0 0.0
        %2330 = vmatprep.subr.mxu0 0.0
        %2331 = vmatpush1.msra.mxu0 0.0
        %2332 = vmatprep.subr.mxu0 0.0
        %2333 = vmatpush1.msra.mxu0 0.0
        %2334 = vmatprep.mubr.f32.mxu0 0.0
        %2335 = vmatmul.mubr.f32.gmra.mrb[0].mxu0 %v2265
        %v2336 = vpop.f32.mrb[0].mxu0
        %v2337 = vadd.f32 0.0, %v2336
        %v2338 = vpop.f32.mrb[0].mxu0
        %2339 = vdwg.mxu0
        %s2340 = scalar_lea.vmem %s6, 8
        %v2341 = vld [vmem:[%s2340] sm:$0xff]
        %v2343 = vsel %vm620, %v2341, 0
        %2345 = vmatprep.subr.mxu0 0.0
        %2346 = vmatpush1.msra.mxu0 %v2268
        %2347 = vmatprep.subr.mxu0 0.0
        %2348 = vmatpush1.msra.mxu0 0.0
        %2349 = vmatprep.subr.mxu0 0.0
        %2350 = vmatpush1.msra.mxu0 0.0
        %2351 = vmatprep.subr.mxu0 0.0
        %2352 = vmatpush1.msra.mxu0 0.0
        %2353 = vmatprep.subr.mxu0 0.0
        %2354 = vmatpush1.msra.mxu0 0.0
        %2355 = vmatprep.subr.mxu0 0.0
        %2356 = vmatpush1.msra.mxu0 0.0
        %2357 = vmatprep.subr.mxu0 0.0
        %2358 = vmatpush1.msra.mxu0 0.0
        %2359 = vmatprep.subr.mxu0 0.0
        %2360 = vmatpush1.msra.mxu0 0.0
        %2361 = vmatprep.subr.mxu0 0.0
        %2362 = vmatpush1.msra.mxu0 0.0
        %2363 = vmatprep.subr.mxu0 0.0
        %2364 = vmatpush1.msra.mxu0 0.0
        %2365 = vmatprep.subr.mxu0 0.0
        %2366 = vmatpush1.msra.mxu0 0.0
        %2367 = vmatprep.subr.mxu0 0.0
        %2368 = vmatpush1.msra.mxu0 0.0
        %2369 = vmatprep.subr.mxu0 0.0
        %2370 = vmatpush1.msra.mxu0 0.0
        %2371 = vmatprep.subr.mxu0 0.0
        %2372 = vmatpush1.msra.mxu0 0.0
        %2373 = vmatprep.subr.mxu0 0.0
        %2374 = vmatpush1.msra.mxu0 0.0
        %2375 = vmatprep.subr.mxu0 0.0
        %2376 = vmatpush1.msra.mxu0 0.0
        %2377 = vmatprep.subr.mxu0 0.0
        %2378 = vmatpush1.msra.mxu0 0.0
        %2379 = vmatprep.subr.mxu0 0.0
        %2380 = vmatpush1.msra.mxu0 0.0
        %2381 = vmatprep.subr.mxu0 0.0
        %2382 = vmatpush1.msra.mxu0 0.0
        %2383 = vmatprep.subr.mxu0 0.0
        %2384 = vmatpush1.msra.mxu0 0.0
        %2385 = vmatprep.subr.mxu0 0.0
        %2386 = vmatpush1.msra.mxu0 0.0
        %2387 = vmatprep.subr.mxu0 0.0
        %2388 = vmatpush1.msra.mxu0 0.0
        %2389 = vmatprep.subr.mxu0 0.0
        %2390 = vmatpush1.msra.mxu0 0.0
        %2391 = vmatprep.subr.mxu0 0.0
        %2392 = vmatpush1.msra.mxu0 0.0
        %2393 = vmatprep.subr.mxu0 0.0
        %2394 = vmatpush1.msra.mxu0 0.0
        %2395 = vmatprep.subr.mxu0 0.0
        %2396 = vmatpush1.msra.mxu0 0.0
        %2397 = vmatprep.subr.mxu0 0.0
        %2398 = vmatpush1.msra.mxu0 0.0
        %2399 = vmatprep.subr.mxu0 0.0
        %2400 = vmatpush1.msra.mxu0 0.0
        %2401 = vmatprep.subr.mxu0 0.0
        %2402 = vmatpush1.msra.mxu0 0.0
        %2403 = vmatprep.subr.mxu0 0.0
        %2404 = vmatpush1.msra.mxu0 0.0
        %2405 = vmatprep.subr.mxu0 0.0
        %2406 = vmatpush1.msra.mxu0 0.0
        %2407 = vmatprep.subr.mxu0 0.0
        %2408 = vmatpush1.msra.mxu0 0.0
        %2409 = vmatprep.mubr.f32.mxu0 0.0
        %2410 = vmatmul.mubr.f32.gmra.mrb[0].mxu0 %v2343
        %v2411 = vpop.f32.mrb[0].mxu0
        %v2412 = vadd.f32 0.0, %v2411
        %v2413 = vpop.f32.mrb[0].mxu0
        %2414 = vdwg.mxu0
        %s2415 = scalar_lea.vmem %s6, 16
        %v2416 = vld [vmem:[%s2415] sm:$0xff]
        %v2418 = vsel %vm620, %v2416, 0
        %2420 = vmatprep.subr.mxu0 0.0
        %2421 = vmatpush1.msra.mxu0 %v2268
        %2422 = vmatprep.subr.mxu0 0.0
        %2423 = vmatpush1.msra.mxu0 0.0
        %2424 = vmatprep.subr.mxu0 0.0
        %2425 = vmatpush1.msra.mxu0 0.0
        %2426 = vmatprep.subr.mxu0 0.0
        %2427 = vmatpush1.msra.mxu0 0.0
        %2428 = vmatprep.subr.mxu0 0.0
        %2429 = vmatpush1.msra.mxu0 0.0
        %2430 = vmatprep.subr.mxu0 0.0
        %2431 = vmatpush1.msra.mxu0 0.0
        %2432 = vmatprep.subr.mxu0 0.0
        %2433 = vmatpush1.msra.mxu0 0.0
        %2434 = vmatprep.subr.mxu0 0.0
        %2435 = vmatpush1.msra.mxu0 0.0
        %2436 = vmatprep.subr.mxu0 0.0
        %2437 = vmatpush1.msra.mxu0 0.0
        %2438 = vmatprep.subr.mxu0 0.0
        %2439 = vmatpush1.msra.mxu0 0.0
        %2440 = vmatprep.subr.mxu0 0.0
        %2441 = vmatpush1.msra.mxu0 0.0
        %2442 = vmatprep.subr.mxu0 0.0
        %2443 = vmatpush1.msra.mxu0 0.0
        %2444 = vmatprep.subr.mxu0 0.0
        %2445 = vmatpush1.msra.mxu0 0.0
        %2446 = vmatprep.subr.mxu0 0.0
        %2447 = vmatpush1.msra.mxu0 0.0
        %2448 = vmatprep.subr.mxu0 0.0
        %2449 = vmatpush1.msra.mxu0 0.0
        %2450 = vmatprep.subr.mxu0 0.0
        %2451 = vmatpush1.msra.mxu0 0.0
        %2452 = vmatprep.subr.mxu0 0.0
        %2453 = vmatpush1.msra.mxu0 0.0
        %2454 = vmatprep.subr.mxu0 0.0
        %2455 = vmatpush1.msra.mxu0 0.0
        %2456 = vmatprep.subr.mxu0 0.0
        %2457 = vmatpush1.msra.mxu0 0.0
        %2458 = vmatprep.subr.mxu0 0.0
        %2459 = vmatpush1.msra.mxu0 0.0
        %2460 = vmatprep.subr.mxu0 0.0
        %2461 = vmatpush1.msra.mxu0 0.0
        %2462 = vmatprep.subr.mxu0 0.0
        %2463 = vmatpush1.msra.mxu0 0.0
        %2464 = vmatprep.subr.mxu0 0.0
        %2465 = vmatpush1.msra.mxu0 0.0
        %2466 = vmatprep.subr.mxu0 0.0
        %2467 = vmatpush1.msra.mxu0 0.0
        %2468 = vmatprep.subr.mxu0 0.0
        %2469 = vmatpush1.msra.mxu0 0.0
        %2470 = vmatprep.subr.mxu0 0.0
        %2471 = vmatpush1.msra.mxu0 0.0
        %2472 = vmatprep.subr.mxu0 0.0
        %2473 = vmatpush1.msra.mxu0 0.0
        %2474 = vmatprep.subr.mxu0 0.0
        %2475 = vmatpush1.msra.mxu0 0.0
        %2476 = vmatprep.subr.mxu0 0.0
        %2477 = vmatpush1.msra.mxu0 0.0
        %2478 = vmatprep.subr.mxu0 0.0
        %2479 = vmatpush1.msra.mxu0 0.0
        %2480 = vmatprep.subr.mxu0 0.0
        %2481 = vmatpush1.msra.mxu0 0.0
        %2482 = vmatprep.subr.mxu0 0.0
        %2483 = vmatpush1.msra.mxu0 0.0
        %2484 = vmatprep.mubr.f32.mxu0 0.0
        %2485 = vmatmul.mubr.f32.gmra.mrb[0].mxu0 %v2418
        %v2486 = vpop.f32.mrb[0].mxu0
        %v2487 = vadd.f32 0.0, %v2486
        %v2488 = vpop.f32.mrb[0].mxu0
        %2489 = vdwg.mxu0
        %s2490 = scalar_lea.vmem %s6, 24
        %v2491 = vld [vmem:[%s2490] sm:$0xff]
        %v2493 = vsel %vm620, %v2491, 0
        %2495 = vmatprep.subr.mxu0 0.0
        %2496 = vmatpush1.msra.mxu0 %v2268
        %2497 = vmatprep.subr.mxu0 0.0
        %2498 = vmatpush1.msra.mxu0 0.0
        %2499 = vmatprep.subr.mxu0 0.0
        %2500 = vmatpush1.msra.mxu0 0.0
        %2501 = vmatprep.subr.mxu0 0.0
        %2502 = vmatpush1.msra.mxu0 0.0
        %2503 = vmatprep.subr.mxu0 0.0
        %2504 = vmatpush1.msra.mxu0 0.0
        %2505 = vmatprep.subr.mxu0 0.0
        %2506 = vmatpush1.msra.mxu0 0.0
        %2507 = vmatprep.subr.mxu0 0.0
        %2508 = vmatpush1.msra.mxu0 0.0
        %2509 = vmatprep.subr.mxu0 0.0
        %2510 = vmatpush1.msra.mxu0 0.0
        %2511 = vmatprep.subr.mxu0 0.0
        %2512 = vmatpush1.msra.mxu0 0.0
        %2513 = vmatprep.subr.mxu0 0.0
        %2514 = vmatpush1.msra.mxu0 0.0
        %2515 = vmatprep.subr.mxu0 0.0
        %2516 = vmatpush1.msra.mxu0 0.0
        %2517 = vmatprep.subr.mxu0 0.0
        %2518 = vmatpush1.msra.mxu0 0.0
        %2519 = vmatprep.subr.mxu0 0.0
        %2520 = vmatpush1.msra.mxu0 0.0
        %2521 = vmatprep.subr.mxu0 0.0
        %2522 = vmatpush1.msra.mxu0 0.0
        %2523 = vmatprep.subr.mxu0 0.0
        %2524 = vmatpush1.msra.mxu0 0.0
        %2525 = vmatprep.subr.mxu0 0.0
        %2526 = vmatpush1.msra.mxu0 0.0
        %2527 = vmatprep.subr.mxu0 0.0
        %2528 = vmatpush1.msra.mxu0 0.0
        %2529 = vmatprep.subr.mxu0 0.0
        %2530 = vmatpush1.msra.mxu0 0.0
        %2531 = vmatprep.subr.mxu0 0.0
        %2532 = vmatpush1.msra.mxu0 0.0
        %2533 = vmatprep.subr.mxu0 0.0
        %2534 = vmatpush1.msra.mxu0 0.0
        %2535 = vmatprep.subr.mxu0 0.0
        %2536 = vmatpush1.msra.mxu0 0.0
        %2537 = vmatprep.subr.mxu0 0.0
        %2538 = vmatpush1.msra.mxu0 0.0
        %2539 = vmatprep.subr.mxu0 0.0
        %2540 = vmatpush1.msra.mxu0 0.0
        %2541 = vmatprep.subr.mxu0 0.0
        %2542 = vmatpush1.msra.mxu0 0.0
        %2543 = vmatprep.subr.mxu0 0.0
        %2544 = vmatpush1.msra.mxu0 0.0
        %2545 = vmatprep.subr.mxu0 0.0
        %2546 = vmatpush1.msra.mxu0 0.0
        %2547 = vmatprep.subr.mxu0 0.0
        %2548 = vmatpush1.msra.mxu0 0.0
        %2549 = vmatprep.subr.mxu0 0.0
        %2550 = vmatpush1.msra.mxu0 0.0
        %2551 = vmatprep.subr.mxu0 0.0
        %2552 = vmatpush1.msra.mxu0 0.0
        %2553 = vmatprep.subr.mxu0 0.0
        %2554 = vmatpush1.msra.mxu0 0.0
        %2555 = vmatprep.subr.mxu0 0.0
        %2556 = vmatpush1.msra.mxu0 0.0
        %2557 = vmatprep.subr.mxu0 0.0
        %2558 = vmatpush1.msra.mxu0 0.0
        %2559 = vmatprep.mubr.f32.mxu0 0.0
        %2560 = vmatmul.mubr.f32.gmra.mrb[0].mxu0 %v2493
        %v2561 = vpop.f32.mrb[0].mxu0
        %v2562 = vadd.f32 0.0, %v2561
        %v2563 = vpop.f32.mrb[0].mxu0
        %2564 = vdwg.mxu0
        %s2565 = scalar_lea.vmem %s6, 32
        %v2566 = vld [vmem:[%s2565] sm:$0xff]
        %v2568 = vsel %vm620, %v2566, 0
        %2570 = vmatprep.subr.mxu0 0.0
        %2571 = vmatpush1.msra.mxu0 %v2268
        %2572 = vmatprep.subr.mxu0 0.0
        %2573 = vmatpush1.msra.mxu0 0.0
        %2574 = vmatprep.subr.mxu0 0.0
        %2575 = vmatpush1.msra.mxu0 0.0
        %2576 = vmatprep.subr.mxu0 0.0
        %2577 = vmatpush1.msra.mxu0 0.0
        %2578 = vmatprep.subr.mxu0 0.0
        %2579 = vmatpush1.msra.mxu0 0.0
        %2580 = vmatprep.subr.mxu0 0.0
        %2581 = vmatpush1.msra.mxu0 0.0
        %2582 = vmatprep.subr.mxu0 0.0
        %2583 = vmatpush1.msra.mxu0 0.0
        %2584 = vmatprep.subr.mxu0 0.0
        %2585 = vmatpush1.msra.mxu0 0.0
        %2586 = vmatprep.subr.mxu0 0.0
        %2587 = vmatpush1.msra.mxu0 0.0
        %2588 = vmatprep.subr.mxu0 0.0
        %2589 = vmatpush1.msra.mxu0 0.0
        %2590 = vmatprep.subr.mxu0 0.0
        %2591 = vmatpush1.msra.mxu0 0.0
        %2592 = vmatprep.subr.mxu0 0.0
        %2593 = vmatpush1.msra.mxu0 0.0
        %2594 = vmatprep.subr.mxu0 0.0
        %2595 = vmatpush1.msra.mxu0 0.0
        %2596 = vmatprep.subr.mxu0 0.0
        %2597 = vmatpush1.msra.mxu0 0.0
        %2598 = vmatprep.subr.mxu0 0.0
        %2599 = vmatpush1.msra.mxu0 0.0
        %2600 = vmatprep.subr.mxu0 0.0
        %2601 = vmatpush1.msra.mxu0 0.0
        %2602 = vmatprep.subr.mxu0 0.0
        %2603 = vmatpush1.msra.mxu0 0.0
        %2604 = vmatprep.subr.mxu0 0.0
        %2605 = vmatpush1.msra.mxu0 0.0
        %2606 = vmatprep.subr.mxu0 0.0
        %2607 = vmatpush1.msra.mxu0 0.0
        %2608 = vmatprep.subr.mxu0 0.0
        %2609 = vmatpush1.msra.mxu0 0.0
        %2610 = vmatprep.subr.mxu0 0.0
        %2611 = vmatpush1.msra.mxu0 0.0
        %2612 = vmatprep.subr.mxu0 0.0
        %2613 = vmatpush1.msra.mxu0 0.0
        %2614 = vmatprep.subr.mxu0 0.0
        %2615 = vmatpush1.msra.mxu0 0.0
        %2616 = vmatprep.subr.mxu0 0.0
        %2617 = vmatpush1.msra.mxu0 0.0
        %2618 = vmatprep.subr.mxu0 0.0
        %2619 = vmatpush1.msra.mxu0 0.0
        %2620 = vmatprep.subr.mxu0 0.0
        %2621 = vmatpush1.msra.mxu0 0.0
        %2622 = vmatprep.subr.mxu0 0.0
        %2623 = vmatpush1.msra.mxu0 0.0
        %2624 = vmatprep.subr.mxu0 0.0
        %2625 = vmatpush1.msra.mxu0 0.0
        %2626 = vmatprep.subr.mxu0 0.0
        %2627 = vmatpush1.msra.mxu0 0.0
        %2628 = vmatprep.subr.mxu0 0.0
        %2629 = vmatpush1.msra.mxu0 0.0
        %2630 = vmatprep.subr.mxu0 0.0
        %2631 = vmatpush1.msra.mxu0 0.0
        %2632 = vmatprep.subr.mxu0 0.0
        %2633 = vmatpush1.msra.mxu0 0.0
        %2634 = vmatprep.mubr.f32.mxu0 0.0
        %2635 = vmatmul.mubr.f32.gmra.mrb[0].mxu0 %v2568
        %v2636 = vpop.f32.mrb[0].mxu0
        %v2637 = vadd.f32 0.0, %v2636
        %v2638 = vpop.f32.mrb[0].mxu0
        %2639 = vdwg.mxu0
        %s2640 = scalar_lea.vmem %s6, 40
        %v2641 = vld [vmem:[%s2640] sm:$0xff]
        %v2643 = vsel %vm620, %v2641, 0
        %2645 = vmatprep.subr.mxu0 0.0
        %2646 = vmatpush1.msra.mxu0 %v2268
        %2647 = vmatprep.subr.mxu0 0.0
        %2648 = vmatpush1.msra.mxu0 0.0
        %2649 = vmatprep.subr.mxu0 0.0
        %2650 = vmatpush1.msra.mxu0 0.0
        %2651 = vmatprep.subr.mxu0 0.0
        %2652 = vmatpush1.msra.mxu0 0.0
        %2653 = vmatprep.subr.mxu0 0.0
        %2654 = vmatpush1.msra.mxu0 0.0
        %2655 = vmatprep.subr.mxu0 0.0
        %2656 = vmatpush1.msra.mxu0 0.0
        %2657 = vmatprep.subr.mxu0 0.0
        %2658 = vmatpush1.msra.mxu0 0.0
        %2659 = vmatprep.subr.mxu0 0.0
        %2660 = vmatpush1.msra.mxu0 0.0
        %2661 = vmatprep.subr.mxu0 0.0
        %2662 = vmatpush1.msra.mxu0 0.0
        %2663 = vmatprep.subr.mxu0 0.0
        %2664 = vmatpush1.msra.mxu0 0.0
        %2665 = vmatprep.subr.mxu0 0.0
        %2666 = vmatpush1.msra.mxu0 0.0
        %2667 = vmatprep.subr.mxu0 0.0
        %2668 = vmatpush1.msra.mxu0 0.0
        %2669 = vmatprep.subr.mxu0 0.0
        %2670 = vmatpush1.msra.mxu0 0.0
        %2671 = vmatprep.subr.mxu0 0.0
        %2672 = vmatpush1.msra.mxu0 0.0
        %2673 = vmatprep.subr.mxu0 0.0
        %2674 = vmatpush1.msra.mxu0 0.0
        %2675 = vmatprep.subr.mxu0 0.0
        %2676 = vmatpush1.msra.mxu0 0.0
        %2677 = vmatprep.subr.mxu0 0.0
        %2678 = vmatpush1.msra.mxu0 0.0
        %2679 = vmatprep.subr.mxu0 0.0
        %2680 = vmatpush1.msra.mxu0 0.0
        %2681 = vmatprep.subr.mxu0 0.0
        %2682 = vmatpush1.msra.mxu0 0.0
        %2683 = vmatprep.subr.mxu0 0.0
        %2684 = vmatpush1.msra.mxu0 0.0
        %2685 = vmatprep.subr.mxu0 0.0
        %2686 = vmatpush1.msra.mxu0 0.0
        %2687 = vmatprep.subr.mxu0 0.0
        %2688 = vmatpush1.msra.mxu0 0.0
        %2689 = vmatprep.subr.mxu0 0.0
        %2690 = vmatpush1.msra.mxu0 0.0
        %2691 = vmatprep.subr.mxu0 0.0
        %2692 = vmatpush1.msra.mxu0 0.0
        %2693 = vmatprep.subr.mxu0 0.0
        %2694 = vmatpush1.msra.mxu0 0.0
        %2695 = vmatprep.subr.mxu0 0.0
        %2696 = vmatpush1.msra.mxu0 0.0
        %2697 = vmatprep.subr.mxu0 0.0
        %2698 = vmatpush1.msra.mxu0 0.0
        %2699 = vmatprep.subr.mxu0 0.0
        %2700 = vmatpush1.msra.mxu0 0.0
        %2701 = vmatprep.subr.mxu0 0.0
        %2702 = vmatpush1.msra.mxu0 0.0
        %2703 = vmatprep.subr.mxu0 0.0
        %2704 = vmatpush1.msra.mxu0 0.0
        %2705 = vmatprep.subr.mxu0 0.0
        %2706 = vmatpush1.msra.mxu0 0.0
        %2707 = vmatprep.subr.mxu0 0.0
        %2708 = vmatpush1.msra.mxu0 0.0
        %2709 = vmatprep.mubr.f32.mxu0 0.0
        %2710 = vmatmul.mubr.f32.gmra.mrb[0].mxu0 %v2643
        %v2711 = vpop.f32.mrb[0].mxu0
        %v2712 = vadd.f32 0.0, %v2711
        %v2713 = vpop.f32.mrb[0].mxu0
        %2714 = vdwg.mxu0
        %s2715 = scalar_lea.vmem %s6, 48
        %v2716 = vld [vmem:[%s2715] sm:$0xff]
        %v2718 = vsel %vm620, %v2716, 0
        %2720 = vmatprep.subr.mxu0 0.0
        %2721 = vmatpush1.msra.mxu0 %v2268
        %2722 = vmatprep.subr.mxu0 0.0
        %2723 = vmatpush1.msra.mxu0 0.0
        %2724 = vmatprep.subr.mxu0 0.0
        %2725 = vmatpush1.msra.mxu0 0.0
        %2726 = vmatprep.subr.mxu0 0.0
        %2727 = vmatpush1.msra.mxu0 0.0
        %2728 = vmatprep.subr.mxu0 0.0
        %2729 = vmatpush1.msra.mxu0 0.0
        %2730 = vmatprep.subr.mxu0 0.0
        %2731 = vmatpush1.msra.mxu0 0.0
        %2732 = vmatprep.subr.mxu0 0.0
        %2733 = vmatpush1.msra.mxu0 0.0
        %2734 = vmatprep.subr.mxu0 0.0
        %2735 = vmatpush1.msra.mxu0 0.0
        %2736 = vmatprep.subr.mxu0 0.0
        %2737 = vmatpush1.msra.mxu0 0.0
        %2738 = vmatprep.subr.mxu0 0.0
        %2739 = vmatpush1.msra.mxu0 0.0
        %2740 = vmatprep.subr.mxu0 0.0
        %2741 = vmatpush1.msra.mxu0 0.0
        %2742 = vmatprep.subr.mxu0 0.0
        %2743 = vmatpush1.msra.mxu0 0.0
        %2744 = vmatprep.subr.mxu0 0.0
        %2745 = vmatpush1.msra.mxu0 0.0
        %2746 = vmatprep.subr.mxu0 0.0
        %2747 = vmatpush1.msra.mxu0 0.0
        %2748 = vmatprep.subr.mxu0 0.0
        %2749 = vmatpush1.msra.mxu0 0.0
        %2750 = vmatprep.subr.mxu0 0.0
        %2751 = vmatpush1.msra.mxu0 0.0
        %2752 = vmatprep.subr.mxu0 0.0
        %2753 = vmatpush1.msra.mxu0 0.0
        %2754 = vmatprep.subr.mxu0 0.0
        %2755 = vmatpush1.msra.mxu0 0.0
        %2756 = vmatprep.subr.mxu0 0.0
        %2757 = vmatpush1.msra.mxu0 0.0
        %2758 = vmatprep.subr.mxu0 0.0
        %2759 = vmatpush1.msra.mxu0 0.0
        %2760 = vmatprep.subr.mxu0 0.0
        %2761 = vmatpush1.msra.mxu0 0.0
        %2762 = vmatprep.subr.mxu0 0.0
        %2763 = vmatpush1.msra.mxu0 0.0
        %2764 = vmatprep.subr.mxu0 0.0
        %2765 = vmatpush1.msra.mxu0 0.0
        %2766 = vmatprep.subr.mxu0 0.0
        %2767 = vmatpush1.msra.mxu0 0.0
        %2768 = vmatprep.subr.mxu0 0.0
        %2769 = vmatpush1.msra.mxu0 0.0
        %2770 = vmatprep.subr.mxu0 0.0
        %2771 = vmatpush1.msra.mxu0 0.0
        %2772 = vmatprep.subr.mxu0 0.0
        %2773 = vmatpush1.msra.mxu0 0.0
        %2774 = vmatprep.subr.mxu0 0.0
        %2775 = vmatpush1.msra.mxu0 0.0
        %2776 = vmatprep.subr.mxu0 0.0
        %2777 = vmatpush1.msra.mxu0 0.0
        %2778 = vmatprep.subr.mxu0 0.0
        %2779 = vmatpush1.msra.mxu0 0.0
        %2780 = vmatprep.subr.mxu0 0.0
        %2781 = vmatpush1.msra.mxu0 0.0
        %2782 = vmatprep.subr.mxu0 0.0
        %2783 = vmatpush1.msra.mxu0 0.0
        %2784 = vmatprep.mubr.f32.mxu0 0.0
        %2785 = vmatmul.mubr.f32.gmra.mrb[0].mxu0 %v2718
        %v2786 = vpop.f32.mrb[0].mxu0
        %v2787 = vadd.f32 0.0, %v2786
        %v2788 = vpop.f32.mrb[0].mxu0
        %2789 = vdwg.mxu0
        %s2790 = scalar_lea.vmem %s6, 56
        %v2791 = vld [vmem:[%s2790] sm:$0xff]
        %v2793 = vsel %vm620, %v2791, 0
        %2795 = vmatprep.subr.mxu0 0.0
        %2796 = vmatpush1.msra.mxu0 %v2268
        %2797 = vmatprep.subr.mxu0 0.0
        %2798 = vmatpush1.msra.mxu0 0.0
        %2799 = vmatprep.subr.mxu0 0.0
        %2800 = vmatpush1.msra.mxu0 0.0
        %2801 = vmatprep.subr.mxu0 0.0
        %2802 = vmatpush1.msra.mxu0 0.0
        %2803 = vmatprep.subr.mxu0 0.0
        %2804 = vmatpush1.msra.mxu0 0.0
        %2805 = vmatprep.subr.mxu0 0.0
        %2806 = vmatpush1.msra.mxu0 0.0
        %2807 = vmatprep.subr.mxu0 0.0
        %2808 = vmatpush1.msra.mxu0 0.0
        %2809 = vmatprep.subr.mxu0 0.0
        %2810 = vmatpush1.msra.mxu0 0.0
        %2811 = vmatprep.subr.mxu0 0.0
        %2812 = vmatpush1.msra.mxu0 0.0
        %2813 = vmatprep.subr.mxu0 0.0
        %2814 = vmatpush1.msra.mxu0 0.0
        %2815 = vmatprep.subr.mxu0 0.0
        %2816 = vmatpush1.msra.mxu0 0.0
        %2817 = vmatprep.subr.mxu0 0.0
        %2818 = vmatpush1.msra.mxu0 0.0
        %2819 = vmatprep.subr.mxu0 0.0
        %2820 = vmatpush1.msra.mxu0 0.0
        %2821 = vmatprep.subr.mxu0 0.0
        %2822 = vmatpush1.msra.mxu0 0.0
        %2823 = vmatprep.subr.mxu0 0.0
        %2824 = vmatpush1.msra.mxu0 0.0
        %2825 = vmatprep.subr.mxu0 0.0
        %2826 = vmatpush1.msra.mxu0 0.0
        %2827 = vmatprep.subr.mxu0 0.0
        %2828 = vmatpush1.msra.mxu0 0.0
        %2829 = vmatprep.subr.mxu0 0.0
        %2830 = vmatpush1.msra.mxu0 0.0
        %2831 = vmatprep.subr.mxu0 0.0
        %2832 = vmatpush1.msra.mxu0 0.0
        %2833 = vmatprep.subr.mxu0 0.0
        %2834 = vmatpush1.msra.mxu0 0.0
        %2835 = vmatprep.subr.mxu0 0.0
        %2836 = vmatpush1.msra.mxu0 0.0
        %2837 = vmatprep.subr.mxu0 0.0
        %2838 = vmatpush1.msra.mxu0 0.0
        %2839 = vmatprep.subr.mxu0 0.0
        %2840 = vmatpush1.msra.mxu0 0.0
        %2841 = vmatprep.subr.mxu0 0.0
        %2842 = vmatpush1.msra.mxu0 0.0
        %2843 = vmatprep.subr.mxu0 0.0
        %2844 = vmatpush1.msra.mxu0 0.0
        %2845 = vmatprep.subr.mxu0 0.0
        %2846 = vmatpush1.msra.mxu0 0.0
        %2847 = vmatprep.subr.mxu0 0.0
        %2848 = vmatpush1.msra.mxu0 0.0
        %2849 = vmatprep.subr.mxu0 0.0
        %2850 = vmatpush1.msra.mxu0 0.0
        %2851 = vmatprep.subr.mxu0 0.0
        %2852 = vmatpush1.msra.mxu0 0.0
        %2853 = vmatprep.subr.mxu0 0.0
        %2854 = vmatpush1.msra.mxu0 0.0
        %2855 = vmatprep.subr.mxu0 0.0
        %2856 = vmatpush1.msra.mxu0 0.0
        %2857 = vmatprep.subr.mxu0 0.0
        %2858 = vmatpush1.msra.mxu0 0.0
        %2859 = vmatprep.mubr.f32.mxu0 0.0
        %2860 = vmatmul.mubr.f32.gmra.mrb[0].mxu0 %v2793
        %v2861 = vpop.f32.mrb[0].mxu0
        %v2862 = vadd.f32 0.0, %v2861
        %v2863 = vpop.f32.mrb[0].mxu0
        %2864 = vdwg.mxu0
        %s2865 = scalar_lea.vmem %s6, 64
        %v2866 = vld [vmem:[%s2865] sm:$0xff]
        %v2868 = vsel %vm620, %v2866, 0
        %2870 = vmatprep.subr.mxu0 0.0
        %2871 = vmatpush1.msra.mxu0 %v2268
        %2872 = vmatprep.subr.mxu0 0.0
        %2873 = vmatpush1.msra.mxu0 0.0
        %2874 = vmatprep.subr.mxu0 0.0
        %2875 = vmatpush1.msra.mxu0 0.0
        %2876 = vmatprep.subr.mxu0 0.0
        %2877 = vmatpush1.msra.mxu0 0.0
        %2878 = vmatprep.subr.mxu0 0.0
        %2879 = vmatpush1.msra.mxu0 0.0
        %2880 = vmatprep.subr.mxu0 0.0
        %2881 = vmatpush1.msra.mxu0 0.0
        %2882 = vmatprep.subr.mxu0 0.0
        %2883 = vmatpush1.msra.mxu0 0.0
        %2884 = vmatprep.subr.mxu0 0.0
        %2885 = vmatpush1.msra.mxu0 0.0
        %2886 = vmatprep.subr.mxu0 0.0
        %2887 = vmatpush1.msra.mxu0 0.0
        %2888 = vmatprep.subr.mxu0 0.0
        %2889 = vmatpush1.msra.mxu0 0.0
        %2890 = vmatprep.subr.mxu0 0.0
        %2891 = vmatpush1.msra.mxu0 0.0
        %2892 = vmatprep.subr.mxu0 0.0
        %2893 = vmatpush1.msra.mxu0 0.0
        %2894 = vmatprep.subr.mxu0 0.0
        %2895 = vmatpush1.msra.mxu0 0.0
        %2896 = vmatprep.subr.mxu0 0.0
        %2897 = vmatpush1.msra.mxu0 0.0
        %2898 = vmatprep.subr.mxu0 0.0
        %2899 = vmatpush1.msra.mxu0 0.0
        %2900 = vmatprep.subr.mxu0 0.0
        %2901 = vmatpush1.msra.mxu0 0.0
        %2902 = vmatprep.subr.mxu0 0.0
        %2903 = vmatpush1.msra.mxu0 0.0
        %2904 = vmatprep.subr.mxu0 0.0
        %2905 = vmatpush1.msra.mxu0 0.0
        %2906 = vmatprep.subr.mxu0 0.0
        %2907 = vmatpush1.msra.mxu0 0.0
        %2908 = vmatprep.subr.mxu0 0.0
        %2909 = vmatpush1.msra.mxu0 0.0
        %2910 = vmatprep.subr.mxu0 0.0
        %2911 = vmatpush1.msra.mxu0 0.0
        %2912 = vmatprep.subr.mxu0 0.0
        %2913 = vmatpush1.msra.mxu0 0.0
        %2914 = vmatprep.subr.mxu0 0.0
        %2915 = vmatpush1.msra.mxu0 0.0
        %2916 = vmatprep.subr.mxu0 0.0
        %2917 = vmatpush1.msra.mxu0 0.0
        %2918 = vmatprep.subr.mxu0 0.0
        %2919 = vmatpush1.msra.mxu0 0.0
        %2920 = vmatprep.subr.mxu0 0.0
        %2921 = vmatpush1.msra.mxu0 0.0
        %2922 = vmatprep.subr.mxu0 0.0
        %2923 = vmatpush1.msra.mxu0 0.0
        %2924 = vmatprep.subr.mxu0 0.0
        %2925 = vmatpush1.msra.mxu0 0.0
        %2926 = vmatprep.subr.mxu0 0.0
        %2927 = vmatpush1.msra.mxu0 0.0
        %2928 = vmatprep.subr.mxu0 0.0
        %2929 = vmatpush1.msra.mxu0 0.0
        %2930 = vmatprep.subr.mxu0 0.0
        %2931 = vmatpush1.msra.mxu0 0.0
        %2932 = vmatprep.subr.mxu0 0.0
        %2933 = vmatpush1.msra.mxu0 0.0
        %2934 = vmatprep.mubr.f32.mxu0 0.0
        %2935 = vmatmul.mubr.f32.gmra.mrb[0].mxu0 %v2868
        %v2936 = vpop.f32.mrb[0].mxu0
        %v2937 = vadd.f32 0.0, %v2936
        %v2938 = vpop.f32.mrb[0].mxu0
        %2939 = vdwg.mxu0
        %2941 = vrot.lane.b32.xlu0 %v2412, 64
        %v2942 = vpop.permute.xlu0 %2941
        %2945 = vrot.lane.b32.xlu0 %v2562, 64
        %v2946 = vpop.permute.xlu0 %2945
        %2949 = vrot.lane.b32.xlu0 %v2712, 64
        %v2950 = vpop.permute.xlu0 %2949
        %2953 = vrot.lane.b32.xlu0 %v2862, 64
        %v2954 = vpop.permute.xlu0 %2953
        %vm2956 = vcmask 523264
        %v2957 = vsel %vm2956, %v2337, %v2942
        %v2958 = vsel %vm2956, %v2487, %v2946
        %v2959 = vsel %vm2956, %v2637, %v2950
        %v2960 = vsel %vm2956, %v2787, %v2954
        %v2961 = vld [vmem:[%s2] sm:$0xff]
        %v2962 = vld [vmem:[%s2 + $0x8] sm:$0xff]
        %v2963 = vld [vmem:[%s2 + $0x10] sm:$0xff]
        %v2964 = vld [vmem:[%s2 + $0x18] sm:$0xff]
        %v2965 = vld [vmem:[%s2 + $0x20] sm:$0xff]
        %v2966 = vld [vmem:[%s2 + $0x28] sm:$0xff]
        %v2967 = vld [vmem:[%s2 + $0x30] sm:$0xff]
        %v2968 = vld [vmem:[%s2 + $0x38] sm:$0xff]
        %v2969 = vld [vmem:[%s2 + $0x40] sm:$0xff]
        %v2970 = vld [vmem:[%s2 + $0x48] sm:$0xff]
        %v2971 = vld [vmem:[%s2 + $0x50] sm:$0xff]
        %v2972 = vld [vmem:[%s2 + $0x58] sm:$0xff]
        %v2973 = vld [vmem:[%s2 + $0x60] sm:$0xff]
        %v2974 = vld [vmem:[%s2 + $0x68] sm:$0xff]
        %v2975 = vld [vmem:[%s2 + $0x70] sm:$0xff]
        %v2976 = vld [vmem:[%s2 + $0x78] sm:$0xff]
        %v2977 = vld [vmem:[%s2 + $0x80] sm:$0xff]
        %v2978 = vld [vmem:[%s2 + $0x88] sm:$0xff]
        %v2979 = vld [vmem:[%s2 + $0x90] sm:$0xff]
        %v2980 = vld [vmem:[%s2 + $0x98] sm:$0xff]
        %v2981 = vld [vmem:[%s2 + $0xa0] sm:$0xff]
        %v2982 = vld [vmem:[%s2 + $0xa8] sm:$0xff]
        %v2983 = vld [vmem:[%s2 + $0xb0] sm:$0xff]
        %v2984 = vld [vmem:[%s2 + $0xb8] sm:$0xff]
        %v2985 = vld [vmem:[%s2 + $0xc0] sm:$0xff]
        %v2986 = vld [vmem:[%s2 + $0xc8] sm:$0xff]
        %v2987 = vld [vmem:[%s2 + $0xd0] sm:$0xff]
        %v2988 = vld [vmem:[%s2 + $0xd8] sm:$0xff]
        %v2989 = vld [vmem:[%s2 + $0xe0] sm:$0xff]
        %v2990 = vld [vmem:[%s2 + $0xe8] sm:$0xff]
        %v2991 = vld [vmem:[%s2 + $0xf0] sm:$0xff]
        %v2992 = vld [vmem:[%s2 + $0xf8] sm:$0xff]
        %v2993 = vld [vmem:[%s2 + $0x100] sm:$0xff]
        %v2994 = vld [vmem:[%s2 + $0x108] sm:$0xff]
        %v2995 = vld [vmem:[%s2 + $0x110] sm:$0xff]
        %v2996 = vld [vmem:[%s2 + $0x118] sm:$0xff]
        %v2997 = vld [vmem:[%s2 + $0x120] sm:$0xff]
        %v2998 = vld [vmem:[%s2 + $0x128] sm:$0xff]
        %v2999 = vld [vmem:[%s2 + $0x130] sm:$0xff]
        %v3000 = vld [vmem:[%s2 + $0x138] sm:$0xff]
        %v3001 = vld [vmem:[%s2 + $0x140] sm:$0xff]
        %v3002 = vld [vmem:[%s2 + $0x148] sm:$0xff]
        %v3003 = vld [vmem:[%s2 + $0x150] sm:$0xff]
        %v3004 = vld [vmem:[%s2 + $0x158] sm:$0xff]
        %v3005 = vld [vmem:[%s2 + $0x160] sm:$0xff]
        %v3006 = vld [vmem:[%s2 + $0x168] sm:$0xff]
        %v3007 = vld [vmem:[%s2 + $0x170] sm:$0xff]
        %v3008 = vld [vmem:[%s2 + $0x178] sm:$0xff]
        %v3009 = vld [vmem:[%s2 + $0x180] sm:$0xff]
        %v3010 = vld [vmem:[%s2 + $0x188] sm:$0xff]
        %v3011 = vld [vmem:[%s2 + $0x190] sm:$0xff]
        %v3012 = vld [vmem:[%s2 + $0x198] sm:$0xff]
        %v3013 = vld [vmem:[%s2 + $0x1a0] sm:$0xff]
        %v3014 = vld [vmem:[%s2 + $0x1a8] sm:$0xff]
        %v3015 = vld [vmem:[%s2 + $0x1b0] sm:$0xff]
        %v3016 = vld [vmem:[%s2 + $0x1b8] sm:$0xff]
        %v3017 = vld [vmem:[%s2 + $0x1c0] sm:$0xff]
        %v3018 = vld [vmem:[%s2 + $0x1c8] sm:$0xff]
        %v3019 = vld [vmem:[%s2 + $0x1d0] sm:$0xff]
        %v3020 = vld [vmem:[%s2 + $0x1d8] sm:$0xff]
        %v3021 = vld [vmem:[%s2 + $0x1e0] sm:$0xff]
        %v3022 = vld [vmem:[%s2 + $0x1e8] sm:$0xff]
        %v3023 = vld [vmem:[%s2 + $0x1f0] sm:$0xff]
        %v3024 = vld [vmem:[%s2 + $0x1f8] sm:$0xff]
        %v3025 = vld [vmem:[%s2 + $0x200] sm:$0xff]
        %v3026 = vld [vmem:[%s2 + $0x208] sm:$0xff]
        %v3027 = vld [vmem:[%s2 + $0x210] sm:$0xff]
        %v3028 = vld [vmem:[%s2 + $0x218] sm:$0xff]
        %v3029 = vld [vmem:[%s2 + $0x220] sm:$0xff]
        %v3030 = vld [vmem:[%s2 + $0x228] sm:$0xff]
        %v3031 = vld [vmem:[%s2 + $0x230] sm:$0xff]
        %v3032 = vld [vmem:[%s2 + $0x238] sm:$0xff]
        %v3033 = vld [vmem:[%s7] sm:$0xff]
        %3035 = vset.pattern.permute.xlu0 0
        %3036 = vperm.xlu0 %3035, %v3033
        %v3037 = vpop.permute.xlu0 %3036
        %v3040 = vsel %vm2956, %v2937, 0
        %3042 = vmatprep.subr.mxu0 0.0
        %3043 = vmatpush1.msra.mxu0 %v2961
        %3044 = vmatprep.subr.mxu0 0.0
        %3045 = vmatpush1.msra.mxu0 %v2962
        %3046 = vmatprep.subr.mxu0 0.0
        %3047 = vmatpush1.msra.mxu0 %v2963
        %3048 = vmatprep.subr.mxu0 0.0
        %3049 = vmatpush1.msra.mxu0 %v2964
        %3050 = vmatprep.subr.mxu0 0.0
        %3051 = vmatpush1.msra.mxu0 %v2965
        %3052 = vmatprep.subr.mxu0 0.0
        %3053 = vmatpush1.msra.mxu0 %v2966
        %3054 = vmatprep.subr.mxu0 0.0
        %3055 = vmatpush1.msra.mxu0 %v2967
        %3056 = vmatprep.subr.mxu0 0.0
        %3057 = vmatpush1.msra.mxu0 %v2968
        %3058 = vmatprep.subr.mxu0 0.0
        %3059 = vmatpush1.msra.mxu0 %v2969
        %3060 = vmatprep.subr.mxu0 0.0
        %3061 = vmatpush1.msra.mxu0 %v2970
        %3062 = vmatprep.subr.mxu0 0.0
        %3063 = vmatpush1.msra.mxu0 %v2971
        %3064 = vmatprep.subr.mxu0 0.0
        %3065 = vmatpush1.msra.mxu0 %v2972
        %3066 = vmatprep.subr.mxu0 0.0
        %3067 = vmatpush1.msra.mxu0 %v2973
        %3068 = vmatprep.subr.mxu0 0.0
        %3069 = vmatpush1.msra.mxu0 %v2974
        %3070 = vmatprep.subr.mxu0 0.0
        %3071 = vmatpush1.msra.mxu0 %v2975
        %3072 = vmatprep.subr.mxu0 0.0
        %3073 = vmatpush1.msra.mxu0 %v2976
        %3074 = vmatprep.subr.mxu0 0.0
        %3075 = vmatpush1.msra.mxu0 %v2977
        %3076 = vmatprep.subr.mxu0 0.0
        %3077 = vmatpush1.msra.mxu0 %v2978
        %3078 = vmatprep.subr.mxu0 0.0
        %3079 = vmatpush1.msra.mxu0 %v2979
        %3080 = vmatprep.subr.mxu0 0.0
        %3081 = vmatpush1.msra.mxu0 %v2980
        %3082 = vmatprep.subr.mxu0 0.0
        %3083 = vmatpush1.msra.mxu0 %v2981
        %3084 = vmatprep.subr.mxu0 0.0
        %3085 = vmatpush1.msra.mxu0 %v2982
        %3086 = vmatprep.subr.mxu0 0.0
        %3087 = vmatpush1.msra.mxu0 %v2983
        %3088 = vmatprep.subr.mxu0 0.0
        %3089 = vmatpush1.msra.mxu0 %v2984
        %3090 = vmatprep.subr.mxu0 0.0
        %3091 = vmatpush1.msra.mxu0 %v2985
        %3092 = vmatprep.subr.mxu0 0.0
        %3093 = vmatpush1.msra.mxu0 %v2986
        %3094 = vmatprep.subr.mxu0 0.0
        %3095 = vmatpush1.msra.mxu0 %v2987
        %3096 = vmatprep.subr.mxu0 0.0
        %3097 = vmatpush1.msra.mxu0 %v2988
        %3098 = vmatprep.subr.mxu0 0.0
        %3099 = vmatpush1.msra.mxu0 %v2989
        %3100 = vmatprep.subr.mxu0 0.0
        %3101 = vmatpush1.msra.mxu0 %v2990
        %3102 = vmatprep.subr.mxu0 0.0
        %3103 = vmatpush1.msra.mxu0 %v2991
        %3104 = vmatprep.subr.mxu0 0.0
        %3105 = vmatpush1.msra.mxu0 %v2992
        %3106 = vmatprep.mubr.f32.mxu0 %v2958
        %3107 = vmatmul.mubr.f32.gmra.mrb[0].mxu0 %v2957
        %v3108 = vpop.f32.mrb[0].mxu0
        %v3109 = vadd.f32 %v3037, %v3108
        %v3110 = vpop.f32.mrb[0].mxu0
        %3111 = vdwg.mxu0
        %3112 = vmatprep.subr.mxu0 0.0
        %3113 = vmatpush1.msra.mxu0 %v2993
        %3114 = vmatprep.subr.mxu0 0.0
        %3115 = vmatpush1.msra.mxu0 %v2994
        %3116 = vmatprep.subr.mxu0 0.0
        %3117 = vmatpush1.msra.mxu0 %v2995
        %3118 = vmatprep.subr.mxu0 0.0
        %3119 = vmatpush1.msra.mxu0 %v2996
        %3120 = vmatprep.subr.mxu0 0.0
        %3121 = vmatpush1.msra.mxu0 %v2997
        %3122 = vmatprep.subr.mxu0 0.0
        %3123 = vmatpush1.msra.mxu0 %v2998
        %3124 = vmatprep.subr.mxu0 0.0
        %3125 = vmatpush1.msra.mxu0 %v2999
        %3126 = vmatprep.subr.mxu0 0.0
        %3127 = vmatpush1.msra.mxu0 %v3000
        %3128 = vmatprep.subr.mxu0 0.0
        %3129 = vmatpush1.msra.mxu0 %v3001
        %3130 = vmatprep.subr.mxu0 0.0
        %3131 = vmatpush1.msra.mxu0 %v3002
        %3132 = vmatprep.subr.mxu0 0.0
        %3133 = vmatpush1.msra.mxu0 %v3003
        %3134 = vmatprep.subr.mxu0 0.0
        %3135 = vmatpush1.msra.mxu0 %v3004
        %3136 = vmatprep.subr.mxu0 0.0
        %3137 = vmatpush1.msra.mxu0 %v3005
        %3138 = vmatprep.subr.mxu0 0.0
        %3139 = vmatpush1.msra.mxu0 %v3006
        %3140 = vmatprep.subr.mxu0 0.0
        %3141 = vmatpush1.msra.mxu0 %v3007
        %3142 = vmatprep.subr.mxu0 0.0
        %3143 = vmatpush1.msra.mxu0 %v3008
        %3144 = vmatprep.subr.mxu0 0.0
        %3145 = vmatpush1.msra.mxu0 %v3009
        %3146 = vmatprep.subr.mxu0 0.0
        %3147 = vmatpush1.msra.mxu0 %v3010
        %3148 = vmatprep.subr.mxu0 0.0
        %3149 = vmatpush1.msra.mxu0 %v3011
        %3150 = vmatprep.subr.mxu0 0.0
        %3151 = vmatpush1.msra.mxu0 %v3012
        %3152 = vmatprep.subr.mxu0 0.0
        %3153 = vmatpush1.msra.mxu0 %v3013
        %3154 = vmatprep.subr.mxu0 0.0
        %3155 = vmatpush1.msra.mxu0 %v3014
        %3156 = vmatprep.subr.mxu0 0.0
        %3157 = vmatpush1.msra.mxu0 %v3015
        %3158 = vmatprep.subr.mxu0 0.0
        %3159 = vmatpush1.msra.mxu0 %v3016
        %3160 = vmatprep.subr.mxu0 0.0
        %3161 = vmatpush1.msra.mxu0 %v3017
        %3162 = vmatprep.subr.mxu0 0.0
        %3163 = vmatpush1.msra.mxu0 %v3018
        %3164 = vmatprep.subr.mxu0 0.0
        %3165 = vmatpush1.msra.mxu0 %v3019
        %3166 = vmatprep.subr.mxu0 0.0
        %3167 = vmatpush1.msra.mxu0 %v3020
        %3168 = vmatprep.subr.mxu0 0.0
        %3169 = vmatpush1.msra.mxu0 %v3021
        %3170 = vmatprep.subr.mxu0 0.0
        %3171 = vmatpush1.msra.mxu0 %v3022
        %3172 = vmatprep.subr.mxu0 0.0
        %3173 = vmatpush1.msra.mxu0 %v3023
        %3174 = vmatprep.subr.mxu0 0.0
        %3175 = vmatpush1.msra.mxu0 %v3024
        %3176 = vmatprep.mubr.f32.mxu0 %v2960
        %3177 = vmatmul.mubr.f32.gmra.mrb[0].mxu0 %v2959
        %v3178 = vpop.f32.mrb[0].mxu0
        %v3179 = vadd.f32 %v3109, %v3178
        %v3180 = vpop.f32.mrb[0].mxu0
        %3181 = vdwg.mxu0
        %3182 = vmatprep.subr.mxu0 0.0
        %3183 = vmatpush1.msra.mxu0 %v3025
        %3184 = vmatprep.subr.mxu0 0.0
        %3185 = vmatpush1.msra.mxu0 %v3026
        %3186 = vmatprep.subr.mxu0 0.0
        %3187 = vmatpush1.msra.mxu0 %v3027
        %3188 = vmatprep.subr.mxu0 0.0
        %3189 = vmatpush1.msra.mxu0 %v3028
        %3190 = vmatprep.subr.mxu0 0.0
        %3191 = vmatpush1.msra.mxu0 %v3029
        %3192 = vmatprep.subr.mxu0 0.0
        %3193 = vmatpush1.msra.mxu0 %v3030
        %3194 = vmatprep.subr.mxu0 0.0
        %3195 = vmatpush1.msra.mxu0 %v3031
        %3196 = vmatprep.subr.mxu0 0.0
        %3197 = vmatpush1.msra.mxu0 %v3032
        %3198 = vmatprep.subr.mxu0 0.0
        %3199 = vmatpush1.msra.mxu0 0.0
        %3200 = vmatprep.subr.mxu0 0.0
        %3201 = vmatpush1.msra.mxu0 0.0
        %3202 = vmatprep.subr.mxu0 0.0
        %3203 = vmatpush1.msra.mxu0 0.0
        %3204 = vmatprep.subr.mxu0 0.0
        %3205 = vmatpush1.msra.mxu0 0.0
        %3206 = vmatprep.subr.mxu0 0.0
        %3207 = vmatpush1.msra.mxu0 0.0
        %3208 = vmatprep.subr.mxu0 0.0
        %3209 = vmatpush1.msra.mxu0 0.0
        %3210 = vmatprep.subr.mxu0 0.0
        %3211 = vmatpush1.msra.mxu0 0.0
        %3212 = vmatprep.subr.mxu0 0.0
        %3213 = vmatpush1.msra.mxu0 0.0
        %3214 = vmatprep.subr.mxu0 0.0
        %3215 = vmatpush1.msra.mxu0 0.0
        %3216 = vmatprep.subr.mxu0 0.0
        %3217 = vmatpush1.msra.mxu0 0.0
        %3218 = vmatprep.subr.mxu0 0.0
        %3219 = vmatpush1.msra.mxu0 0.0
        %3220 = vmatprep.subr.mxu0 0.0
        %3221 = vmatpush1.msra.mxu0 0.0
        %3222 = vmatprep.subr.mxu0 0.0
        %3223 = vmatpush1.msra.mxu0 0.0
        %3224 = vmatprep.subr.mxu0 0.0
        %3225 = vmatpush1.msra.mxu0 0.0
        %3226 = vmatprep.subr.mxu0 0.0
        %3227 = vmatpush1.msra.mxu0 0.0
        %3228 = vmatprep.subr.mxu0 0.0
        %3229 = vmatpush1.msra.mxu0 0.0
        %3230 = vmatprep.subr.mxu0 0.0
        %3231 = vmatpush1.msra.mxu0 0.0
        %3232 = vmatprep.subr.mxu0 0.0
        %3233 = vmatpush1.msra.mxu0 0.0
        %3234 = vmatprep.subr.mxu0 0.0
        %3235 = vmatpush1.msra.mxu0 0.0
        %3236 = vmatprep.subr.mxu0 0.0
        %3237 = vmatpush1.msra.mxu0 0.0
        %3238 = vmatprep.subr.mxu0 0.0
        %3239 = vmatpush1.msra.mxu0 0.0
        %3240 = vmatprep.subr.mxu0 0.0
        %3241 = vmatpush1.msra.mxu0 0.0
        %3242 = vmatprep.subr.mxu0 0.0
        %3243 = vmatpush1.msra.mxu0 0.0
        %3244 = vmatprep.subr.mxu0 0.0
        %3245 = vmatpush1.msra.mxu0 0.0
        %3246 = vmatprep.mubr.f32.mxu0 0.0
        %3247 = vmatmul.mubr.f32.gmra.mrb[0].mxu0 %v3040
        %v3248 = vpop.f32.mrb[0].mxu0
        %v3249 = vadd.f32 %v3179, %v3248
        %v3250 = vpop.f32.mrb[0].mxu0
        %3251 = vdwg.mxu0
        %v3253 = vsel %vm620, %v545, 0
        %v3256 = vsel %vm548, %v542, 0
        %3258 = vmatprep.subr.mxu0 0.0
        %3259 = vmatpush1.msra.mxu0 %v3256
        %3260 = vmatprep.subr.mxu0 0.0
        %3261 = vmatpush1.msra.mxu0 0.0
        %3262 = vmatprep.subr.mxu0 0.0
        %3263 = vmatpush1.msra.mxu0 0.0
        %3264 = vmatprep.subr.mxu0 0.0
        %3265 = vmatpush1.msra.mxu0 0.0
        %3266 = vmatprep.subr.mxu0 0.0
        %3267 = vmatpush1.msra.mxu0 0.0
        %3268 = vmatprep.subr.mxu0 0.0
        %3269 = vmatpush1.msra.mxu0 0.0
        %3270 = vmatprep.subr.mxu0 0.0
        %3271 = vmatpush1.msra.mxu0 0.0
        %3272 = vmatprep.subr.mxu0 0.0
        %3273 = vmatpush1.msra.mxu0 0.0
        %3274 = vmatprep.subr.mxu0 0.0
        %3275 = vmatpush1.msra.mxu0 0.0
        %3276 = vmatprep.subr.mxu0 0.0
        %3277 = vmatpush1.msra.mxu0 0.0
        %3278 = vmatprep.subr.mxu0 0.0
        %3279 = vmatpush1.msra.mxu0 0.0
        %3280 = vmatprep.subr.mxu0 0.0
        %3281 = vmatpush1.msra.mxu0 0.0
        %3282 = vmatprep.subr.mxu0 0.0
        %3283 = vmatpush1.msra.mxu0 0.0
        %3284 = vmatprep.subr.mxu0 0.0
        %3285 = vmatpush1.msra.mxu0 0.0
        %3286 = vmatprep.subr.mxu0 0.0
        %3287 = vmatpush1.msra.mxu0 0.0
        %3288 = vmatprep.subr.mxu0 0.0
        %3289 = vmatpush1.msra.mxu0 0.0
        %3290 = vmatprep.subr.mxu0 0.0
        %3291 = vmatpush1.msra.mxu0 0.0
        %3292 = vmatprep.subr.mxu0 0.0
        %3293 = vmatpush1.msra.mxu0 0.0
        %3294 = vmatprep.subr.mxu0 0.0
        %3295 = vmatpush1.msra.mxu0 0.0
        %3296 = vmatprep.subr.mxu0 0.0
        %3297 = vmatpush1.msra.mxu0 0.0
        %3298 = vmatprep.subr.mxu0 0.0
        %3299 = vmatpush1.msra.mxu0 0.0
        %3300 = vmatprep.subr.mxu0 0.0
        %3301 = vmatpush1.msra.mxu0 0.0
        %3302 = vmatprep.subr.mxu0 0.0
        %3303 = vmatpush1.msra.mxu0 0.0
        %3304 = vmatprep.subr.mxu0 0.0
        %3305 = vmatpush1.msra.mxu0 0.0
        %3306 = vmatprep.subr.mxu0 0.0
        %3307 = vmatpush1.msra.mxu0 0.0
        %3308 = vmatprep.subr.mxu0 0.0
        %3309 = vmatpush1.msra.mxu0 0.0
        %3310 = vmatprep.subr.mxu0 0.0
        %3311 = vmatpush1.msra.mxu0 0.0
        %3312 = vmatprep.subr.mxu0 0.0
        %3313 = vmatpush1.msra.mxu0 0.0
        %3314 = vmatprep.subr.mxu0 0.0
        %3315 = vmatpush1.msra.mxu0 0.0
        %3316 = vmatprep.subr.mxu0 0.0
        %3317 = vmatpush1.msra.mxu0 0.0
        %3318 = vmatprep.subr.mxu0 0.0
        %3319 = vmatpush1.msra.mxu0 0.0
        %3320 = vmatprep.subr.mxu0 0.0
        %3321 = vmatpush1.msra.mxu0 0.0
        %3322 = vmatprep.mubr.f32.mxu0 0.0
        %3323 = vmatmul.mubr.f32.gmra.mrb[0].mxu0 %v3253
        %v3324 = vpop.f32.mrb[0].mxu0
        %v3325 = vadd.f32 %v3249, %v3324
        %v3326 = vpop.f32.mrb[0].mxu0
        %3327 = vdwg.mxu0
        %v3328 = vmul.f32 %v3325, 0.70710677
        %3329 = vst.msk [vmem:[%s433] sm:$0xff] %vm2956, %v3328
        %s3330 = sand.u32 %s313, 1
        %s3331 = scalar_lea.sflag [#allocation3], %s3330
        %s3332 = sand.u32 %s313, 1
        %s3333 = smul.addr %s3332, 8
        %s3334 = scalar_lea.vmem [#allocation2], %s3333
        // Predicated region
        $region73: #{tpu_custom_call.1} parent=71 // pred_check
          %p3335 = pneg %p323
        $region74: #{tpu_custom_call.1} parent=71 // pred_check_branch
          %3337 = sbr.rel (%p3335) target = $region76
        $region75: #{tpu_custom_call.1} parent=71 // pred_region
          %s3339 = ssub.s32 128, 128
          %3340 = vsyncadd %s3331, %s3339
          %s3341 = smul.addr %s27, 128
          %s3342 = scalar_lea.hbm %s13, %s3341
          %s3344 = sshll.u32 %s3334, 4
          %s3345 = int_to_ptr.vmem [resolvable:$true] %s3344
          %3347 = dma.vmem_to_hbm [thread:$0]  %s3345, 128, %s3342, %s3331
        $region76: #{tpu_custom_call.1} parent=71 // pred_fallthru
          _
      $region72: #{tpu_custom_call.1} parent=5 // pred_fallthru
        _
      %p3348 = scmp.le.s32.totalorder 2, %s22
      // Predicated region
      $region77: #{tpu_custom_call.1} parent=5 // pred_check
        %p3349 = pneg %p3348
      $region78: #{tpu_custom_call.1} parent=5 // pred_check_branch
        %3351 = sbr.rel (%p3349) target = $region80
      $region79: #{tpu_custom_call.1} parent=5 // pred_region
        %s3352 = ssub.s32 %s22, 2
        // Predicated region
        $region81: #{tpu_custom_call.1} parent=79 // pred_check
          %p3353 = pneg %p329
        $region82: #{tpu_custom_call.1} parent=79 // pred_check_branch
          %3355 = sbr.rel (%p3353) target = $region84
        $region83: #{tpu_custom_call.1} parent=79 // pred_region
          %s3356 = sand.u32 %s314, 1
          %s3357 = scalar_lea.sflag [#allocation3], %s3356
          %s3358 = sand.u32 %s314, 1
          %s3359 = smul.addr %s3358, 8
          %s3360 = scalar_lea.vmem [#allocation2], %s3359
          %3361 = dma.done %s3357, 128
        $region84: #{tpu_custom_call.1} parent=79 // pred_fallthru
          _
      $region80: #{tpu_custom_call.1} parent=5 // pred_fallthru
        _
    $region6: #{tpu_custom_call.1} parent=1 // loop_footer
      %s26 = sadd.s32 1, %s22
    $region7: #{tpu_custom_call.1} parent=1 // loop_footer_branch
      %21 = sbr.rel target = $region3
    $region8: #{tpu_custom_call.1} parent=1 // loop_exit
      _
    %3362 = vsyncpa [#allocation3], 1
    %s3363 = scalar_lea.sflag [#allocation3], 1
    %3364 = vsyncpa %s3363, 1

</llo_original>
